<compile_context>
chip_gen: v5e
topology: v5e:2x2
jax: 0.10.0
libtpu: 0.0.40
codegen_flags: <defaults>
</compile_context>

<pallas_src>
import math
import jax
import jax.numpy as jnp
from jax import lax
from jax.experimental import pallas as pl
from jax.experimental.pallas import tpu as pltpu  # noqa: F401  (TPU backend assumed)

# ---------------- static config (mirrors `configs` in ICPretrain.__init__) ----------
B = 2
SEQ_LEN = 8            # L, number of in-context tokens
LOOKBACK = 16
FUTURE = 8
D_MODEL = 32
N_HEADS = 4
HEAD_DIM = D_MODEL // N_HEADS
N_LAYERS = 2
MLP_RATIO = 4
MAX_CHANNEL_VOCAB = 16
MAX_POSITION_VOCAB = 16
MAX_SOURCE_VOCAB = 8
MAX_TAG_VOCAB = 8
ENABLE_TASK_EMB = True
EMB_INIT = 0.002
TOKENS = B * SEQ_LEN          # flattened (batch, token) rows inside the kernel
OUT_LANES = 128               # lane-dense output width
DATA_LANES = 128              # lane-dense packed per-token input width
# TODO(synk): only the 'compact' tokenization mode / regression branch
#             (task_ids[0] != 1) is implemented; the 'sequential' branch (token
#             interleaving + auxiliary mse/ce loss) and the classification head
#             (y_projection_cls / output_projection_cls) are not translated.

# ----- data slab lane offsets (all multiples of 8) -----
_C_X = 0                                  # lanes [ 0, 16)  token_x
_C_Y = _C_X + LOOKBACK                    # lanes [16, 24)  token_y
_C_EMB = 24                               # lanes [24, 56)  additive embeddings
_C_BIAS = _C_EMB + D_MODEL                # lanes [56, 72)  attention bias (T wide)

# ----- v_slab row map (slab width = D_MODEL = 32) -----
_R_NAN_X, _R_NAN_Y, _R_ANA_X, _R_ANA_Y = 0, 1, 2, 3
_R_TGT, _R_GTG, _R_BXY = 4, 5, 6
_R_LNPRE_W, _R_LNPRE_B, _R_LNF_W, _R_LNF_B, _R_BOUT = 7, 8, 9, 10, 11
_R_LN_BASE = 12                        # ln1_w[l] at 12+2l, ln2_w[l] at 13+2l
_R_WX = 16                             # rows 16..31 : x_projection  (LOOKBACK, D)
_R_WY = _R_WX + LOOKBACK               # rows 32..39 : y_projection  (FUTURE,   D)
_R_WOUT = _R_WY + FUTURE               # rows 40..71 : output proj   (D, FUTURE)
_V_ROWS = _R_WOUT + D_MODEL            # 72


# ---------------------------------- kernel helpers -----------------------------------
def _layernorm(h, w, b):
    mu = jnp.mean(h, axis=-1, keepdims=True)
    var = jnp.mean((h - mu) ** 2, axis=-1, keepdims=True)
    y = (h - mu) * jax.lax.rsqrt(var + 1e-5) * w
    if b is not None:
        y = y + b
    return y


def _erf_approx(z):
    # Abramowitz & Stegun 7.1.26, |err| < 1.5e-7 -- matches nn.GELU()'s exact-erf
    # variant to ~1e-7 (lax.erf itself has no Mosaic lowering rule).
    a1, a2, a3, a4, a5 = 0.254829592, -0.284496736, 1.421413741, -1.453152027, 1.061405429
    p = 0.3275911
    sgn = jnp.where(z >= 0.0, 1.0, -1.0)
    az = jnp.abs(z)
    t = 1.0 / (1.0 + p * az)
    poly = ((((a5 * t + a4) * t + a3) * t + a2) * t + a1) * t
    return sgn * (1.0 - poly * jnp.exp(-az * az))


def _gelu_exact(x):
    return 0.5 * x * (1.0 + _erf_approx(x * (1.0 / math.sqrt(2.0))))


# ---------------------------------- kernel ------------------------------------------
def icpretrain_kernel(data_ref, v_ref, attw_ref, mlpw_ref, out_ref):
    T, D, H, hd = TOKENS, D_MODEL, N_HEADS, HEAD_DIM

    # --- unpack the lane-dense per-token data slab (static lane slices, cheap) ---
    x = data_ref[:, _C_X:_C_X + LOOKBACK]            # (T, LOOKBACK)
    y = data_ref[:, _C_Y:_C_Y + FUTURE]              # (T, FUTURE)
    emb = data_ref[:, _C_EMB:_C_EMB + D]             # (T, D)
    att_bias = data_ref[:, _C_BIAS:_C_BIAS + T]      # (T, T), 0 attend / -1e30 masked

    # --- inf handling of the y part (regression target slots marked with +/-inf).
    #     Reference: inf slots -> tgt_embedding; non-inf slots -> y + gtg_embedding.
    inf_mask = jnp.isinf(y)
    y = jnp.where(inf_mask, v_ref[_R_TGT:_R_TGT + 1, :FUTURE],
                  y + v_ref[_R_GTG:_R_GTG + 1, :FUTURE])

    # --- nan handling of the concatenated token (split into x / y halves).
    #     Reference: nan slots -> nan_embedding; non-nan slots -> value + ana_embedding.
    x = jnp.where(jnp.isnan(x), v_ref[_R_NAN_X:_R_NAN_X + 1, :LOOKBACK],
                  x + v_ref[_R_ANA_X:_R_ANA_X + 1, :LOOKBACK])
    y = jnp.where(jnp.isnan(y), v_ref[_R_NAN_Y:_R_NAN_Y + 1, :FUTURE],
                  y + v_ref[_R_ANA_Y:_R_ANA_Y + 1, :FUTURE])

    # --- x / y projections (weights zero-padded so x@Wx + y@Wy == concat of halves),
    #     plus additive channel/position/source/task embeddings.
    tokens = (jnp.dot(x, v_ref[_R_WX:_R_WX + LOOKBACK, :],
                      preferred_element_type=jnp.float32)
              + jnp.dot(y, v_ref[_R_WY:_R_WY + FUTURE, :],
                        preferred_element_type=jnp.float32)
              + v_ref[_R_BXY:_R_BXY + 1, :]
              + emb)

    # --- transformer encoder (GPT-style pre-LN blocks, bias-free inner layers) ---
    h = _layernorm(tokens, v_ref[_R_LNPRE_W:_R_LNPRE_W + 1, :],
                   v_ref[_R_LNPRE_B:_R_LNPRE_B + 1, :])
    scale = 1.0 / math.sqrt(hd)

    for l in range(N_LAYERS):
        # ---- masked multi-head self-attention, heads batched on the leading axis;
        #      q/k/v projections fused into ONE batched dot (3H batch entries).
        r1 = _R_LN_BASE + 2 * l
        a_in = _layernorm(h, v_ref[r1:r1 + 1, :], None)
        wl = attw_ref[l]                                   # (4H, D, hd)
        qkv_w = wl[0:3 * H]                                # (3H, D, hd)
        wao = wl[3 * H:4 * H]                              # (H,  D, hd)

        a3 = jnp.broadcast_to(a_in[None, :, :], (3 * H, T, D))          # (3H, T, D)
        qkv = lax.dot_general(a3, qkv_w, (((2,), (1,)), ((0,), (0,))),
                              preferred_element_type=jnp.float32)        # (3H, T, hd)
        q3 = qkv[0:H]                                                    # (H, T, hd)
        k3 = qkv[H:2 * H]
        v3 = qkv[2 * H:3 * H]

        s = lax.dot_general(q3, k3, (((2,), (2,)), ((0,), (0,))),
                            preferred_element_type=jnp.float32)          # (H, T, T)
        s = s * scale + att_bias
        s = s - jnp.max(s, axis=-1, keepdims=True)
        e = jnp.exp(s)
        p = e * pl.reciprocal(jnp.sum(e, axis=-1, keepdims=True), approx=True)
        o3 = lax.dot_general(p, v3, (((2,), (1,)), ((0,), (0,))),
                             preferred_element_type=jnp.float32)         # (H, T, hd)
        z3 = lax.dot_general(o3, wao, (((2,), (2,)), ((0,), (0,))),
                             preferred_element_type=jnp.float32)         # (H, T, D)
        h = h + jnp.sum(z3, axis=0)

        # ---- MLP (bias-free, exact-erf GELU) ----
        r2 = r1 + 1
        m_in = _layernorm(h, v_ref[r2:r2 + 1, :], None)
        mid = _gelu_exact(jnp.dot(m_in, mlpw_ref[2 * l],
                                  preferred_element_type=jnp.float32))   # (T, 4D)
        h = h + lax.dot_general(mid, mlpw_ref[2 * l + 1],
                                (((1,), (1,)), ((), ())),
                                preferred_element_type=jnp.float32)      # (T, D)

    h = _layernorm(h, v_ref[_R_LNF_W:_R_LNF_W + 1, :],
                   v_ref[_R_LNF_B:_R_LNF_B + 1, :])

    # --- output projection + masking (keep predictions only at inf target slots) ---
    out = (jnp.dot(h, v_ref[_R_WOUT:_R_WOUT + D_MODEL, :FUTURE],
                   preferred_element_type=jnp.float32)
           + v_ref[_R_BOUT:_R_BOUT + 1, :FUTURE])
    out = jnp.where(inf_mask, out, 0.0)

    # --- lane-dense store: pad (T, FUTURE) -> (T, 128) via a matmul with [I_8 | 0],
    #     so the writeback is a full-width unmasked store (wrapper slices lanes [:8]).
    rid = lax.broadcasted_iota(jnp.int32, (FUTURE, OUT_LANES), 0)
    cid = lax.broadcasted_iota(jnp.int32, (FUTURE, OUT_LANES), 1)
    pad_mat = (rid == cid).astype(jnp.float32)
    out_ref[...] = jnp.dot(out, pad_mat, preferred_element_type=jnp.float32)


# ---------------------------------- wrapper ------------------------------------------
@jax.jit
def icpretrain_forward(packed, token_x, token_y, channel_label, position_label,
                       source_label, tag_multihot, y_true_shape, task_ids):
    del tag_multihot, y_true_shape   # tag_embedding == 0; process_output == False
    Bn, L, _ = token_x.shape
    T = Bn * L

    # ---- attention mask (no-grad block in the reference), block-diagonal over batch
    pm = jnp.logical_not(jnp.all(token_x == 0.0, axis=-1)).reshape(T)     # (T,)
    pos = position_label.reshape(T)
    bid = jnp.repeat(jnp.arange(Bn, dtype=jnp.int32), L)
    loc = jnp.tile(jnp.arange(L, dtype=jnp.int32), Bn)
    same_batch = bid[:, None] == bid[None, :]
    tril = loc[:, None] >= loc[None, :]
    pos_ne = pos[:, None] != pos[None, :]
    pad = pm[:, None] & pm[None, :]
    final_mask = (same_batch & tril & pos_ne & pad) | jnp.eye(T, dtype=bool)
    att_bias = jnp.where(final_mask, 0.0, -1e30).astype(jnp.float32)      # (T, T)

    # ---- additive embeddings (table gathers = glue, fused by jit) ----
    emb = (packed["channel_table"][channel_label]
           + packed["position_table"][position_label]
           + packed["source_table"][source_label])
    if ENABLE_TASK_EMB:
        emb = emb + packed["task_table"][task_ids][:, None, :]
    emb = emb.reshape(T, D_MODEL).astype(jnp.float32)

    # ---- pack all per-token data into one lane-dense (T, 128) slab (one DMA) ----
    data = jnp.zeros((T, DATA_LANES), jnp.float32)
    data = data.at[:, _C_X:_C_X + LOOKBACK].set(
        token_x.reshape(T, LOOKBACK).astype(jnp.float32))
    data = data.at[:, _C_Y:_C_Y + FUTURE].set(
        token_y.reshape(T, FUTURE).astype(jnp.float32))
    data = data.at[:, _C_EMB:_C_EMB + D_MODEL].set(emb)
    data = data.at[:, _C_BIAS:_C_BIAS + T].set(att_bias)

    out_pad = pl.pallas_call(
        icpretrain_kernel,
        out_shape=jax.ShapeDtypeStruct((T, OUT_LANES), jnp.float32),
    )(data, packed["v_slab"], packed["attn_w"], packed["mlp_w"])

    return out_pad[:, :FUTURE].reshape(Bn, L, FUTURE)


# ---------------------------------- params ------------------------------------------
def init_params(key):
    ks = iter(jax.random.split(key, 32))
    nrm = lambda shape, std: std * jax.random.normal(next(ks), shape, jnp.float32)
    d2 = D_MODEL // 2

    # x / y projections (nn.Linear std=0.02, zero bias) padded into full-width mats
    wx = nrm((LOOKBACK, d2), 0.02)
    wy = nrm((FUTURE, d2), 0.02)
    wx_pad = jnp.concatenate([wx, jnp.zeros((LOOKBACK, d2), jnp.float32)], axis=1)
    wy_pad = jnp.concatenate([jnp.zeros((FUTURE, d2), jnp.float32), wy], axis=1)
    bxy = jnp.zeros((1, D_MODEL), jnp.float32)

    def emb_table(rows):
        t = nrm((rows, D_MODEL), EMB_INIT)
        return t.at[0].set(0.0)           # padding_idx = 0

    cproj_std = 0.02 / math.sqrt(2 * N_LAYERS)
    return dict(
        wx_pad=wx_pad, wy_pad=wy_pad, bxy=bxy,
        nan_emb=nrm((1, LOOKBACK + FUTURE), EMB_INIT),
        ana_emb=nrm((1, LOOKBACK + FUTURE), EMB_INIT),
        tgt_emb=nrm((1, FUTURE), EMB_INIT),
        gtg_emb=nrm((1, FUTURE), EMB_INIT),
        channel_table=emb_table(MAX_CHANNEL_VOCAB + 1),
        position_table=emb_table(MAX_POSITION_VOCAB + 1),
        source_table=emb_table(MAX_SOURCE_VOCAB + 1),
        task_table=nrm((32, D_MODEL), EMB_INIT),
        lnpre_w=jnp.ones((1, D_MODEL), jnp.float32),
        lnpre_b=jnp.zeros((1, D_MODEL), jnp.float32),
        ln1_w=jnp.ones((N_LAYERS, 1, D_MODEL), jnp.float32),
        wqkv=nrm((N_LAYERS, D_MODEL, 3 * D_MODEL), 0.02),
        wao=nrm((N_LAYERS, D_MODEL, D_MODEL), cproj_std),
        ln2_w=jnp.ones((N_LAYERS, 1, D_MODEL), jnp.float32),
        wfc=nrm((N_LAYERS, D_MODEL, MLP_RATIO * D_MODEL), 0.02),
        wfp=nrm((N_LAYERS, MLP_RATIO * D_MODEL, D_MODEL), cproj_std),
        lnf_w=jnp.ones((1, D_MODEL), jnp.float32),
        lnf_b=jnp.zeros((1, D_MODEL), jnp.float32),
        wout=nrm((D_MODEL, FUTURE), 0.02),
        bout=jnp.zeros((1, FUTURE), jnp.float32),
    )


def pack_params(p):
    """One-time packing of the natural-shaped params into 3 kernel slabs."""
    H, hd = N_HEADS, HEAD_DIM

    def row(vec):                           # place a 1-D vector into a (1, D) row
        r = jnp.zeros((1, D_MODEL), jnp.float32)
        return r.at[0, :vec.shape[0]].set(vec)

    rows = [
        row(p["nan_emb"][0, :LOOKBACK]),            # 0  _R_NAN_X
        row(p["nan_emb"][0, LOOKBACK:]),            # 1  _R_NAN_Y
        row(p["ana_emb"][0, :LOOKBACK]),            # 2  _R_ANA_X
        row(p["ana_emb"][0, LOOKBACK:]),            # 3  _R_ANA_Y
        row(p["tgt_emb"][0]),                       # 4  _R_TGT
        row(p["gtg_emb"][0]),                       # 5  _R_GTG
        p["bxy"],                                   # 6  _R_BXY
        p["lnpre_w"], p["lnpre_b"],                 # 7, 8
        p["lnf_w"], p["lnf_b"],                     # 9, 10
        row(p["bout"][0]),                          # 11 _R_BOUT
        p["ln1_w"][0], p["ln2_w"][0],               # 12, 13
        p["ln1_w"][1], p["ln2_w"][1],               # 14, 15
    ]
    v_rows = jnp.concatenate(rows, axis=0)                              # (16, 32)
    w_in = jnp.concatenate([p["wx_pad"], p["wy_pad"]], axis=0)          # (24, 32)
    wout_rows = jnp.zeros((D_MODEL, D_MODEL), jnp.float32).at[:, :FUTURE].set(p["wout"])
    v_slab = jnp.concatenate([v_rows, w_in, wout_rows], axis=0)         # (72, 32)
    assert v_slab.shape == (_V_ROWS, D_MODEL)

    def per_head_in(w):       # (D, D): q[t, h*hd+e] = sum_d x[t,d] w[d, h*hd+e]
        return w.reshape(D_MODEL, H, hd).transpose(1, 0, 2)             # (H, D, hd)

    def per_head_out(w):      # (D, D): rows grouped by head -> (H, D_out, hd)
        return w.reshape(H, hd, D_MODEL).transpose(0, 2, 1)             # (H, D, hd)

    attn_layers = []
    mlp_parts = []
    for l in range(N_LAYERS):
        wqkv = p["wqkv"][l]
        wq = wqkv[:, 0 * D_MODEL:1 * D_MODEL]
        wk = wqkv[:, 1 * D_MODEL:2 * D_MODEL]
        wv = wqkv[:, 2 * D_MODEL:3 * D_MODEL]
        attn_layers.append(jnp.concatenate(
            [per_head_in(wq), per_head_in(wk), per_head_in(wv),
             per_head_out(p["wao"][l])], axis=0))                       # (4H, D, hd)
        mlp_parts.append(jnp.stack([p["wfc"][l], p["wfp"][l].T], axis=0))  # (2, 32, 128)

    attn_w = jnp.stack(attn_layers, axis=0)          # (N_LAYERS, 4H, D, hd) = (2,16,32,8)
    mlp_w = jnp.concatenate(mlp_parts, axis=0)       # (N_LAYERS*2, 32, 128)  = (4,32,128)

    return dict(v_slab=v_slab, attn_w=attn_w, mlp_w=mlp_w,
                channel_table=p["channel_table"], position_table=p["position_table"],
                source_table=p["source_table"], task_table=p["task_table"])


# ---------------------------------- main ---------------------------------------------
if __name__ == "__main__":
    key = jax.random.PRNGKey(0)
    k_p, k_x, k_y, k_c, k_s = jax.random.split(key, 5)
    packed = pack_params(init_params(k_p))

    token_x = 0.1 * jax.random.normal(k_x, (B, SEQ_LEN, LOOKBACK), jnp.float32)
    token_x = token_x.at[1, SEQ_LEN - 1].set(0.0)       # a padded (all-zero) token
    token_x = token_x.at[0, 2, 3].set(jnp.nan)          # a missing value
    token_y = 0.1 * jax.random.normal(k_y, (B, SEQ_LEN, FUTURE), jnp.float32)
    token_y = token_y.at[:, -2:, :].set(jnp.inf)        # target slots marked with inf
    token_y = token_y.at[0, 1, 0].set(jnp.nan)

    channel_label = 1 + jax.random.randint(k_c, (B, SEQ_LEN), 0, MAX_CHANNEL_VOCAB)
    channel_label = channel_label.at[1, SEQ_LEN - 1].set(0)
    position_label = jnp.broadcast_to(1 + jnp.arange(SEQ_LEN, dtype=jnp.int32),
                                      (B, SEQ_LEN))
    source_label = 1 + jax.random.randint(k_s, (B, SEQ_LEN), 0, MAX_SOURCE_VOCAB)
    tag_multihot = jnp.zeros((B, SEQ_LEN, MAX_TAG_VOCAB), jnp.float32)   # unused
    y_true_shape = jnp.array([[SEQ_LEN, FUTURE]] * B, jnp.int32)         # unused
    task_ids = jnp.array([2, 2], jnp.int32)                              # != 1 branch

    out = icpretrain_forward(packed, token_x, token_y, channel_label, position_label,
                             source_label, tag_multihot, y_true_shape, task_ids)
    out = jax.block_until_ready(out)
    assert out.shape == (B, SEQ_LEN, FUTURE)
    print("KERNEL_OK")
</pallas_src>

<mosaic_0001>
module attributes {stable_mosaic.version = 11 : i64} {
  func.func @icpretrain_kernel(%arg0: memref<16x128xf32, #tpu.memory_space<vmem>>, %arg1: memref<72x32xf32, #tpu.memory_space<vmem>>, %arg2: memref<2x16x32x8xf32, #tpu.memory_space<vmem>>, %arg3: memref<4x32x128xf32, #tpu.memory_space<vmem>>, %arg4: memref<16x128xf32, #tpu.memory_space<vmem>>) attributes {dimension_semantics = [], scalar_prefetch = 0 : i64, scratch_operands = 0 : i64, tpu.core_type = #tpu.core_type<tc>} {
    %c0 = arith.constant 0 : index
    %c0_0 = arith.constant 0 : index
    %0 = vector.load %arg0[%c0, %c0_0] : memref<16x128xf32, #tpu.memory_space<vmem>>, vector<16x16xf32>
    %c0_1 = arith.constant 0 : index
    %c16 = arith.constant 16 : index
    %1 = vector.load %arg0[%c0_1, %c16] : memref<16x128xf32, #tpu.memory_space<vmem>>, vector<16x8xf32>
    %c0_2 = arith.constant 0 : index
    %c24 = arith.constant 24 : index
    %2 = vector.load %arg0[%c0_2, %c24] : memref<16x128xf32, #tpu.memory_space<vmem>>, vector<16x32xf32>
    %c0_3 = arith.constant 0 : index
    %c56 = arith.constant 56 : index
    %3 = vector.load %arg0[%c0_3, %c56] : memref<16x128xf32, #tpu.memory_space<vmem>>, vector<16x16xf32>
    %4 = math.absf %1 : vector<16x8xf32>
    %cst = arith.constant 0x7F800000 : f32
    %5 = vector.broadcast %cst : f32 to vector<16x8xf32>
    %6 = arith.cmpf oeq, %4, %5 : vector<16x8xf32>
    %c4 = arith.constant 4 : index
    %c0_4 = arith.constant 0 : index
    %7 = vector.load %arg1[%c4, %c0_4] : memref<72x32xf32, #tpu.memory_space<vmem>>, vector<1x8xf32>
    %c5 = arith.constant 5 : index
    %c0_5 = arith.constant 0 : index
    %8 = vector.load %arg1[%c5, %c0_5] : memref<72x32xf32, #tpu.memory_space<vmem>>, vector<1x8xf32>
    %9 = vector.broadcast %8 : vector<1x8xf32> to vector<16x8xf32>
    %10 = arith.addf %1, %9 : vector<16x8xf32>
    %11 = vector.shape_cast %7 : vector<1x8xf32> to vector<1x8xf32>
    %12 = vector.broadcast %11 : vector<1x8xf32> to vector<16x8xf32>
    %13 = arith.select %6, %12, %10 : vector<16x8xi1>, vector<16x8xf32>
    %14 = arith.cmpf one, %0, %0 : vector<16x16xf32>
    %c0_6 = arith.constant 0 : index
    %c0_7 = arith.constant 0 : index
    %15 = vector.load %arg1[%c0_6, %c0_7] : memref<72x32xf32, #tpu.memory_space<vmem>>, vector<1x16xf32>
    %c2 = arith.constant 2 : index
    %c0_8 = arith.constant 0 : index
    %16 = vector.load %arg1[%c2, %c0_8] : memref<72x32xf32, #tpu.memory_space<vmem>>, vector<1x16xf32>
    %17 = vector.broadcast %16 : vector<1x16xf32> to vector<16x16xf32>
    %18 = arith.addf %0, %17 : vector<16x16xf32>
    %19 = vector.shape_cast %15 : vector<1x16xf32> to vector<1x16xf32>
    %20 = vector.broadcast %19 : vector<1x16xf32> to vector<16x16xf32>
    %21 = arith.select %14, %20, %18 : vector<16x16xi1>, vector<16x16xf32>
    %22 = arith.cmpf one, %13, %13 : vector<16x8xf32>
    %c1 = arith.constant 1 : index
    %c0_9 = arith.constant 0 : index
    %23 = vector.load %arg1[%c1, %c0_9] : memref<72x32xf32, #tpu.memory_space<vmem>>, vector<1x8xf32>
    %c3 = arith.constant 3 : index
    %c0_10 = arith.constant 0 : index
    %24 = vector.load %arg1[%c3, %c0_10] : memref<72x32xf32, #tpu.memory_space<vmem>>, vector<1x8xf32>
    %25 = vector.broadcast %24 : vector<1x8xf32> to vector<16x8xf32>
    %26 = arith.addf %13, %25 : vector<16x8xf32>
    %27 = vector.shape_cast %23 : vector<1x8xf32> to vector<1x8xf32>
    %28 = vector.broadcast %27 : vector<1x8xf32> to vector<16x8xf32>
    %29 = arith.select %22, %28, %26 : vector<16x8xi1>, vector<16x8xf32>
    %c16_11 = arith.constant 16 : index
    %c0_12 = arith.constant 0 : index
    %30 = vector.load %arg1[%c16_11, %c0_12] : memref<72x32xf32, #tpu.memory_space<vmem>>, vector<16x32xf32>
    %cst_13 = arith.constant dense<0.000000e+00> : vector<16x32xf32>
    %31 = tpu.matmul %21, %30, %cst_13 {dimension_numbers = #tpu.dot_dimension_numbers<[1], [0], [0], [1], [0, 0, 1, 1], [], []>} : vector<16x16xf32>, vector<16x32xf32>, vector<16x32xf32> -> vector<16x32xf32>
    %c32 = arith.constant 32 : index
    %c0_14 = arith.constant 0 : index
    %32 = vector.load %arg1[%c32, %c0_14] : memref<72x32xf32, #tpu.memory_space<vmem>>, vector<8x32xf32>
    %cst_15 = arith.constant dense<0.000000e+00> : vector<16x32xf32>
    %33 = tpu.matmul %29, %32, %cst_15 {dimension_numbers = #tpu.dot_dimension_numbers<[1], [0], [0], [1], [0, 0, 1, 1], [], []>} : vector<16x8xf32>, vector<8x32xf32>, vector<16x32xf32> -> vector<16x32xf32>
    %34 = arith.addf %31, %33 : vector<16x32xf32>
    %c6 = arith.constant 6 : index
    %c0_16 = arith.constant 0 : index
    %35 = vector.load %arg1[%c6, %c0_16] : memref<72x32xf32, #tpu.memory_space<vmem>>, vector<1x32xf32>
    %36 = vector.broadcast %35 : vector<1x32xf32> to vector<16x32xf32>
    %37 = arith.addf %34, %36 : vector<16x32xf32>
    %38 = arith.addf %37, %2 : vector<16x32xf32>
    %c7 = arith.constant 7 : index
    %c0_17 = arith.constant 0 : index
    %39 = vector.load %arg1[%c7, %c0_17] : memref<72x32xf32, #tpu.memory_space<vmem>>, vector<1x32xf32>
    %c8 = arith.constant 8 : index
    %c0_18 = arith.constant 0 : index
    %40 = vector.load %arg1[%c8, %c0_18] : memref<72x32xf32, #tpu.memory_space<vmem>>, vector<1x32xf32>
    %cst_19 = arith.constant dense<0.000000e+00> : vector<16xf32>
    %41 = vector.multi_reduction <add>, %38, %cst_19 [1] : vector<16x32xf32> to vector<16xf32>
    %42 = vector.shape_cast %41 : vector<16xf32> to vector<16x1xf32>
    %cst_20 = arith.constant 3.200000e+01 : f32
    %43 = vector.broadcast %cst_20 : f32 to vector<16x1xf32>
    %44 = arith.divf %42, %43 : vector<16x1xf32>
    %45 = vector.broadcast %44 : vector<16x1xf32> to vector<16x32xf32>
    %46 = arith.subf %38, %45 : vector<16x32xf32>
    %47 = arith.mulf %46, %46 : vector<16x32xf32>
    %cst_21 = arith.constant dense<0.000000e+00> : vector<16xf32>
    %48 = vector.multi_reduction <add>, %47, %cst_21 [1] : vector<16x32xf32> to vector<16xf32>
    %49 = vector.shape_cast %48 : vector<16xf32> to vector<16x1xf32>
    %cst_22 = arith.constant 3.200000e+01 : f32
    %50 = vector.broadcast %cst_22 : f32 to vector<16x1xf32>
    %51 = arith.divf %49, %50 : vector<16x1xf32>
    %52 = vector.broadcast %44 : vector<16x1xf32> to vector<16x32xf32>
    %53 = arith.subf %38, %52 : vector<16x32xf32>
    %cst_23 = arith.constant 9.99999974E-6 : f32
    %54 = vector.broadcast %cst_23 : f32 to vector<16x1xf32>
    %55 = arith.addf %51, %54 : vector<16x1xf32>
    %56 = math.rsqrt %55 : vector<16x1xf32>
    %57 = vector.broadcast %56 : vector<16x1xf32> to vector<16x32xf32>
    %58 = arith.mulf %53, %57 : vector<16x32xf32>
    %59 = vector.broadcast %39 : vector<1x32xf32> to vector<16x32xf32>
    %60 = arith.mulf %58, %59 : vector<16x32xf32>
    %61 = vector.broadcast %40 : vector<1x32xf32> to vector<16x32xf32>
    %62 = arith.addf %60, %61 : vector<16x32xf32>
    %c12 = arith.constant 12 : index
    %c0_24 = arith.constant 0 : index
    %63 = vector.load %arg1[%c12, %c0_24] : memref<72x32xf32, #tpu.memory_space<vmem>>, vector<1x32xf32>
    %cst_25 = arith.constant dense<0.000000e+00> : vector<16xf32>
    %64 = vector.multi_reduction <add>, %62, %cst_25 [1] : vector<16x32xf32> to vector<16xf32>
    %65 = vector.shape_cast %64 : vector<16xf32> to vector<16x1xf32>
    %cst_26 = arith.constant 3.200000e+01 : f32
    %66 = vector.broadcast %cst_26 : f32 to vector<16x1xf32>
    %67 = arith.divf %65, %66 : vector<16x1xf32>
    %68 = vector.broadcast %67 : vector<16x1xf32> to vector<16x32xf32>
    %69 = arith.subf %62, %68 : vector<16x32xf32>
    %70 = arith.mulf %69, %69 : vector<16x32xf32>
    %cst_27 = arith.constant dense<0.000000e+00> : vector<16xf32>
    %71 = vector.multi_reduction <add>, %70, %cst_27 [1] : vector<16x32xf32> to vector<16xf32>
    %72 = vector.shape_cast %71 : vector<16xf32> to vector<16x1xf32>
    %cst_28 = arith.constant 3.200000e+01 : f32
    %73 = vector.broadcast %cst_28 : f32 to vector<16x1xf32>
    %74 = arith.divf %72, %73 : vector<16x1xf32>
    %75 = vector.broadcast %67 : vector<16x1xf32> to vector<16x32xf32>
    %76 = arith.subf %62, %75 : vector<16x32xf32>
    %cst_29 = arith.constant 9.99999974E-6 : f32
    %77 = vector.broadcast %cst_29 : f32 to vector<16x1xf32>
    %78 = arith.addf %74, %77 : vector<16x1xf32>
    %79 = math.rsqrt %78 : vector<16x1xf32>
    %80 = vector.broadcast %79 : vector<16x1xf32> to vector<16x32xf32>
    %81 = arith.mulf %76, %80 : vector<16x32xf32>
    %82 = vector.broadcast %63 : vector<1x32xf32> to vector<16x32xf32>
    %83 = arith.mulf %81, %82 : vector<16x32xf32>
    %c0_30 = arith.constant 0 : index
    %c0_31 = arith.constant 0 : index
    %c0_32 = arith.constant 0 : index
    %c0_33 = arith.constant 0 : index
    %84 = vector.load %arg2[%c0_30, %c0_31, %c0_32, %c0_33] : memref<2x16x32x8xf32, #tpu.memory_space<vmem>>, vector<1x16x32x8xf32>
    %85 = vector.shape_cast %84 : vector<1x16x32x8xf32> to vector<16x32x8xf32>
    %86 = vector.extract_strided_slice %85 {offsets = [0, 0, 0], sizes = [12, 32, 8], strides = [1, 1, 1]} : vector<16x32x8xf32> to vector<12x32x8xf32>
    %87 = vector.extract_strided_slice %85 {offsets = [12, 0, 0], sizes = [4, 32, 8], strides = [1, 1, 1]} : vector<16x32x8xf32> to vector<4x32x8xf32>
    %88 = vector.shape_cast %83 : vector<16x32xf32> to vector<1x16x32xf32>
    %89 = vector.shape_cast %88 : vector<1x16x32xf32> to vector<1x16x32xf32>
    %90 = vector.broadcast %89 : vector<1x16x32xf32> to vector<12x16x32xf32>
    %cst_34 = arith.constant dense<0.000000e+00> : vector<12x16x8xf32>
    %91 = tpu.matmul %90, %86, %cst_34 {dimension_numbers = #tpu.dot_dimension_numbers<[2], [1], [1], [2], [0, 0, 0, 1, 1, 2], [0], [0]>} : vector<12x16x32xf32>, vector<12x32x8xf32>, vector<12x16x8xf32> -> vector<12x16x8xf32>
    %92 = vector.extract_strided_slice %91 {offsets = [0, 0, 0], sizes = [4, 16, 8], strides = [1, 1, 1]} : vector<12x16x8xf32> to vector<4x16x8xf32>
    %93 = vector.extract_strided_slice %91 {offsets = [4, 0, 0], sizes = [4, 16, 8], strides = [1, 1, 1]} : vector<12x16x8xf32> to vector<4x16x8xf32>
    %94 = vector.extract_strided_slice %91 {offsets = [8, 0, 0], sizes = [4, 16, 8], strides = [1, 1, 1]} : vector<12x16x8xf32> to vector<4x16x8xf32>
    %cst_35 = arith.constant dense<0.000000e+00> : vector<4x16x16xf32>
    %95 = tpu.matmul %92, %93, %cst_35 {dimension_numbers = #tpu.dot_dimension_numbers<[2], [2], [1], [1], [0, 0, 0, 1, 1, 1], [0], [0]>} : vector<4x16x8xf32>, vector<4x16x8xf32>, vector<4x16x16xf32> -> vector<4x16x16xf32>
    %cst_36 = arith.constant 0.353553385 : f32
    %96 = vector.broadcast %cst_36 : f32 to vector<4x16x16xf32>
    %97 = arith.mulf %95, %96 : vector<4x16x16xf32>
    %98 = vector.shape_cast %3 : vector<16x16xf32> to vector<1x16x16xf32>
    %99 = vector.broadcast %98 : vector<1x16x16xf32> to vector<4x16x16xf32>
    %100 = arith.addf %97, %99 : vector<4x16x16xf32>
    %cst_37 = arith.constant dense<0xFF800000> : vector<4x16xf32>
    %101 = vector.multi_reduction <maximumf>, %100, %cst_37 [2] : vector<4x16x16xf32> to vector<4x16xf32>
    %102 = vector.shape_cast %101 : vector<4x16xf32> to vector<4x16x1xf32>
    %103 = vector.broadcast %102 : vector<4x16x1xf32> to vector<4x16x16xf32>
    %104 = arith.subf %100, %103 : vector<4x16x16xf32>
    %105 = math.exp %104 : vector<4x16x16xf32>
    %cst_38 = arith.constant dense<0.000000e+00> : vector<4x16xf32>
    %106 = vector.multi_reduction <add>, %105, %cst_38 [2] : vector<4x16x16xf32> to vector<4x16xf32>
    %107 = vector.shape_cast %106 : vector<4x16xf32> to vector<4x16x1xf32>
    %108 = tpu.reciprocal %107 {approx = true} : vector<4x16x1xf32> -> vector<4x16x1xf32>
    %109 = vector.broadcast %108 : vector<4x16x1xf32> to vector<4x16x16xf32>
    %110 = arith.mulf %105, %109 : vector<4x16x16xf32>
    %cst_39 = arith.constant dense<0.000000e+00> : vector<4x16x8xf32>
    %111 = tpu.matmul %110, %94, %cst_39 {dimension_numbers = #tpu.dot_dimension_numbers<[2], [1], [1], [2], [0, 0, 0, 1, 1, 2], [0], [0]>} : vector<4x16x16xf32>, vector<4x16x8xf32>, vector<4x16x8xf32> -> vector<4x16x8xf32>
    %cst_40 = arith.constant dense<0.000000e+00> : vector<4x16x32xf32>
    %112 = tpu.matmul %111, %87, %cst_40 {dimension_numbers = #tpu.dot_dimension_numbers<[2], [2], [1], [1], [0, 0, 0, 1, 1, 1], [0], [0]>} : vector<4x16x8xf32>, vector<4x32x8xf32>, vector<4x16x32xf32> -> vector<4x16x32xf32>
    %cst_41 = arith.constant dense<0.000000e+00> : vector<16x32xf32>
    %113 = vector.multi_reduction <add>, %112, %cst_41 [0] : vector<4x16x32xf32> to vector<16x32xf32>
    %114 = arith.addf %62, %113 : vector<16x32xf32>
    %c13 = arith.constant 13 : index
    %c0_42 = arith.constant 0 : index
    %115 = vector.load %arg1[%c13, %c0_42] : memref<72x32xf32, #tpu.memory_space<vmem>>, vector<1x32xf32>
    %cst_43 = arith.constant dense<0.000000e+00> : vector<16xf32>
    %116 = vector.multi_reduction <add>, %114, %cst_43 [1] : vector<16x32xf32> to vector<16xf32>
    %117 = vector.shape_cast %116 : vector<16xf32> to vector<16x1xf32>
    %cst_44 = arith.constant 3.200000e+01 : f32
    %118 = vector.broadcast %cst_44 : f32 to vector<16x1xf32>
    %119 = arith.divf %117, %118 : vector<16x1xf32>
    %120 = vector.broadcast %119 : vector<16x1xf32> to vector<16x32xf32>
    %121 = arith.subf %114, %120 : vector<16x32xf32>
    %122 = arith.mulf %121, %121 : vector<16x32xf32>
    %cst_45 = arith.constant dense<0.000000e+00> : vector<16xf32>
    %123 = vector.multi_reduction <add>, %122, %cst_45 [1] : vector<16x32xf32> to vector<16xf32>
    %124 = vector.shape_cast %123 : vector<16xf32> to vector<16x1xf32>
    %cst_46 = arith.constant 3.200000e+01 : f32
    %125 = vector.broadcast %cst_46 : f32 to vector<16x1xf32>
    %126 = arith.divf %124, %125 : vector<16x1xf32>
    %127 = vector.broadcast %119 : vector<16x1xf32> to vector<16x32xf32>
    %128 = arith.subf %114, %127 : vector<16x32xf32>
    %cst_47 = arith.constant 9.99999974E-6 : f32
    %129 = vector.broadcast %cst_47 : f32 to vector<16x1xf32>
    %130 = arith.addf %126, %129 : vector<16x1xf32>
    %131 = math.rsqrt %130 : vector<16x1xf32>
    %132 = vector.broadcast %131 : vector<16x1xf32> to vector<16x32xf32>
    %133 = arith.mulf %128, %132 : vector<16x32xf32>
    %134 = vector.broadcast %115 : vector<1x32xf32> to vector<16x32xf32>
    %135 = arith.mulf %133, %134 : vector<16x32xf32>
    %c0_48 = arith.constant 0 : index
    %c0_49 = arith.constant 0 : index
    %c0_50 = arith.constant 0 : index
    %136 = vector.load %arg3[%c0_48, %c0_49, %c0_50] : memref<4x32x128xf32, #tpu.memory_space<vmem>>, vector<1x32x128xf32>
    %137 = vector.shape_cast %136 : vector<1x32x128xf32> to vector<32x128xf32>
    %cst_51 = arith.constant dense<0.000000e+00> : vector<16x128xf32>
    %138 = tpu.matmul %135, %137, %cst_51 {dimension_numbers = #tpu.dot_dimension_numbers<[1], [0], [0], [1], [0, 0, 1, 1], [], []>} : vector<16x32xf32>, vector<32x128xf32>, vector<16x128xf32> -> vector<16x128xf32>
    %cst_52 = arith.constant 5.000000e-01 : f32
    %139 = vector.broadcast %cst_52 : f32 to vector<16x128xf32>
    %140 = arith.mulf %139, %138 : vector<16x128xf32>
    %cst_53 = arith.constant 0.707106769 : f32
    %141 = vector.broadcast %cst_53 : f32 to vector<16x128xf32>
    %142 = arith.mulf %138, %141 : vector<16x128xf32>
    %cst_54 = arith.constant 0.000000e+00 : f32
    %143 = vector.broadcast %cst_54 : f32 to vector<16x128xf32>
    %144 = arith.cmpf oge, %142, %143 : vector<16x128xf32>
    %cst_55 = arith.constant 1.000000e+00 : f32
    %cst_56 = arith.constant -1.000000e+00 : f32
    %145 = vector.broadcast %cst_55 : f32 to vector<16x128xf32>
    %146 = vector.broadcast %cst_56 : f32 to vector<16x128xf32>
    %147 = arith.select %144, %145, %146 : vector<16x128xi1>, vector<16x128xf32>
    %148 = math.absf %142 : vector<16x128xf32>
    %cst_57 = arith.constant 0.327591091 : f32
    %149 = vector.broadcast %cst_57 : f32 to vector<16x128xf32>
    %150 = arith.mulf %149, %148 : vector<16x128xf32>
    %cst_58 = arith.constant 1.000000e+00 : f32
    %151 = vector.broadcast %cst_58 : f32 to vector<16x128xf32>
    %152 = arith.addf %151, %150 : vector<16x128xf32>
    %cst_59 = arith.constant 1.000000e+00 : f32
    %153 = vector.broadcast %cst_59 : f32 to vector<16x128xf32>
    %154 = arith.divf %153, %152 : vector<16x128xf32>
    %cst_60 = arith.constant 1.06140542 : f32
    %155 = vector.broadcast %cst_60 : f32 to vector<16x128xf32>
    %156 = arith.mulf %155, %154 : vector<16x128xf32>
    %cst_61 = arith.constant -1.45315206 : f32
    %157 = vector.broadcast %cst_61 : f32 to vector<16x128xf32>
    %158 = arith.addf %156, %157 : vector<16x128xf32>
    %159 = arith.mulf %158, %154 : vector<16x128xf32>
    %cst_62 = arith.constant 1.42141378 : f32
    %160 = vector.broadcast %cst_62 : f32 to vector<16x128xf32>
    %161 = arith.addf %159, %160 : vector<16x128xf32>
    %162 = arith.mulf %161, %154 : vector<16x128xf32>
    %cst_63 = arith.constant -0.284496725 : f32
    %163 = vector.broadcast %cst_63 : f32 to vector<16x128xf32>
    %164 = arith.addf %162, %163 : vector<16x128xf32>
    %165 = arith.mulf %164, %154 : vector<16x128xf32>
    %cst_64 = arith.constant 0.254829586 : f32
    %166 = vector.broadcast %cst_64 : f32 to vector<16x128xf32>
    %167 = arith.addf %165, %166 : vector<16x128xf32>
    %168 = arith.mulf %167, %154 : vector<16x128xf32>
    %cst_65 = arith.constant 0.000000e+00 : f32
    %169 = vector.broadcast %cst_65 : f32 to vector<16x128xf32>
    %170 = arith.subf %169, %148 : vector<16x128xf32>
    %171 = arith.mulf %170, %148 : vector<16x128xf32>
    %172 = math.exp %171 : vector<16x128xf32>
    %173 = arith.mulf %168, %172 : vector<16x128xf32>
    %cst_66 = arith.constant 1.000000e+00 : f32
    %174 = vector.broadcast %cst_66 : f32 to vector<16x128xf32>
    %175 = arith.subf %174, %173 : vector<16x128xf32>
    %176 = arith.mulf %147, %175 : vector<16x128xf32>
    %cst_67 = arith.constant 1.000000e+00 : f32
    %177 = vector.broadcast %cst_67 : f32 to vector<16x128xf32>
    %178 = arith.addf %177, %176 : vector<16x128xf32>
    %179 = arith.mulf %140, %178 : vector<16x128xf32>
    %c1_68 = arith.constant 1 : index
    %c0_69 = arith.constant 0 : index
    %c0_70 = arith.constant 0 : index
    %180 = vector.load %arg3[%c1_68, %c0_69, %c0_70] : memref<4x32x128xf32, #tpu.memory_space<vmem>>, vector<1x32x128xf32>
    %181 = vector.shape_cast %180 : vector<1x32x128xf32> to vector<32x128xf32>
    %cst_71 = arith.constant dense<0.000000e+00> : vector<16x32xf32>
    %182 = tpu.matmul %179, %181, %cst_71 {dimension_numbers = #tpu.dot_dimension_numbers<[1], [1], [0], [0], [0, 0, 1, 0], [], []>} : vector<16x128xf32>, vector<32x128xf32>, vector<16x32xf32> -> vector<16x32xf32>
    %183 = arith.addf %114, %182 : vector<16x32xf32>
    %c14 = arith.constant 14 : index
    %c0_72 = arith.constant 0 : index
    %184 = vector.load %arg1[%c14, %c0_72] : memref<72x32xf32, #tpu.memory_space<vmem>>, vector<1x32xf32>
    %cst_73 = arith.constant dense<0.000000e+00> : vector<16xf32>
    %185 = vector.multi_reduction <add>, %183, %cst_73 [1] : vector<16x32xf32> to vector<16xf32>
    %186 = vector.shape_cast %185 : vector<16xf32> to vector<16x1xf32>
    %cst_74 = arith.constant 3.200000e+01 : f32
    %187 = vector.broadcast %cst_74 : f32 to vector<16x1xf32>
    %188 = arith.divf %186, %187 : vector<16x1xf32>
    %189 = vector.broadcast %188 : vector<16x1xf32> to vector<16x32xf32>
    %190 = arith.subf %183, %189 : vector<16x32xf32>
    %191 = arith.mulf %190, %190 : vector<16x32xf32>
    %cst_75 = arith.constant dense<0.000000e+00> : vector<16xf32>
    %192 = vector.multi_reduction <add>, %191, %cst_75 [1] : vector<16x32xf32> to vector<16xf32>
    %193 = vector.shape_cast %192 : vector<16xf32> to vector<16x1xf32>
    %cst_76 = arith.constant 3.200000e+01 : f32
    %194 = vector.broadcast %cst_76 : f32 to vector<16x1xf32>
    %195 = arith.divf %193, %194 : vector<16x1xf32>
    %196 = vector.broadcast %188 : vector<16x1xf32> to vector<16x32xf32>
    %197 = arith.subf %183, %196 : vector<16x32xf32>
    %cst_77 = arith.constant 9.99999974E-6 : f32
    %198 = vector.broadcast %cst_77 : f32 to vector<16x1xf32>
    %199 = arith.addf %195, %198 : vector<16x1xf32>
    %200 = math.rsqrt %199 : vector<16x1xf32>
    %201 = vector.broadcast %200 : vector<16x1xf32> to vector<16x32xf32>
    %202 = arith.mulf %197, %201 : vector<16x32xf32>
    %203 = vector.broadcast %184 : vector<1x32xf32> to vector<16x32xf32>
    %204 = arith.mulf %202, %203 : vector<16x32xf32>
    %c1_78 = arith.constant 1 : index
    %c0_79 = arith.constant 0 : index
    %c0_80 = arith.constant 0 : index
    %c0_81 = arith.constant 0 : index
    %205 = vector.load %arg2[%c1_78, %c0_79, %c0_80, %c0_81] : memref<2x16x32x8xf32, #tpu.memory_space<vmem>>, vector<1x16x32x8xf32>
    %206 = vector.shape_cast %205 : vector<1x16x32x8xf32> to vector<16x32x8xf32>
    %207 = vector.extract_strided_slice %206 {offsets = [0, 0, 0], sizes = [12, 32, 8], strides = [1, 1, 1]} : vector<16x32x8xf32> to vector<12x32x8xf32>
    %208 = vector.extract_strided_slice %206 {offsets = [12, 0, 0], sizes = [4, 32, 8], strides = [1, 1, 1]} : vector<16x32x8xf32> to vector<4x32x8xf32>
    %209 = vector.shape_cast %204 : vector<16x32xf32> to vector<1x16x32xf32>
    %210 = vector.shape_cast %209 : vector<1x16x32xf32> to vector<1x16x32xf32>
    %211 = vector.broadcast %210 : vector<1x16x32xf32> to vector<12x16x32xf32>
    %cst_82 = arith.constant dense<0.000000e+00> : vector<12x16x8xf32>
    %212 = tpu.matmul %211, %207, %cst_82 {dimension_numbers = #tpu.dot_dimension_numbers<[2], [1], [1], [2], [0, 0, 0, 1, 1, 2], [0], [0]>} : vector<12x16x32xf32>, vector<12x32x8xf32>, vector<12x16x8xf32> -> vector<12x16x8xf32>
    %213 = vector.extract_strided_slice %212 {offsets = [0, 0, 0], sizes = [4, 16, 8], strides = [1, 1, 1]} : vector<12x16x8xf32> to vector<4x16x8xf32>
    %214 = vector.extract_strided_slice %212 {offsets = [4, 0, 0], sizes = [4, 16, 8], strides = [1, 1, 1]} : vector<12x16x8xf32> to vector<4x16x8xf32>
    %215 = vector.extract_strided_slice %212 {offsets = [8, 0, 0], sizes = [4, 16, 8], strides = [1, 1, 1]} : vector<12x16x8xf32> to vector<4x16x8xf32>
    %cst_83 = arith.constant dense<0.000000e+00> : vector<4x16x16xf32>
    %216 = tpu.matmul %213, %214, %cst_83 {dimension_numbers = #tpu.dot_dimension_numbers<[2], [2], [1], [1], [0, 0, 0, 1, 1, 1], [0], [0]>} : vector<4x16x8xf32>, vector<4x16x8xf32>, vector<4x16x16xf32> -> vector<4x16x16xf32>
    %cst_84 = arith.constant 0.353553385 : f32
    %217 = vector.broadcast %cst_84 : f32 to vector<4x16x16xf32>
    %218 = arith.mulf %216, %217 : vector<4x16x16xf32>
    %219 = vector.shape_cast %3 : vector<16x16xf32> to vector<1x16x16xf32>
    %220 = vector.broadcast %219 : vector<1x16x16xf32> to vector<4x16x16xf32>
    %221 = arith.addf %218, %220 : vector<4x16x16xf32>
    %cst_85 = arith.constant dense<0xFF800000> : vector<4x16xf32>
    %222 = vector.multi_reduction <maximumf>, %221, %cst_85 [2] : vector<4x16x16xf32> to vector<4x16xf32>
    %223 = vector.shape_cast %222 : vector<4x16xf32> to vector<4x16x1xf32>
    %224 = vector.broadcast %223 : vector<4x16x1xf32> to vector<4x16x16xf32>
    %225 = arith.subf %221, %224 : vector<4x16x16xf32>
    %226 = math.exp %225 : vector<4x16x16xf32>
    %cst_86 = arith.constant dense<0.000000e+00> : vector<4x16xf32>
    %227 = vector.multi_reduction <add>, %226, %cst_86 [2] : vector<4x16x16xf32> to vector<4x16xf32>
    %228 = vector.shape_cast %227 : vector<4x16xf32> to vector<4x16x1xf32>
    %229 = tpu.reciprocal %228 {approx = true} : vector<4x16x1xf32> -> vector<4x16x1xf32>
    %230 = vector.broadcast %229 : vector<4x16x1xf32> to vector<4x16x16xf32>
    %231 = arith.mulf %226, %230 : vector<4x16x16xf32>
    %cst_87 = arith.constant dense<0.000000e+00> : vector<4x16x8xf32>
    %232 = tpu.matmul %231, %215, %cst_87 {dimension_numbers = #tpu.dot_dimension_numbers<[2], [1], [1], [2], [0, 0, 0, 1, 1, 2], [0], [0]>} : vector<4x16x16xf32>, vector<4x16x8xf32>, vector<4x16x8xf32> -> vector<4x16x8xf32>
    %cst_88 = arith.constant dense<0.000000e+00> : vector<4x16x32xf32>
    %233 = tpu.matmul %232, %208, %cst_88 {dimension_numbers = #tpu.dot_dimension_numbers<[2], [2], [1], [1], [0, 0, 0, 1, 1, 1], [0], [0]>} : vector<4x16x8xf32>, vector<4x32x8xf32>, vector<4x16x32xf32> -> vector<4x16x32xf32>
    %cst_89 = arith.constant dense<0.000000e+00> : vector<16x32xf32>
    %234 = vector.multi_reduction <add>, %233, %cst_89 [0] : vector<4x16x32xf32> to vector<16x32xf32>
    %235 = arith.addf %183, %234 : vector<16x32xf32>
    %c15 = arith.constant 15 : index
    %c0_90 = arith.constant 0 : index
    %236 = vector.load %arg1[%c15, %c0_90] : memref<72x32xf32, #tpu.memory_space<vmem>>, vector<1x32xf32>
    %cst_91 = arith.constant dense<0.000000e+00> : vector<16xf32>
    %237 = vector.multi_reduction <add>, %235, %cst_91 [1] : vector<16x32xf32> to vector<16xf32>
    %238 = vector.shape_cast %237 : vector<16xf32> to vector<16x1xf32>
    %cst_92 = arith.constant 3.200000e+01 : f32
    %239 = vector.broadcast %cst_92 : f32 to vector<16x1xf32>
    %240 = arith.divf %238, %239 : vector<16x1xf32>
    %241 = vector.broadcast %240 : vector<16x1xf32> to vector<16x32xf32>
    %242 = arith.subf %235, %241 : vector<16x32xf32>
    %243 = arith.mulf %242, %242 : vector<16x32xf32>
    %cst_93 = arith.constant dense<0.000000e+00> : vector<16xf32>
    %244 = vector.multi_reduction <add>, %243, %cst_93 [1] : vector<16x32xf32> to vector<16xf32>
    %245 = vector.shape_cast %244 : vector<16xf32> to vector<16x1xf32>
    %cst_94 = arith.constant 3.200000e+01 : f32
    %246 = vector.broadcast %cst_94 : f32 to vector<16x1xf32>
    %247 = arith.divf %245, %246 : vector<16x1xf32>
    %248 = vector.broadcast %240 : vector<16x1xf32> to vector<16x32xf32>
    %249 = arith.subf %235, %248 : vector<16x32xf32>
    %cst_95 = arith.constant 9.99999974E-6 : f32
    %250 = vector.broadcast %cst_95 : f32 to vector<16x1xf32>
    %251 = arith.addf %247, %250 : vector<16x1xf32>
    %252 = math.rsqrt %251 : vector<16x1xf32>
    %253 = vector.broadcast %252 : vector<16x1xf32> to vector<16x32xf32>
    %254 = arith.mulf %249, %253 : vector<16x32xf32>
    %255 = vector.broadcast %236 : vector<1x32xf32> to vector<16x32xf32>
    %256 = arith.mulf %254, %255 : vector<16x32xf32>
    %c2_96 = arith.constant 2 : index
    %c0_97 = arith.constant 0 : index
    %c0_98 = arith.constant 0 : index
    %257 = vector.load %arg3[%c2_96, %c0_97, %c0_98] : memref<4x32x128xf32, #tpu.memory_space<vmem>>, vector<1x32x128xf32>
    %258 = vector.shape_cast %257 : vector<1x32x128xf32> to vector<32x128xf32>
    %cst_99 = arith.constant dense<0.000000e+00> : vector<16x128xf32>
    %259 = tpu.matmul %256, %258, %cst_99 {dimension_numbers = #tpu.dot_dimension_numbers<[1], [0], [0], [1], [0, 0, 1, 1], [], []>} : vector<16x32xf32>, vector<32x128xf32>, vector<16x128xf32> -> vector<16x128xf32>
    %cst_100 = arith.constant 5.000000e-01 : f32
    %260 = vector.broadcast %cst_100 : f32 to vector<16x128xf32>
    %261 = arith.mulf %260, %259 : vector<16x128xf32>
    %cst_101 = arith.constant 0.707106769 : f32
    %262 = vector.broadcast %cst_101 : f32 to vector<16x128xf32>
    %263 = arith.mulf %259, %262 : vector<16x128xf32>
    %cst_102 = arith.constant 0.000000e+00 : f32
    %264 = vector.broadcast %cst_102 : f32 to vector<16x128xf32>
    %265 = arith.cmpf oge, %263, %264 : vector<16x128xf32>
    %cst_103 = arith.constant 1.000000e+00 : f32
    %cst_104 = arith.constant -1.000000e+00 : f32
    %266 = vector.broadcast %cst_103 : f32 to vector<16x128xf32>
    %267 = vector.broadcast %cst_104 : f32 to vector<16x128xf32>
    %268 = arith.select %265, %266, %267 : vector<16x128xi1>, vector<16x128xf32>
    %269 = math.absf %263 : vector<16x128xf32>
    %cst_105 = arith.constant 0.327591091 : f32
    %270 = vector.broadcast %cst_105 : f32 to vector<16x128xf32>
    %271 = arith.mulf %270, %269 : vector<16x128xf32>
    %cst_106 = arith.constant 1.000000e+00 : f32
    %272 = vector.broadcast %cst_106 : f32 to vector<16x128xf32>
    %273 = arith.addf %272, %271 : vector<16x128xf32>
    %cst_107 = arith.constant 1.000000e+00 : f32
    %274 = vector.broadcast %cst_107 : f32 to vector<16x128xf32>
    %275 = arith.divf %274, %273 : vector<16x128xf32>
    %cst_108 = arith.constant 1.06140542 : f32
    %276 = vector.broadcast %cst_108 : f32 to vector<16x128xf32>
    %277 = arith.mulf %276, %275 : vector<16x128xf32>
    %cst_109 = arith.constant -1.45315206 : f32
    %278 = vector.broadcast %cst_109 : f32 to vector<16x128xf32>
    %279 = arith.addf %277, %278 : vector<16x128xf32>
    %280 = arith.mulf %279, %275 : vector<16x128xf32>
    %cst_110 = arith.constant 1.42141378 : f32
    %281 = vector.broadcast %cst_110 : f32 to vector<16x128xf32>
    %282 = arith.addf %280, %281 : vector<16x128xf32>
    %283 = arith.mulf %282, %275 : vector<16x128xf32>
    %cst_111 = arith.constant -0.284496725 : f32
    %284 = vector.broadcast %cst_111 : f32 to vector<16x128xf32>
    %285 = arith.addf %283, %284 : vector<16x128xf32>
    %286 = arith.mulf %285, %275 : vector<16x128xf32>
    %cst_112 = arith.constant 0.254829586 : f32
    %287 = vector.broadcast %cst_112 : f32 to vector<16x128xf32>
    %288 = arith.addf %286, %287 : vector<16x128xf32>
    %289 = arith.mulf %288, %275 : vector<16x128xf32>
    %cst_113 = arith.constant 0.000000e+00 : f32
    %290 = vector.broadcast %cst_113 : f32 to vector<16x128xf32>
    %291 = arith.subf %290, %269 : vector<16x128xf32>
    %292 = arith.mulf %291, %269 : vector<16x128xf32>
    %293 = math.exp %292 : vector<16x128xf32>
    %294 = arith.mulf %289, %293 : vector<16x128xf32>
    %cst_114 = arith.constant 1.000000e+00 : f32
    %295 = vector.broadcast %cst_114 : f32 to vector<16x128xf32>
    %296 = arith.subf %295, %294 : vector<16x128xf32>
    %297 = arith.mulf %268, %296 : vector<16x128xf32>
    %cst_115 = arith.constant 1.000000e+00 : f32
    %298 = vector.broadcast %cst_115 : f32 to vector<16x128xf32>
    %299 = arith.addf %298, %297 : vector<16x128xf32>
    %300 = arith.mulf %261, %299 : vector<16x128xf32>
    %c3_116 = arith.constant 3 : index
    %c0_117 = arith.constant 0 : index
    %c0_118 = arith.constant 0 : index
    %301 = vector.load %arg3[%c3_116, %c0_117, %c0_118] : memref<4x32x128xf32, #tpu.memory_space<vmem>>, vector<1x32x128xf32>
    %302 = vector.shape_cast %301 : vector<1x32x128xf32> to vector<32x128xf32>
    %cst_119 = arith.constant dense<0.000000e+00> : vector<16x32xf32>
    %303 = tpu.matmul %300, %302, %cst_119 {dimension_numbers = #tpu.dot_dimension_numbers<[1], [1], [0], [0], [0, 0, 1, 0], [], []>} : vector<16x128xf32>, vector<32x128xf32>, vector<16x32xf32> -> vector<16x32xf32>
    %304 = arith.addf %235, %303 : vector<16x32xf32>
    %c9 = arith.constant 9 : index
    %c0_120 = arith.constant 0 : index
    %305 = vector.load %arg1[%c9, %c0_120] : memref<72x32xf32, #tpu.memory_space<vmem>>, vector<1x32xf32>
    %c10 = arith.constant 10 : index
    %c0_121 = arith.constant 0 : index
    %306 = vector.load %arg1[%c10, %c0_121] : memref<72x32xf32, #tpu.memory_space<vmem>>, vector<1x32xf32>
    %cst_122 = arith.constant dense<0.000000e+00> : vector<16xf32>
    %307 = vector.multi_reduction <add>, %304, %cst_122 [1] : vector<16x32xf32> to vector<16xf32>
    %308 = vector.shape_cast %307 : vector<16xf32> to vector<16x1xf32>
    %cst_123 = arith.constant 3.200000e+01 : f32
    %309 = vector.broadcast %cst_123 : f32 to vector<16x1xf32>
    %310 = arith.divf %308, %309 : vector<16x1xf32>
    %311 = vector.broadcast %310 : vector<16x1xf32> to vector<16x32xf32>
    %312 = arith.subf %304, %311 : vector<16x32xf32>
    %313 = arith.mulf %312, %312 : vector<16x32xf32>
    %cst_124 = arith.constant dense<0.000000e+00> : vector<16xf32>
    %314 = vector.multi_reduction <add>, %313, %cst_124 [1] : vector<16x32xf32> to vector<16xf32>
    %315 = vector.shape_cast %314 : vector<16xf32> to vector<16x1xf32>
    %cst_125 = arith.constant 3.200000e+01 : f32
    %316 = vector.broadcast %cst_125 : f32 to vector<16x1xf32>
    %317 = arith.divf %315, %316 : vector<16x1xf32>
    %318 = vector.broadcast %310 : vector<16x1xf32> to vector<16x32xf32>
    %319 = arith.subf %304, %318 : vector<16x32xf32>
    %cst_126 = arith.constant 9.99999974E-6 : f32
    %320 = vector.broadcast %cst_126 : f32 to vector<16x1xf32>
    %321 = arith.addf %317, %320 : vector<16x1xf32>
    %322 = math.rsqrt %321 : vector<16x1xf32>
    %323 = vector.broadcast %322 : vector<16x1xf32> to vector<16x32xf32>
    %324 = arith.mulf %319, %323 : vector<16x32xf32>
    %325 = vector.broadcast %305 : vector<1x32xf32> to vector<16x32xf32>
    %326 = arith.mulf %324, %325 : vector<16x32xf32>
    %327 = vector.broadcast %306 : vector<1x32xf32> to vector<16x32xf32>
    %328 = arith.addf %326, %327 : vector<16x32xf32>
    %c40 = arith.constant 40 : index
    %c0_127 = arith.constant 0 : index
    %329 = vector.load %arg1[%c40, %c0_127] : memref<72x32xf32, #tpu.memory_space<vmem>>, vector<32x8xf32>
    %cst_128 = arith.constant dense<0.000000e+00> : vector<16x8xf32>
    %330 = tpu.matmul %328, %329, %cst_128 {dimension_numbers = #tpu.dot_dimension_numbers<[1], [0], [0], [1], [0, 0, 1, 1], [], []>} : vector<16x32xf32>, vector<32x8xf32>, vector<16x8xf32> -> vector<16x8xf32>
    %c11 = arith.constant 11 : index
    %c0_129 = arith.constant 0 : index
    %331 = vector.load %arg1[%c11, %c0_129] : memref<72x32xf32, #tpu.memory_space<vmem>>, vector<1x8xf32>
    %332 = vector.broadcast %331 : vector<1x8xf32> to vector<16x8xf32>
    %333 = arith.addf %330, %332 : vector<16x8xf32>
    %cst_130 = arith.constant 0.000000e+00 : f32
    %334 = vector.broadcast %cst_130 : f32 to vector<16x8xf32>
    %335 = arith.select %6, %333, %334 : vector<16x8xi1>, vector<16x8xf32>
    %336 = tpu.iota {dimensions = array<i32: 0>} : vector<8x128xi32>
    %337 = tpu.iota {dimensions = array<i32: 1>} : vector<8x128xi32>
    %338 = arith.cmpi eq, %336, %337 : vector<8x128xi32>
    %339 = arith.extui %338 : vector<8x128xi1> to vector<8x128xi32>
    %340 = arith.sitofp %339 : vector<8x128xi32> to vector<8x128xf32>
    %cst_131 = arith.constant dense<0.000000e+00> : vector<16x128xf32>
    %341 = tpu.matmul %335, %340, %cst_131 {dimension_numbers = #tpu.dot_dimension_numbers<[1], [0], [0], [1], [0, 0, 1, 1], [], []>} : vector<16x8xf32>, vector<8x128xf32>, vector<16x128xf32> -> vector<16x128xf32>
    %c0_132 = arith.constant 0 : index
    %c0_133 = arith.constant 0 : index
    %342 = vector.load %arg4[%c0_132, %c0_133] : memref<16x128xf32, #tpu.memory_space<vmem>>, vector<16x128xf32>
    tpu.vector_store %arg4[%c0_132, %c0_133], %341 {strides = array<i32>} : memref<16x128xf32, #tpu.memory_space<vmem>>, vector<16x128xf32>,
    return
  }
}

</mosaic_0001>

<llo_original>
// kernel: ne.8
$region0: #{ne.8}
  %s0 = inlined_call_operand.vmem [shape: s32[2,8], index: 0, kind: input, shape index: {}]
  %s1 = inlined_call_operand.vmem [shape: s32[16], index: 1, kind: output, shape index: {}]
  $region1: #{ne.8} parent=0
    #allocation0 [shape = 'u8[4096]{0}', space=vmem, size = 0x1000, scoped, tag = 'scoped mem for output reshape']
    #allocation1 [shape = 'u8[4096]{0}', space=vmem, size = 0x1000, scoped, tag = 'scoped mem for input reshape']
    %s3 = ssub.s32 4, 1
    %v4 = vld [vmem:[%s0] sm:%s3]
    %5 = vst [vmem:[#allocation1] sm:%s3] %v4
    %v6 = vld [vmem:[#allocation1] sm:$0x1]
    %vm7 = vcmask 64512
    %8 = vst.msk [vmem:[#allocation0] sm:$0x1] %vm7, %v6
    %s9 = scalar_lea.vmem [#allocation1], 1
    %v10 = vld [vmem:[%s9] sm:$0x1]
    %11 = vrot.lane.b32.xlu0 %v10, 8
    %v12 = vpop.permute.xlu0 %11
    %vm13 = vcmask 130112
    %14 = vst.msk [vmem:[#allocation0] sm:$0x1] %vm13, %v12
    %s16 = ssub.s32 2, 1
    %v17 = vld [vmem:[#allocation0] sm:%s16]
    %s19 = ssub.s32 2, 1
    %20 = vst [vmem:[%s1] sm:%s19] %v17

// kernel: icpretrain_forward.1
$region0: #{icpretrain_forward.1}
  #allocation0 [shape = 'u32[]', space=smem, size = 0x4, offset = 0x4, fixed_abs, tag = 'smem constant byte address 0x4 - core index']
  #allocation1 [shape = 'u32[72,128]{1,0:T(1,128)}', space=vmem, size = 0x9000, scoped, tag = 'internal scratch']
  %s0 = inlined_call_operand.vmem [shape: f32[16,128], index: 0, kind: input, shape index: {}]
  %s1 = inlined_call_operand.vmem [shape: f32[72,32], index: 1, kind: input, shape index: {}]
  %s2 = inlined_call_operand.vmem [shape: f32[2,16,32,8], index: 2, kind: input, shape index: {}]
  %s3 = inlined_call_operand.vmem [shape: f32[4,32,128], index: 3, kind: input, shape index: {}]
  %s4 = inlined_call_operand.vmem [shape: f32[16,128], index: 4, kind: output, shape index: {}]
  %s5 = sld [smem:[#allocation0]]
  $region26: #{icpretrain_forward.1} parent=0
    _
  %s7 = ssub.s32 1, %s5
  %s8 = scalar_select 0, %s7, %s5
  // Predicated region
  $region2: #{icpretrain_forward.1} parent=0 // pred_check
    _
  $region3: #{icpretrain_forward.1} parent=0 // pred_check_branch
    %10 = sbr.rel (0) target = $region5
  $region4: #{icpretrain_forward.1} parent=0 // pred_region
    _
  $region5: #{icpretrain_forward.1} parent=0 // pred_fallthru
    _
  // Predicated region
  $region6: #{icpretrain_forward.1} parent=0 // pred_check
    _
  $region7: #{icpretrain_forward.1} parent=0 // pred_check_branch
    %12 = sbr.rel (0) target = $region9
  $region8: #{icpretrain_forward.1} parent=0 // pred_region
    _
  $region9: #{icpretrain_forward.1} parent=0 // pred_fallthru
    _
  // Predicated region
  $region10: #{icpretrain_forward.1} parent=0 // pred_check
    _
  $region11: #{icpretrain_forward.1} parent=0 // pred_check_branch
    %14 = sbr.rel (0) target = $region13
  $region12: #{icpretrain_forward.1} parent=0 // pred_region
    _
  $region13: #{icpretrain_forward.1} parent=0 // pred_fallthru
    _
  // Predicated region
  $region14: #{icpretrain_forward.1} parent=0 // pred_check
    _
  $region15: #{icpretrain_forward.1} parent=0 // pred_check_branch
    %16 = sbr.rel (0) target = $region17
  $region16: #{icpretrain_forward.1} parent=0 // pred_region
    _
  $region17: #{icpretrain_forward.1} parent=0 // pred_fallthru
    _
  %v17 = vld [vmem:[%s0] sm:$0xff]
  %v18 = vld [vmem:[%s0 + $0x8] sm:$0xff]
  %v19 = vand.u32 2147483647, %v17
  %v20 = vand.u32 2147483647, %v18
  %vm21 = vcmp.eq.f32.partialorder %v19, inf
  %vm22 = vcmp.eq.f32.partialorder %v20, inf
  %v23 = vld [vmem:[%s1 + $0x4] sm:$0x1]
  %v24 = vld [vmem:[%s1 + $0x5] sm:$0x1]
  %v25 = vperm.slane %v24, 0
  %27 = vrot.lane.b32.xlu0 %v25, 16
  %v28 = vpop.permute.xlu0 %27
  %v30 = vadd.f32 %v17, %v28
  %v31 = vadd.f32 %v18, %v28
  %v32 = vperm.slane %v23, 0
  %34 = vrot.lane.b32.xlu0 %v32, 16
  %v35 = vpop.permute.xlu0 %34
  %v37 = vsel %vm21, %v35, %v30
  %v38 = vsel %vm22, %v35, %v31
  %vm39 = vcmp.ne.f32.partialorder %v17, %v17
  %vm40 = vcmp.ne.f32.partialorder %v18, %v18
  %v41 = vld [vmem:[%s1] sm:$0x1]
  %v42 = vld [vmem:[%s1 + $0x2] sm:$0x1]
  %v43 = vperm.slane %v42, 0
  %v44 = vadd.f32 %v17, %v43
  %v45 = vadd.f32 %v18, %v43
  %v46 = vperm.slane %v41, 0
  %v47 = vsel %vm39, %v46, %v44
  %v48 = vsel %vm40, %v46, %v45
  %vm49 = vcmp.ne.f32.partialorder %v37, %v37
  %vm50 = vcmp.ne.f32.partialorder %v38, %v38
  %v51 = vld [vmem:[%s1 + $0x1] sm:$0x1]
  %v52 = vld [vmem:[%s1 + $0x3] sm:$0x1]
  %v53 = vperm.slane %v52, 0
  %55 = vrot.lane.b32.xlu0 %v53, 16
  %v56 = vpop.permute.xlu0 %55
  %v58 = vadd.f32 %v37, %v56
  %v59 = vadd.f32 %v38, %v56
  %v60 = vperm.slane %v51, 0
  %62 = vrot.lane.b32.xlu0 %v60, 16
  %v63 = vpop.permute.xlu0 %62
  %v65 = vsel %vm49, %v63, %v58
  %v66 = vsel %vm50, %v63, %v59
  %v67 = vld [vmem:[%s1 + $0x10] sm:$0xff]
  %v68 = vld [vmem:[%s1 + $0x18] sm:$0xff]
  %v69 = vld [vmem:[%s1 + $0x20] sm:$0xff]
  %72 = vrot.lane.b32.xlu0 %v65, 112
  %v73 = vpop.permute.xlu0 %72
  %74 = vrot.lane.b32.xlu0 %v66, 112
  %v75 = vpop.permute.xlu0 %74
  %vm76 = vcmask 64512
  %v77 = vsel %vm76, %v73, 0
  %v79 = vsel %vm76, %v75, 0
  %81 = vmatpush.msra.mxu0 0.0
  %82 = vmatpush.msra.mxu0 0.0
  %83 = vmatpush.msra.mxu0 0.0
  %84 = vmatpush.msra.mxu0 0.0
  %85 = vmatpush.msra.mxu0 0.0
  %86 = vmatpush.msra.mxu0 0.0
  %87 = vmatpush.msra.mxu0 0.0
  %88 = vmatpush.msra.mxu0 0.0
  %89 = vmatpush.msra.mxu0 0.0
  %90 = vmatpush.msra.mxu0 0.0
  %91 = vmatpush.msra.mxu0 0.0
  %92 = vmatpush.msra.mxu0 0.0
  %93 = vmatpush.msra.mxu0 0.0
  %94 = vmatpush.msra.mxu0 0.0
  %95 = vmatpush.msra.mxu0 0.0
  %96 = vmatpush.msra.mxu0 %v69
  %97 = vmatmul.f32.gmra.mxu0 %v77
  %v98 = vpop.f32.mrf.mxu0
  %v99 = vadd.f32 0.0, %v98
  %100 = vmatmul.f32.gmra.mxu0 %v79
  %v101 = vpop.f32.mrf.mxu0
  %v102 = vadd.f32 0.0, %v101
  %103 = vdwg.mxu0
  %vm104 = vcmask 130048
  %v106 = vsel %vm104, %v47, 0
  %v109 = vsel %vm104, %v48, 0
  %111 = vmatpush.msra.mxu0 0.0
  %112 = vmatpush.msra.mxu0 0.0
  %113 = vmatpush.msra.mxu0 0.0
  %114 = vmatpush.msra.mxu0 0.0
  %115 = vmatpush.msra.mxu0 0.0
  %116 = vmatpush.msra.mxu0 0.0
  %117 = vmatpush.msra.mxu0 0.0
  %118 = vmatpush.msra.mxu0 0.0
  %119 = vmatpush.msra.mxu0 0.0
  %120 = vmatpush.msra.mxu0 0.0
  %121 = vmatpush.msra.mxu0 0.0
  %122 = vmatpush.msra.mxu0 0.0
  %123 = vmatpush.msra.mxu0 0.0
  %124 = vmatpush.msra.mxu0 0.0
  %125 = vmatpush.msra.mxu0 %v68
  %126 = vmatpush.msra.mxu0 %v67
  %127 = vmatmul.f32.gmra.mxu0 %v106
  %v128 = vpop.f32.mrf.mxu0
  %v129 = vadd.f32 %v99, %v128
  %130 = vmatmul.f32.gmra.mxu0 %v109
  %v131 = vpop.f32.mrf.mxu0
  %v132 = vadd.f32 %v102, %v131
  %133 = vdwg.mxu0
  %v134 = vld [vmem:[%s1 + $0x6] sm:$0x1]
  %v135 = vperm.slane %v134, 0
  %v136 = vadd.f32 %v129, %v135
  %v137 = vadd.f32 %v132, %v135
  %140 = vrot.lane.b32.xlu0 %v17, 104
  %v141 = vpop.permute.xlu0 %140
  %142 = vrot.lane.b32.xlu0 %v18, 104
  %v143 = vpop.permute.xlu0 %142
  %v146 = vadd.f32 %v136, %v141
  %v147 = vadd.f32 %v137, %v143
  %v148 = vld [vmem:[%s1 + $0x7] sm:$0x1]
  %v149 = vld [vmem:[%s1 + $0x8] sm:$0x1]
  %vm150 = vcmask 261120
  %v151 = vsel %vm150, %v146, 0.0
  %152 = vadd.xlane.f32.xlu0 %v151
  %v153 = vpop.xlane.xlu0 %152
  %v154 = vsel %vm150, %v147, 0.0
  %155 = vadd.xlane.f32.xlu0 %v154
  %v156 = vpop.xlane.xlu0 %155
  %v157 = vrcp.pop 32.0
  %v158 = vmul.f32 32.0, %v157
  %v159 = vsub.f32 1.0, %v158
  %v160 = vmul.f32 %v157, %v159
  %v161 = vadd.f32 %v157, %v160
  %vm162 = vweird.f32 %v157
  %v163 = vsel %vm162, %v157, %v161
  %v164 = vmul.f32 %v153, %v163
  %v165 = vmul.f32 %v156, %v163
  %v166 = vsub.f32 %v146, %v164
  %v167 = vsub.f32 %v147, %v165
  %v168 = vmul.f32 %v166, %v166
  %v169 = vmul.f32 %v167, %v167
  %v170 = vsel %vm150, %v168, 0.0
  %171 = vadd.xlane.f32.xlu0 %v170
  %v172 = vpop.xlane.xlu0 %171
  %v173 = vsel %vm150, %v169, 0.0
  %174 = vadd.xlane.f32.xlu0 %v173
  %v175 = vpop.xlane.xlu0 %174
  %v176 = vmul.f32 %v172, %v163
  %v177 = vmul.f32 %v175, %v163
  %v178 = vadd.f32 %v176, 1e-05
  %v179 = vadd.f32 %v177, 1e-05
  %v180 = vrsqrt.pop %v178
  %v181 = vmul.f32 %v180, %v178
  %v182 = vmul.f32 %v181, %v180
  %v183 = vmul.f32 0.5, %v182
  %v184 = vsub.f32 1.5, %v183
  %v185 = vmul.f32 %v180, %v184
  %vm186 = vweird.f32 %v178
  %vm187 = vweird.f32 %v180
  %vm188 = vmor %vm186, %vm187
  %v189 = vsel %vm188, %v180, %v185
  %v190 = vrsqrt.pop %v179
  %v191 = vmul.f32 %v190, %v179
  %v192 = vmul.f32 %v191, %v190
  %v193 = vmul.f32 0.5, %v192
  %v194 = vsub.f32 1.5, %v193
  %v195 = vmul.f32 %v190, %v194
  %vm196 = vweird.f32 %v179
  %vm197 = vweird.f32 %v190
  %vm198 = vmor %vm196, %vm197
  %v199 = vsel %vm198, %v190, %v195
  %v200 = vmul.f32 %v166, %v189
  %v201 = vmul.f32 %v167, %v199
  %v202 = vperm.slane %v148, 0
  %v203 = vmul.f32 %v200, %v202
  %v204 = vmul.f32 %v201, %v202
  %v205 = vperm.slane %v149, 0
  %v206 = vadd.f32 %v203, %v205
  %v207 = vadd.f32 %v204, %v205
  %v208 = vld [vmem:[%s1 + $0xc] sm:$0x1]
  %v209 = vsel %vm150, %v206, 0.0
  %210 = vadd.xlane.f32.xlu0 %v209
  %v211 = vpop.xlane.xlu0 %210
  %v212 = vsel %vm150, %v207, 0.0
  %213 = vadd.xlane.f32.xlu0 %v212
  %v214 = vpop.xlane.xlu0 %213
  %v215 = vmul.f32 %v211, %v163
  %v216 = vmul.f32 %v214, %v163
  %v217 = vsub.f32 %v206, %v215
  %v218 = vsub.f32 %v207, %v216
  %v219 = vmul.f32 %v217, %v217
  %v220 = vmul.f32 %v218, %v218
  %v221 = vsel %vm150, %v219, 0.0
  %222 = vadd.xlane.f32.xlu0 %v221
  %v223 = vpop.xlane.xlu0 %222
  %v224 = vsel %vm150, %v220, 0.0
  %225 = vadd.xlane.f32.xlu0 %v224
  %v226 = vpop.xlane.xlu0 %225
  %v227 = vmul.f32 %v223, %v163
  %v228 = vmul.f32 %v226, %v163
  %v229 = vadd.f32 %v227, 1e-05
  %v230 = vadd.f32 %v228, 1e-05
  %v231 = vrsqrt.pop %v229
  %v232 = vmul.f32 %v231, %v229
  %v233 = vmul.f32 %v232, %v231
  %v234 = vmul.f32 0.5, %v233
  %v235 = vsub.f32 1.5, %v234
  %v236 = vmul.f32 %v231, %v235
  %vm237 = vweird.f32 %v229
  %vm238 = vweird.f32 %v231
  %vm239 = vmor %vm237, %vm238
  %v240 = vsel %vm239, %v231, %v236
  %v241 = vrsqrt.pop %v230
  %v242 = vmul.f32 %v241, %v230
  %v243 = vmul.f32 %v242, %v241
  %v244 = vmul.f32 0.5, %v243
  %v245 = vsub.f32 1.5, %v244
  %v246 = vmul.f32 %v241, %v245
  %vm247 = vweird.f32 %v230
  %vm248 = vweird.f32 %v241
  %vm249 = vmor %vm247, %vm248
  %v250 = vsel %vm249, %v241, %v246
  %v251 = vmul.f32 %v217, %v240
  %v252 = vmul.f32 %v218, %v250
  %v253 = vperm.slane %v208, 0
  %v254 = vmul.f32 %v251, %v253
  %v255 = vmul.f32 %v252, %v253
  %v256 = vld [vmem:[%s2] sm:$0xff]
  %v257 = vld [vmem:[%s2 + $0x8] sm:$0xff]
  %v258 = vld [vmem:[%s2 + $0x10] sm:$0xff]
  %v259 = vld [vmem:[%s2 + $0x18] sm:$0xff]
  %v260 = vld [vmem:[%s2 + $0x20] sm:$0xff]
  %v261 = vld [vmem:[%s2 + $0x28] sm:$0xff]
  %v262 = vld [vmem:[%s2 + $0x30] sm:$0xff]
  %v263 = vld [vmem:[%s2 + $0x38] sm:$0xff]
  %v264 = vld [vmem:[%s2 + $0x40] sm:$0xff]
  %v265 = vld [vmem:[%s2 + $0x48] sm:$0xff]
  %v266 = vld [vmem:[%s2 + $0x50] sm:$0xff]
  %v267 = vld [vmem:[%s2 + $0x58] sm:$0xff]
  %v268 = vld [vmem:[%s2 + $0x60] sm:$0xff]
  %v269 = vld [vmem:[%s2 + $0x68] sm:$0xff]
  %v270 = vld [vmem:[%s2 + $0x70] sm:$0xff]
  %v271 = vld [vmem:[%s2 + $0x78] sm:$0xff]
  %v272 = vld [vmem:[%s2 + $0x80] sm:$0xff]
  %v273 = vld [vmem:[%s2 + $0x88] sm:$0xff]
  %v274 = vld [vmem:[%s2 + $0x90] sm:$0xff]
  %v275 = vld [vmem:[%s2 + $0x98] sm:$0xff]
  %v276 = vld [vmem:[%s2 + $0xa0] sm:$0xff]
  %v277 = vld [vmem:[%s2 + $0xa8] sm:$0xff]
  %v278 = vld [vmem:[%s2 + $0xb0] sm:$0xff]
  %v279 = vld [vmem:[%s2 + $0xb8] sm:$0xff]
  %v280 = vld [vmem:[%s2 + $0xc0] sm:$0xff]
  %v281 = vld [vmem:[%s2 + $0xc8] sm:$0xff]
  %v282 = vld [vmem:[%s2 + $0xd0] sm:$0xff]
  %v283 = vld [vmem:[%s2 + $0xd8] sm:$0xff]
  %v284 = vld [vmem:[%s2 + $0xe0] sm:$0xff]
  %v285 = vld [vmem:[%s2 + $0xe8] sm:$0xff]
  %v286 = vld [vmem:[%s2 + $0xf0] sm:$0xff]
  %v287 = vld [vmem:[%s2 + $0xf8] sm:$0xff]
  %v288 = vld [vmem:[%s2 + $0x100] sm:$0xff]
  %v289 = vld [vmem:[%s2 + $0x108] sm:$0xff]
  %v290 = vld [vmem:[%s2 + $0x110] sm:$0xff]
  %v291 = vld [vmem:[%s2 + $0x118] sm:$0xff]
  %v292 = vld [vmem:[%s2 + $0x120] sm:$0xff]
  %v293 = vld [vmem:[%s2 + $0x128] sm:$0xff]
  %v294 = vld [vmem:[%s2 + $0x130] sm:$0xff]
  %v295 = vld [vmem:[%s2 + $0x138] sm:$0xff]
  %v296 = vld [vmem:[%s2 + $0x140] sm:$0xff]
  %v297 = vld [vmem:[%s2 + $0x148] sm:$0xff]
  %v298 = vld [vmem:[%s2 + $0x150] sm:$0xff]
  %v299 = vld [vmem:[%s2 + $0x158] sm:$0xff]
  %v300 = vld [vmem:[%s2 + $0x160] sm:$0xff]
  %v301 = vld [vmem:[%s2 + $0x168] sm:$0xff]
  %v302 = vld [vmem:[%s2 + $0x170] sm:$0xff]
  %v303 = vld [vmem:[%s2 + $0x178] sm:$0xff]
  %v304 = vld [vmem:[%s2 + $0x180] sm:$0xff]
  %v305 = vld [vmem:[%s2 + $0x188] sm:$0xff]
  %v306 = vld [vmem:[%s2 + $0x190] sm:$0xff]
  %v307 = vld [vmem:[%s2 + $0x198] sm:$0xff]
  %v308 = vld [vmem:[%s2 + $0x1a0] sm:$0xff]
  %v309 = vld [vmem:[%s2 + $0x1a8] sm:$0xff]
  %v310 = vld [vmem:[%s2 + $0x1b0] sm:$0xff]
  %v311 = vld [vmem:[%s2 + $0x1b8] sm:$0xff]
  %v312 = vld [vmem:[%s2 + $0x1c0] sm:$0xff]
  %v313 = vld [vmem:[%s2 + $0x1c8] sm:$0xff]
  %v314 = vld [vmem:[%s2 + $0x1d0] sm:$0xff]
  %v315 = vld [vmem:[%s2 + $0x1d8] sm:$0xff]
  %v316 = vld [vmem:[%s2 + $0x1e0] sm:$0xff]
  %v317 = vld [vmem:[%s2 + $0x1e8] sm:$0xff]
  %v318 = vld [vmem:[%s2 + $0x1f0] sm:$0xff]
  %v319 = vld [vmem:[%s2 + $0x1f8] sm:$0xff]
  %v321 = vsel %vm150, %v254, 0
  %v324 = vsel %vm150, %v255, 0
  %326 = vmatpush.msra.mxu0 0.0
  %327 = vmatpush.msra.mxu0 0.0
  %328 = vmatpush.msra.mxu0 0.0
  %329 = vmatpush.msra.mxu0 0.0
  %330 = vmatpush.msra.mxu0 0.0
  %331 = vmatpush.msra.mxu0 0.0
  %332 = vmatpush.msra.mxu0 0.0
  %333 = vmatpush.msra.mxu0 0.0
  %334 = vmatpush.msra.mxu0 0.0
  %335 = vmatpush.msra.mxu0 0.0
  %336 = vmatpush.msra.mxu0 0.0
  %337 = vmatpush.msra.mxu0 0.0
  %338 = vmatpush.msra.mxu0 %v259
  %339 = vmatpush.msra.mxu0 %v258
  %340 = vmatpush.msra.mxu0 %v257
  %341 = vmatpush.msra.mxu0 %v256
  %342 = vmatmul.f32.gmra.mxu0 %v321
  %v343 = vpop.f32.mrf.mxu0
  %v344 = vadd.f32 0.0, %v343
  %345 = vmatmul.f32.gmra.mxu0 %v324
  %v346 = vpop.f32.mrf.mxu0
  %v347 = vadd.f32 0.0, %v346
  %348 = vdwg.mxu0
  %349 = vmatpush.msra.mxu0 0.0
  %350 = vmatpush.msra.mxu0 0.0
  %351 = vmatpush.msra.mxu0 0.0
  %352 = vmatpush.msra.mxu0 0.0
  %353 = vmatpush.msra.mxu0 0.0
  %354 = vmatpush.msra.mxu0 0.0
  %355 = vmatpush.msra.mxu0 0.0
  %356 = vmatpush.msra.mxu0 0.0
  %357 = vmatpush.msra.mxu0 0.0
  %358 = vmatpush.msra.mxu0 0.0
  %359 = vmatpush.msra.mxu0 0.0
  %360 = vmatpush.msra.mxu0 0.0
  %361 = vmatpush.msra.mxu0 %v263
  %362 = vmatpush.msra.mxu0 %v262
  %363 = vmatpush.msra.mxu0 %v261
  %364 = vmatpush.msra.mxu0 %v260
  %365 = vmatmul.f32.gmra.mxu0 %v321
  %v366 = vpop.f32.mrf.mxu0
  %v367 = vadd.f32 0.0, %v366
  %368 = vmatmul.f32.gmra.mxu0 %v324
  %v369 = vpop.f32.mrf.mxu0
  %v370 = vadd.f32 0.0, %v369
  %371 = vdwg.mxu0
  %372 = vmatpush.msra.mxu0 0.0
  %373 = vmatpush.msra.mxu0 0.0
  %374 = vmatpush.msra.mxu0 0.0
  %375 = vmatpush.msra.mxu0 0.0
  %376 = vmatpush.msra.mxu0 0.0
  %377 = vmatpush.msra.mxu0 0.0
  %378 = vmatpush.msra.mxu0 0.0
  %379 = vmatpush.msra.mxu0 0.0
  %380 = vmatpush.msra.mxu0 0.0
  %381 = vmatpush.msra.mxu0 0.0
  %382 = vmatpush.msra.mxu0 0.0
  %383 = vmatpush.msra.mxu0 0.0
  %384 = vmatpush.msra.mxu0 %v267
  %385 = vmatpush.msra.mxu0 %v266
  %386 = vmatpush.msra.mxu0 %v265
  %387 = vmatpush.msra.mxu0 %v264
  %388 = vmatmul.f32.gmra.mxu0 %v321
  %v389 = vpop.f32.mrf.mxu0
  %v390 = vadd.f32 0.0, %v389
  %391 = vmatmul.f32.gmra.mxu0 %v324
  %v392 = vpop.f32.mrf.mxu0
  %v393 = vadd.f32 0.0, %v392
  %394 = vdwg.mxu0
  %395 = vmatpush.msra.mxu0 0.0
  %396 = vmatpush.msra.mxu0 0.0
  %397 = vmatpush.msra.mxu0 0.0
  %398 = vmatpush.msra.mxu0 0.0
  %399 = vmatpush.msra.mxu0 0.0
  %400 = vmatpush.msra.mxu0 0.0
  %401 = vmatpush.msra.mxu0 0.0
  %402 = vmatpush.msra.mxu0 0.0
  %403 = vmatpush.msra.mxu0 0.0
  %404 = vmatpush.msra.mxu0 0.0
  %405 = vmatpush.msra.mxu0 0.0
  %406 = vmatpush.msra.mxu0 0.0
  %407 = vmatpush.msra.mxu0 %v271
  %408 = vmatpush.msra.mxu0 %v270
  %409 = vmatpush.msra.mxu0 %v269
  %410 = vmatpush.msra.mxu0 %v268
  %411 = vmatmul.f32.gmra.mxu0 %v321
  %v412 = vpop.f32.mrf.mxu0
  %v413 = vadd.f32 0.0, %v412
  %414 = vmatmul.f32.gmra.mxu0 %v324
  %v415 = vpop.f32.mrf.mxu0
  %v416 = vadd.f32 0.0, %v415
  %417 = vdwg.mxu0
  %418 = vmatpush.msra.mxu0 0.0
  %419 = vmatpush.msra.mxu0 0.0
  %420 = vmatpush.msra.mxu0 0.0
  %421 = vmatpush.msra.mxu0 0.0
  %422 = vmatpush.msra.mxu0 0.0
  %423 = vmatpush.msra.mxu0 0.0
  %424 = vmatpush.msra.mxu0 0.0
  %425 = vmatpush.msra.mxu0 0.0
  %426 = vmatpush.msra.mxu0 0.0
  %427 = vmatpush.msra.mxu0 0.0
  %428 = vmatpush.msra.mxu0 0.0
  %429 = vmatpush.msra.mxu0 0.0
  %430 = vmatpush.msra.mxu0 %v275
  %431 = vmatpush.msra.mxu0 %v274
  %432 = vmatpush.msra.mxu0 %v273
  %433 = vmatpush.msra.mxu0 %v272
  %434 = vmatmul.f32.gmra.mxu0 %v321
  %v435 = vpop.f32.mrf.mxu0
  %v436 = vadd.f32 0.0, %v435
  %437 = vmatmul.f32.gmra.mxu0 %v324
  %v438 = vpop.f32.mrf.mxu0
  %v439 = vadd.f32 0.0, %v438
  %440 = vdwg.mxu0
  %441 = vmatpush.msra.mxu0 0.0
  %442 = vmatpush.msra.mxu0 0.0
  %443 = vmatpush.msra.mxu0 0.0
  %444 = vmatpush.msra.mxu0 0.0
  %445 = vmatpush.msra.mxu0 0.0
  %446 = vmatpush.msra.mxu0 0.0
  %447 = vmatpush.msra.mxu0 0.0
  %448 = vmatpush.msra.mxu0 0.0
  %449 = vmatpush.msra.mxu0 0.0
  %450 = vmatpush.msra.mxu0 0.0
  %451 = vmatpush.msra.mxu0 0.0
  %452 = vmatpush.msra.mxu0 0.0
  %453 = vmatpush.msra.mxu0 %v279
  %454 = vmatpush.msra.mxu0 %v278
  %455 = vmatpush.msra.mxu0 %v277
  %456 = vmatpush.msra.mxu0 %v276
  %457 = vmatmul.f32.gmra.mxu0 %v321
  %v458 = vpop.f32.mrf.mxu0
  %v459 = vadd.f32 0.0, %v458
  %460 = vmatmul.f32.gmra.mxu0 %v324
  %v461 = vpop.f32.mrf.mxu0
  %v462 = vadd.f32 0.0, %v461
  %463 = vdwg.mxu0
  %464 = vmatpush.msra.mxu0 0.0
  %465 = vmatpush.msra.mxu0 0.0
  %466 = vmatpush.msra.mxu0 0.0
  %467 = vmatpush.msra.mxu0 0.0
  %468 = vmatpush.msra.mxu0 0.0
  %469 = vmatpush.msra.mxu0 0.0
  %470 = vmatpush.msra.mxu0 0.0
  %471 = vmatpush.msra.mxu0 0.0
  %472 = vmatpush.msra.mxu0 0.0
  %473 = vmatpush.msra.mxu0 0.0
  %474 = vmatpush.msra.mxu0 0.0
  %475 = vmatpush.msra.mxu0 0.0
  %476 = vmatpush.msra.mxu0 %v283
  %477 = vmatpush.msra.mxu0 %v282
  %478 = vmatpush.msra.mxu0 %v281
  %479 = vmatpush.msra.mxu0 %v280
  %480 = vmatmul.f32.gmra.mxu0 %v321
  %v481 = vpop.f32.mrf.mxu0
  %v482 = vadd.f32 0.0, %v481
  %483 = vmatmul.f32.gmra.mxu0 %v324
  %v484 = vpop.f32.mrf.mxu0
  %v485 = vadd.f32 0.0, %v484
  %486 = vdwg.mxu0
  %487 = vmatpush.msra.mxu0 0.0
  %488 = vmatpush.msra.mxu0 0.0
  %489 = vmatpush.msra.mxu0 0.0
  %490 = vmatpush.msra.mxu0 0.0
  %491 = vmatpush.msra.mxu0 0.0
  %492 = vmatpush.msra.mxu0 0.0
  %493 = vmatpush.msra.mxu0 0.0
  %494 = vmatpush.msra.mxu0 0.0
  %495 = vmatpush.msra.mxu0 0.0
  %496 = vmatpush.msra.mxu0 0.0
  %497 = vmatpush.msra.mxu0 0.0
  %498 = vmatpush.msra.mxu0 0.0
  %499 = vmatpush.msra.mxu0 %v287
  %500 = vmatpush.msra.mxu0 %v286
  %501 = vmatpush.msra.mxu0 %v285
  %502 = vmatpush.msra.mxu0 %v284
  %503 = vmatmul.f32.gmra.mxu0 %v321
  %v504 = vpop.f32.mrf.mxu0
  %v505 = vadd.f32 0.0, %v504
  %506 = vmatmul.f32.gmra.mxu0 %v324
  %v507 = vpop.f32.mrf.mxu0
  %v508 = vadd.f32 0.0, %v507
  %509 = vdwg.mxu0
  %510 = vmatpush.msra.mxu0 0.0
  %511 = vmatpush.msra.mxu0 0.0
  %512 = vmatpush.msra.mxu0 0.0
  %513 = vmatpush.msra.mxu0 0.0
  %514 = vmatpush.msra.mxu0 0.0
  %515 = vmatpush.msra.mxu0 0.0
  %516 = vmatpush.msra.mxu0 0.0
  %517 = vmatpush.msra.mxu0 0.0
  %518 = vmatpush.msra.mxu0 0.0
  %519 = vmatpush.msra.mxu0 0.0
  %520 = vmatpush.msra.mxu0 0.0
  %521 = vmatpush.msra.mxu0 0.0
  %522 = vmatpush.msra.mxu0 %v291
  %523 = vmatpush.msra.mxu0 %v290
  %524 = vmatpush.msra.mxu0 %v289
  %525 = vmatpush.msra.mxu0 %v288
  %526 = vmatmul.f32.gmra.mxu0 %v321
  %v527 = vpop.f32.mrf.mxu0
  %v528 = vadd.f32 0.0, %v527
  %529 = vmatmul.f32.gmra.mxu0 %v324
  %v530 = vpop.f32.mrf.mxu0
  %v531 = vadd.f32 0.0, %v530
  %532 = vdwg.mxu0
  %533 = vmatpush.msra.mxu0 0.0
  %534 = vmatpush.msra.mxu0 0.0
  %535 = vmatpush.msra.mxu0 0.0
  %536 = vmatpush.msra.mxu0 0.0
  %537 = vmatpush.msra.mxu0 0.0
  %538 = vmatpush.msra.mxu0 0.0
  %539 = vmatpush.msra.mxu0 0.0
  %540 = vmatpush.msra.mxu0 0.0
  %541 = vmatpush.msra.mxu0 0.0
  %542 = vmatpush.msra.mxu0 0.0
  %543 = vmatpush.msra.mxu0 0.0
  %544 = vmatpush.msra.mxu0 0.0
  %545 = vmatpush.msra.mxu0 %v295
  %546 = vmatpush.msra.mxu0 %v294
  %547 = vmatpush.msra.mxu0 %v293
  %548 = vmatpush.msra.mxu0 %v292
  %549 = vmatmul.f32.gmra.mxu0 %v321
  %v550 = vpop.f32.mrf.mxu0
  %v551 = vadd.f32 0.0, %v550
  %552 = vmatmul.f32.gmra.mxu0 %v324
  %v553 = vpop.f32.mrf.mxu0
  %v554 = vadd.f32 0.0, %v553
  %555 = vdwg.mxu0
  %556 = vmatpush.msra.mxu0 0.0
  %557 = vmatpush.msra.mxu0 0.0
  %558 = vmatpush.msra.mxu0 0.0
  %559 = vmatpush.msra.mxu0 0.0
  %560 = vmatpush.msra.mxu0 0.0
  %561 = vmatpush.msra.mxu0 0.0
  %562 = vmatpush.msra.mxu0 0.0
  %563 = vmatpush.msra.mxu0 0.0
  %564 = vmatpush.msra.mxu0 0.0
  %565 = vmatpush.msra.mxu0 0.0
  %566 = vmatpush.msra.mxu0 0.0
  %567 = vmatpush.msra.mxu0 0.0
  %568 = vmatpush.msra.mxu0 %v299
  %569 = vmatpush.msra.mxu0 %v298
  %570 = vmatpush.msra.mxu0 %v297
  %571 = vmatpush.msra.mxu0 %v296
  %572 = vmatmul.f32.gmra.mxu0 %v321
  %v573 = vpop.f32.mrf.mxu0
  %v574 = vadd.f32 0.0, %v573
  %575 = vmatmul.f32.gmra.mxu0 %v324
  %v576 = vpop.f32.mrf.mxu0
  %v577 = vadd.f32 0.0, %v576
  %578 = vdwg.mxu0
  %579 = vmatpush.msra.mxu0 0.0
  %580 = vmatpush.msra.mxu0 0.0
  %581 = vmatpush.msra.mxu0 0.0
  %582 = vmatpush.msra.mxu0 0.0
  %583 = vmatpush.msra.mxu0 0.0
  %584 = vmatpush.msra.mxu0 0.0
  %585 = vmatpush.msra.mxu0 0.0
  %586 = vmatpush.msra.mxu0 0.0
  %587 = vmatpush.msra.mxu0 0.0
  %588 = vmatpush.msra.mxu0 0.0
  %589 = vmatpush.msra.mxu0 0.0
  %590 = vmatpush.msra.mxu0 0.0
  %591 = vmatpush.msra.mxu0 %v303
  %592 = vmatpush.msra.mxu0 %v302
  %593 = vmatpush.msra.mxu0 %v301
  %594 = vmatpush.msra.mxu0 %v300
  %595 = vmatmul.f32.gmra.mxu0 %v321
  %v596 = vpop.f32.mrf.mxu0
  %v597 = vadd.f32 0.0, %v596
  %598 = vmatmul.f32.gmra.mxu0 %v324
  %v599 = vpop.f32.mrf.mxu0
  %v600 = vadd.f32 0.0, %v599
  %601 = vdwg.mxu0
  %v603 = vsel %vm76, %v344, 0
  %v606 = vsel %vm76, %v347, 0
  %v609 = vsel %vm76, %v436, 0
  %v612 = vsel %vm76, %v439, 0
  %614 = vmatpush.xpose.msra.mxu0 0.0
  %615 = vmatpush.xpose.msra.mxu0 0.0
  %616 = vmatpush.xpose.msra.mxu0 0.0
  %617 = vmatpush.xpose.msra.mxu0 0.0
  %618 = vmatpush.xpose.msra.mxu0 0.0
  %619 = vmatpush.xpose.msra.mxu0 0.0
  %620 = vmatpush.xpose.msra.mxu0 0.0
  %621 = vmatpush.xpose.msra.mxu0 0.0
  %622 = vmatpush.xpose.msra.mxu0 0.0
  %623 = vmatpush.xpose.msra.mxu0 0.0
  %624 = vmatpush.xpose.msra.mxu0 0.0
  %625 = vmatpush.xpose.msra.mxu0 0.0
  %626 = vmatpush.xpose.msra.mxu0 0.0
  %627 = vmatpush.xpose.msra.mxu0 0.0
  %628 = vmatpush.xpose.msra.mxu0 %v612
  %629 = vmatpush.xpose.msra.mxu0 %v609
  %630 = vmatmul.f32.gmra.mxu0 %v603
  %v631 = vpop.f32.mrf.mxu0
  %v632 = vadd.f32 0.0, %v631
  %633 = vmatmul.f32.gmra.mxu0 %v606
  %v634 = vpop.f32.mrf.mxu0
  %v635 = vadd.f32 0.0, %v634
  %636 = vdwg.mxu0
  %v638 = vsel %vm76, %v367, 0
  %v641 = vsel %vm76, %v370, 0
  %v644 = vsel %vm76, %v459, 0
  %v647 = vsel %vm76, %v462, 0
  %649 = vmatpush.xpose.msra.mxu0 0.0
  %650 = vmatpush.xpose.msra.mxu0 0.0
  %651 = vmatpush.xpose.msra.mxu0 0.0
  %652 = vmatpush.xpose.msra.mxu0 0.0
  %653 = vmatpush.xpose.msra.mxu0 0.0
  %654 = vmatpush.xpose.msra.mxu0 0.0
  %655 = vmatpush.xpose.msra.mxu0 0.0
  %656 = vmatpush.xpose.msra.mxu0 0.0
  %657 = vmatpush.xpose.msra.mxu0 0.0
  %658 = vmatpush.xpose.msra.mxu0 0.0
  %659 = vmatpush.xpose.msra.mxu0 0.0
  %660 = vmatpush.xpose.msra.mxu0 0.0
  %661 = vmatpush.xpose.msra.mxu0 0.0
  %662 = vmatpush.xpose.msra.mxu0 0.0
  %663 = vmatpush.xpose.msra.mxu0 %v647
  %664 = vmatpush.xpose.msra.mxu0 %v644
  %665 = vmatmul.f32.gmra.mxu0 %v638
  %v666 = vpop.f32.mrf.mxu0
  %v667 = vadd.f32 0.0, %v666
  %668 = vmatmul.f32.gmra.mxu0 %v641
  %v669 = vpop.f32.mrf.mxu0
  %v670 = vadd.f32 0.0, %v669
  %671 = vdwg.mxu0
  %v673 = vsel %vm76, %v390, 0
  %v676 = vsel %vm76, %v393, 0
  %v679 = vsel %vm76, %v482, 0
  %v682 = vsel %vm76, %v485, 0
  %684 = vmatpush.xpose.msra.mxu0 0.0
  %685 = vmatpush.xpose.msra.mxu0 0.0
  %686 = vmatpush.xpose.msra.mxu0 0.0
  %687 = vmatpush.xpose.msra.mxu0 0.0
  %688 = vmatpush.xpose.msra.mxu0 0.0
  %689 = vmatpush.xpose.msra.mxu0 0.0
  %690 = vmatpush.xpose.msra.mxu0 0.0
  %691 = vmatpush.xpose.msra.mxu0 0.0
  %692 = vmatpush.xpose.msra.mxu0 0.0
  %693 = vmatpush.xpose.msra.mxu0 0.0
  %694 = vmatpush.xpose.msra.mxu0 0.0
  %695 = vmatpush.xpose.msra.mxu0 0.0
  %696 = vmatpush.xpose.msra.mxu0 0.0
  %697 = vmatpush.xpose.msra.mxu0 0.0
  %698 = vmatpush.xpose.msra.mxu0 %v682
  %699 = vmatpush.xpose.msra.mxu0 %v679
  %700 = vmatmul.f32.gmra.mxu0 %v673
  %v701 = vpop.f32.mrf.mxu0
  %v702 = vadd.f32 0.0, %v701
  %703 = vmatmul.f32.gmra.mxu0 %v676
  %v704 = vpop.f32.mrf.mxu0
  %v705 = vadd.f32 0.0, %v704
  %706 = vdwg.mxu0
  %v708 = vsel %vm76, %v413, 0
  %v711 = vsel %vm76, %v416, 0
  %v714 = vsel %vm76, %v505, 0
  %v717 = vsel %vm76, %v508, 0
  %719 = vmatpush.xpose.msra.mxu0 0.0
  %720 = vmatpush.xpose.msra.mxu0 0.0
  %721 = vmatpush.xpose.msra.mxu0 0.0
  %722 = vmatpush.xpose.msra.mxu0 0.0
  %723 = vmatpush.xpose.msra.mxu0 0.0
  %724 = vmatpush.xpose.msra.mxu0 0.0
  %725 = vmatpush.xpose.msra.mxu0 0.0
  %726 = vmatpush.xpose.msra.mxu0 0.0
  %727 = vmatpush.xpose.msra.mxu0 0.0
  %728 = vmatpush.xpose.msra.mxu0 0.0
  %729 = vmatpush.xpose.msra.mxu0 0.0
  %730 = vmatpush.xpose.msra.mxu0 0.0
  %731 = vmatpush.xpose.msra.mxu0 0.0
  %732 = vmatpush.xpose.msra.mxu0 0.0
  %733 = vmatpush.xpose.msra.mxu0 %v717
  %734 = vmatpush.xpose.msra.mxu0 %v714
  %735 = vmatmul.f32.gmra.mxu0 %v708
  %v736 = vpop.f32.mrf.mxu0
  %v737 = vadd.f32 0.0, %v736
  %738 = vmatmul.f32.gmra.mxu0 %v711
  %v739 = vpop.f32.mrf.mxu0
  %v740 = vadd.f32 0.0, %v739
  %741 = vdwg.mxu0
  %v742 = vmul.f32 %v632, 0.35355338
  %v743 = vmul.f32 %v635, 0.35355338
  %v744 = vmul.f32 %v667, 0.35355338
  %v745 = vmul.f32 %v670, 0.35355338
  %v746 = vmul.f32 %v702, 0.35355338
  %v747 = vmul.f32 %v705, 0.35355338
  %v748 = vmul.f32 %v737, 0.35355338
  %v749 = vmul.f32 %v740, 0.35355338
  %750 = vrot.lane.b32.xlu0 %v17, 72
  %v751 = vpop.permute.xlu0 %750
  %752 = vrot.lane.b32.xlu0 %v18, 72
  %v753 = vpop.permute.xlu0 %752
  %v756 = vadd.f32 %v742, %v751
  %v757 = vadd.f32 %v743, %v753
  %v758 = vadd.f32 %v744, %v751
  %v759 = vadd.f32 %v745, %v753
  %v760 = vadd.f32 %v746, %v751
  %v761 = vadd.f32 %v747, %v753
  %v762 = vadd.f32 %v748, %v751
  %v763 = vadd.f32 %v749, %v753
  %v764 = vsel %vm104, %v756, -inf
  %765 = vmax.xlane.f32.xlu0 %v764
  %v766 = vpop.xlane.xlu0 %765
  %v767 = vsel %vm104, %v757, -inf
  %768 = vmax.xlane.f32.xlu0 %v767
  %v769 = vpop.xlane.xlu0 %768
  %v770 = vsel %vm104, %v758, -inf
  %771 = vmax.xlane.f32.xlu0 %v770
  %v772 = vpop.xlane.xlu0 %771
  %v773 = vsel %vm104, %v759, -inf
  %774 = vmax.xlane.f32.xlu0 %v773
  %v775 = vpop.xlane.xlu0 %774
  %v776 = vsel %vm104, %v760, -inf
  %777 = vmax.xlane.f32.xlu0 %v776
  %v778 = vpop.xlane.xlu0 %777
  %v779 = vsel %vm104, %v761, -inf
  %780 = vmax.xlane.f32.xlu0 %v779
  %v781 = vpop.xlane.xlu0 %780
  %v782 = vsel %vm104, %v762, -inf
  %783 = vmax.xlane.f32.xlu0 %v782
  %v784 = vpop.xlane.xlu0 %783
  %v785 = vsel %vm104, %v763, -inf
  %786 = vmax.xlane.f32.xlu0 %v785
  %v787 = vpop.xlane.xlu0 %786
  %v788 = vsub.f32 %v756, %v766
  %v789 = vsub.f32 %v757, %v769
  %v790 = vsub.f32 %v758, %v772
  %v791 = vsub.f32 %v759, %v775
  %v792 = vsub.f32 %v760, %v778
  %v793 = vsub.f32 %v761, %v781
  %v794 = vsub.f32 %v762, %v784
  %v795 = vsub.f32 %v763, %v787
  %v796 = vmul.f32 %v788, 1.442695
  %v797 = vpow.pop %v796
  %v798 = vmul.f32 %v789, 1.442695
  %v799 = vpow.pop %v798
  %v800 = vmul.f32 %v790, 1.442695
  %v801 = vpow.pop %v800
  %v802 = vmul.f32 %v791, 1.442695
  %v803 = vpow.pop %v802
  %v804 = vmul.f32 %v792, 1.442695
  %v805 = vpow.pop %v804
  %v806 = vmul.f32 %v793, 1.442695
  %v807 = vpow.pop %v806
  %v808 = vmul.f32 %v794, 1.442695
  %v809 = vpow.pop %v808
  %v810 = vmul.f32 %v795, 1.442695
  %v811 = vpow.pop %v810
  %v812 = vsel %vm104, %v797, 0.0
  %813 = vadd.xlane.f32.xlu0 %v812
  %v814 = vpop.xlane.xlu0 %813
  %v815 = vsel %vm104, %v799, 0.0
  %816 = vadd.xlane.f32.xlu0 %v815
  %v817 = vpop.xlane.xlu0 %816
  %v818 = vsel %vm104, %v801, 0.0
  %819 = vadd.xlane.f32.xlu0 %v818
  %v820 = vpop.xlane.xlu0 %819
  %v821 = vsel %vm104, %v803, 0.0
  %822 = vadd.xlane.f32.xlu0 %v821
  %v823 = vpop.xlane.xlu0 %822
  %v824 = vsel %vm104, %v805, 0.0
  %825 = vadd.xlane.f32.xlu0 %v824
  %v826 = vpop.xlane.xlu0 %825
  %v827 = vsel %vm104, %v807, 0.0
  %828 = vadd.xlane.f32.xlu0 %v827
  %v829 = vpop.xlane.xlu0 %828
  %v830 = vsel %vm104, %v809, 0.0
  %831 = vadd.xlane.f32.xlu0 %v830
  %v832 = vpop.xlane.xlu0 %831
  %v833 = vsel %vm104, %v811, 0.0
  %834 = vadd.xlane.f32.xlu0 %v833
  %v835 = vpop.xlane.xlu0 %834
  %v836 = vrcp.pop %v814
  %v837 = vrcp.pop %v817
  %v838 = vrcp.pop %v820
  %v839 = vrcp.pop %v823
  %v840 = vrcp.pop %v826
  %v841 = vrcp.pop %v829
  %v842 = vrcp.pop %v832
  %v843 = vrcp.pop %v835
  %v844 = vmul.f32 %v797, %v836
  %v845 = vmul.f32 %v799, %v837
  %v846 = vmul.f32 %v801, %v838
  %v847 = vmul.f32 %v803, %v839
  %v848 = vmul.f32 %v805, %v840
  %v849 = vmul.f32 %v807, %v841
  %v850 = vmul.f32 %v809, %v842
  %v851 = vmul.f32 %v811, %v843
  %v853 = vsel %vm104, %v844, 0
  %v856 = vsel %vm104, %v845, 0
  %858 = vmatpush.msra.mxu0 0.0
  %859 = vmatpush.msra.mxu0 0.0
  %860 = vmatpush.msra.mxu0 0.0
  %861 = vmatpush.msra.mxu0 0.0
  %862 = vmatpush.msra.mxu0 0.0
  %863 = vmatpush.msra.mxu0 0.0
  %864 = vmatpush.msra.mxu0 0.0
  %865 = vmatpush.msra.mxu0 0.0
  %866 = vmatpush.msra.mxu0 0.0
  %867 = vmatpush.msra.mxu0 0.0
  %868 = vmatpush.msra.mxu0 0.0
  %869 = vmatpush.msra.mxu0 0.0
  %870 = vmatpush.msra.mxu0 0.0
  %871 = vmatpush.msra.mxu0 0.0
  %872 = vmatpush.msra.mxu0 %v531
  %873 = vmatpush.msra.mxu0 %v528
  %874 = vmatmul.f32.gmra.mxu0 %v853
  %v875 = vpop.f32.mrf.mxu0
  %v876 = vadd.f32 0.0, %v875
  %877 = vmatmul.f32.gmra.mxu0 %v856
  %v878 = vpop.f32.mrf.mxu0
  %v879 = vadd.f32 0.0, %v878
  %880 = vdwg.mxu0
  %v882 = vsel %vm104, %v846, 0
  %v885 = vsel %vm104, %v847, 0
  %887 = vmatpush.msra.mxu0 0.0
  %888 = vmatpush.msra.mxu0 0.0
  %889 = vmatpush.msra.mxu0 0.0
  %890 = vmatpush.msra.mxu0 0.0
  %891 = vmatpush.msra.mxu0 0.0
  %892 = vmatpush.msra.mxu0 0.0
  %893 = vmatpush.msra.mxu0 0.0
  %894 = vmatpush.msra.mxu0 0.0
  %895 = vmatpush.msra.mxu0 0.0
  %896 = vmatpush.msra.mxu0 0.0
  %897 = vmatpush.msra.mxu0 0.0
  %898 = vmatpush.msra.mxu0 0.0
  %899 = vmatpush.msra.mxu0 0.0
  %900 = vmatpush.msra.mxu0 0.0
  %901 = vmatpush.msra.mxu0 %v554
  %902 = vmatpush.msra.mxu0 %v551
  %903 = vmatmul.f32.gmra.mxu0 %v882
  %v904 = vpop.f32.mrf.mxu0
  %v905 = vadd.f32 0.0, %v904
  %906 = vmatmul.f32.gmra.mxu0 %v885
  %v907 = vpop.f32.mrf.mxu0
  %v908 = vadd.f32 0.0, %v907
  %909 = vdwg.mxu0
  %v911 = vsel %vm104, %v848, 0
  %v914 = vsel %vm104, %v849, 0
  %916 = vmatpush.msra.mxu0 0.0
  %917 = vmatpush.msra.mxu0 0.0
  %918 = vmatpush.msra.mxu0 0.0
  %919 = vmatpush.msra.mxu0 0.0
  %920 = vmatpush.msra.mxu0 0.0
  %921 = vmatpush.msra.mxu0 0.0
  %922 = vmatpush.msra.mxu0 0.0
  %923 = vmatpush.msra.mxu0 0.0
  %924 = vmatpush.msra.mxu0 0.0
  %925 = vmatpush.msra.mxu0 0.0
  %926 = vmatpush.msra.mxu0 0.0
  %927 = vmatpush.msra.mxu0 0.0
  %928 = vmatpush.msra.mxu0 0.0
  %929 = vmatpush.msra.mxu0 0.0
  %930 = vmatpush.msra.mxu0 %v577
  %931 = vmatpush.msra.mxu0 %v574
  %932 = vmatmul.f32.gmra.mxu0 %v911
  %v933 = vpop.f32.mrf.mxu0
  %v934 = vadd.f32 0.0, %v933
  %935 = vmatmul.f32.gmra.mxu0 %v914
  %v936 = vpop.f32.mrf.mxu0
  %v937 = vadd.f32 0.0, %v936
  %938 = vdwg.mxu0
  %v940 = vsel %vm104, %v850, 0
  %v943 = vsel %vm104, %v851, 0
  %945 = vmatpush.msra.mxu0 0.0
  %946 = vmatpush.msra.mxu0 0.0
  %947 = vmatpush.msra.mxu0 0.0
  %948 = vmatpush.msra.mxu0 0.0
  %949 = vmatpush.msra.mxu0 0.0
  %950 = vmatpush.msra.mxu0 0.0
  %951 = vmatpush.msra.mxu0 0.0
  %952 = vmatpush.msra.mxu0 0.0
  %953 = vmatpush.msra.mxu0 0.0
  %954 = vmatpush.msra.mxu0 0.0
  %955 = vmatpush.msra.mxu0 0.0
  %956 = vmatpush.msra.mxu0 0.0
  %957 = vmatpush.msra.mxu0 0.0
  %958 = vmatpush.msra.mxu0 0.0
  %959 = vmatpush.msra.mxu0 %v600
  %960 = vmatpush.msra.mxu0 %v597
  %961 = vmatmul.f32.gmra.mxu0 %v940
  %v962 = vpop.f32.mrf.mxu0
  %v963 = vadd.f32 0.0, %v962
  %964 = vmatmul.f32.gmra.mxu0 %v943
  %v965 = vpop.f32.mrf.mxu0
  %v966 = vadd.f32 0.0, %v965
  %967 = vdwg.mxu0
  %v969 = vsel %vm76, %v876, 0
  %v972 = vsel %vm76, %v879, 0
  %v975 = vsel %vm76, %v304, 0
  %v978 = vsel %vm76, %v305, 0
  %v981 = vsel %vm76, %v306, 0
  %v984 = vsel %vm76, %v307, 0
  %986 = vmatpush.xpose.msra.mxu0 0.0
  %987 = vmatpush.xpose.msra.mxu0 0.0
  %988 = vmatpush.xpose.msra.mxu0 0.0
  %989 = vmatpush.xpose.msra.mxu0 0.0
  %990 = vmatpush.xpose.msra.mxu0 0.0
  %991 = vmatpush.xpose.msra.mxu0 0.0
  %992 = vmatpush.xpose.msra.mxu0 0.0
  %993 = vmatpush.xpose.msra.mxu0 0.0
  %994 = vmatpush.xpose.msra.mxu0 0.0
  %995 = vmatpush.xpose.msra.mxu0 0.0
  %996 = vmatpush.xpose.msra.mxu0 0.0
  %997 = vmatpush.xpose.msra.mxu0 0.0
  %998 = vmatpush.xpose.msra.mxu0 %v984
  %999 = vmatpush.xpose.msra.mxu0 %v981
  %1000 = vmatpush.xpose.msra.mxu0 %v978
  %1001 = vmatpush.xpose.msra.mxu0 %v975
  %1002 = vmatmul.f32.gmra.mxu0 %v969
  %v1003 = vpop.f32.mrf.mxu0
  %v1004 = vadd.f32 0.0, %v1003
  %1005 = vmatmul.f32.gmra.mxu0 %v972
  %v1006 = vpop.f32.mrf.mxu0
  %v1007 = vadd.f32 0.0, %v1006
  %1008 = vdwg.mxu0
  %v1010 = vsel %vm76, %v905, 0
  %v1013 = vsel %vm76, %v908, 0
  %v1016 = vsel %vm76, %v308, 0
  %v1019 = vsel %vm76, %v309, 0
  %v1022 = vsel %vm76, %v310, 0
  %v1025 = vsel %vm76, %v311, 0
  %1027 = vmatpush.xpose.msra.mxu0 0.0
  %1028 = vmatpush.xpose.msra.mxu0 0.0
  %1029 = vmatpush.xpose.msra.mxu0 0.0
  %1030 = vmatpush.xpose.msra.mxu0 0.0
  %1031 = vmatpush.xpose.msra.mxu0 0.0
  %1032 = vmatpush.xpose.msra.mxu0 0.0
  %1033 = vmatpush.xpose.msra.mxu0 0.0
  %1034 = vmatpush.xpose.msra.mxu0 0.0
  %1035 = vmatpush.xpose.msra.mxu0 0.0
  %1036 = vmatpush.xpose.msra.mxu0 0.0
  %1037 = vmatpush.xpose.msra.mxu0 0.0
  %1038 = vmatpush.xpose.msra.mxu0 0.0
  %1039 = vmatpush.xpose.msra.mxu0 %v1025
  %1040 = vmatpush.xpose.msra.mxu0 %v1022
  %1041 = vmatpush.xpose.msra.mxu0 %v1019
  %1042 = vmatpush.xpose.msra.mxu0 %v1016
  %1043 = vmatmul.f32.gmra.mxu0 %v1010
  %v1044 = vpop.f32.mrf.mxu0
  %v1045 = vadd.f32 0.0, %v1044
  %1046 = vmatmul.f32.gmra.mxu0 %v1013
  %v1047 = vpop.f32.mrf.mxu0
  %v1048 = vadd.f32 0.0, %v1047
  %1049 = vdwg.mxu0
  %v1051 = vsel %vm76, %v934, 0
  %v1054 = vsel %vm76, %v937, 0
  %v1057 = vsel %vm76, %v312, 0
  %v1060 = vsel %vm76, %v313, 0
  %v1063 = vsel %vm76, %v314, 0
  %v1066 = vsel %vm76, %v315, 0
  %1068 = vmatpush.xpose.msra.mxu0 0.0
  %1069 = vmatpush.xpose.msra.mxu0 0.0
  %1070 = vmatpush.xpose.msra.mxu0 0.0
  %1071 = vmatpush.xpose.msra.mxu0 0.0
  %1072 = vmatpush.xpose.msra.mxu0 0.0
  %1073 = vmatpush.xpose.msra.mxu0 0.0
  %1074 = vmatpush.xpose.msra.mxu0 0.0
  %1075 = vmatpush.xpose.msra.mxu0 0.0
  %1076 = vmatpush.xpose.msra.mxu0 0.0
  %1077 = vmatpush.xpose.msra.mxu0 0.0
  %1078 = vmatpush.xpose.msra.mxu0 0.0
  %1079 = vmatpush.xpose.msra.mxu0 0.0
  %1080 = vmatpush.xpose.msra.mxu0 %v1066
  %1081 = vmatpush.xpose.msra.mxu0 %v1063
  %1082 = vmatpush.xpose.msra.mxu0 %v1060
  %1083 = vmatpush.xpose.msra.mxu0 %v1057
  %1084 = vmatmul.f32.gmra.mxu0 %v1051
  %v1085 = vpop.f32.mrf.mxu0
  %v1086 = vadd.f32 0.0, %v1085
  %1087 = vmatmul.f32.gmra.mxu0 %v1054
  %v1088 = vpop.f32.mrf.mxu0
  %v1089 = vadd.f32 0.0, %v1088
  %1090 = vdwg.mxu0
  %v1092 = vsel %vm76, %v963, 0
  %v1095 = vsel %vm76, %v966, 0
  %v1098 = vsel %vm76, %v316, 0
  %v1101 = vsel %vm76, %v317, 0
  %v1104 = vsel %vm76, %v318, 0
  %v1107 = vsel %vm76, %v319, 0
  %1109 = vmatpush.xpose.msra.mxu0 0.0
  %1110 = vmatpush.xpose.msra.mxu0 0.0
  %1111 = vmatpush.xpose.msra.mxu0 0.0
  %1112 = vmatpush.xpose.msra.mxu0 0.0
  %1113 = vmatpush.xpose.msra.mxu0 0.0
  %1114 = vmatpush.xpose.msra.mxu0 0.0
  %1115 = vmatpush.xpose.msra.mxu0 0.0
  %1116 = vmatpush.xpose.msra.mxu0 0.0
  %1117 = vmatpush.xpose.msra.mxu0 0.0
  %1118 = vmatpush.xpose.msra.mxu0 0.0
  %1119 = vmatpush.xpose.msra.mxu0 0.0
  %1120 = vmatpush.xpose.msra.mxu0 0.0
  %1121 = vmatpush.xpose.msra.mxu0 %v1107
  %1122 = vmatpush.xpose.msra.mxu0 %v1104
  %1123 = vmatpush.xpose.msra.mxu0 %v1101
  %1124 = vmatpush.xpose.msra.mxu0 %v1098
  %1125 = vmatmul.f32.gmra.mxu0 %v1092
  %v1126 = vpop.f32.mrf.mxu0
  %v1127 = vadd.f32 0.0, %v1126
  %1128 = vmatmul.f32.gmra.mxu0 %v1095
  %v1129 = vpop.f32.mrf.mxu0
  %v1130 = vadd.f32 0.0, %v1129
  %1131 = vdwg.mxu0
  %v1132 = vsel %vm150, %v1004, 0.0
  %v1133 = vsel %vm150, %v1045, 0.0
  %v1134 = vadd.f32 %v1132, %v1133
  %v1135 = vsel %vm150, %v1086, 0.0
  %v1136 = vadd.f32 %v1134, %v1135
  %v1137 = vsel %vm150, %v1127, 0.0
  %v1138 = vadd.f32 %v1136, %v1137
  %v1139 = vsel %vm150, %v1007, 0.0
  %v1140 = vsel %vm150, %v1048, 0.0
  %v1141 = vadd.f32 %v1139, %v1140
  %v1142 = vsel %vm150, %v1089, 0.0
  %v1143 = vadd.f32 %v1141, %v1142
  %v1144 = vsel %vm150, %v1130, 0.0
  %v1145 = vadd.f32 %v1143, %v1144
  %v1146 = vadd.f32 %v206, %v1138
  %v1147 = vadd.f32 %v207, %v1145
  %v1148 = vld [vmem:[%s1 + $0xd] sm:$0x1]
  %v1149 = vsel %vm150, %v1146, 0.0
  %1150 = vadd.xlane.f32.xlu0 %v1149
  %v1151 = vpop.xlane.xlu0 %1150
  %v1152 = vsel %vm150, %v1147, 0.0
  %1153 = vadd.xlane.f32.xlu0 %v1152
  %v1154 = vpop.xlane.xlu0 %1153
  %v1155 = vmul.f32 %v1151, %v163
  %v1156 = vmul.f32 %v1154, %v163
  %v1157 = vsub.f32 %v1146, %v1155
  %v1158 = vsub.f32 %v1147, %v1156
  %v1159 = vmul.f32 %v1157, %v1157
  %v1160 = vmul.f32 %v1158, %v1158
  %v1161 = vsel %vm150, %v1159, 0.0
  %1162 = vadd.xlane.f32.xlu0 %v1161
  %v1163 = vpop.xlane.xlu0 %1162
  %v1164 = vsel %vm150, %v1160, 0.0
  %1165 = vadd.xlane.f32.xlu0 %v1164
  %v1166 = vpop.xlane.xlu0 %1165
  %v1167 = vmul.f32 %v1163, %v163
  %v1168 = vmul.f32 %v1166, %v163
  %v1169 = vadd.f32 %v1167, 1e-05
  %v1170 = vadd.f32 %v1168, 1e-05
  %v1171 = vrsqrt.pop %v1169
  %v1172 = vmul.f32 %v1171, %v1169
  %v1173 = vmul.f32 %v1172, %v1171
  %v1174 = vmul.f32 0.5, %v1173
  %v1175 = vsub.f32 1.5, %v1174
  %v1176 = vmul.f32 %v1171, %v1175
  %vm1177 = vweird.f32 %v1169
  %vm1178 = vweird.f32 %v1171
  %vm1179 = vmor %vm1177, %vm1178
  %v1180 = vsel %vm1179, %v1171, %v1176
  %v1181 = vrsqrt.pop %v1170
  %v1182 = vmul.f32 %v1181, %v1170
  %v1183 = vmul.f32 %v1182, %v1181
  %v1184 = vmul.f32 0.5, %v1183
  %v1185 = vsub.f32 1.5, %v1184
  %v1186 = vmul.f32 %v1181, %v1185
  %vm1187 = vweird.f32 %v1170
  %vm1188 = vweird.f32 %v1181
  %vm1189 = vmor %vm1187, %vm1188
  %v1190 = vsel %vm1189, %v1181, %v1186
  %v1191 = vmul.f32 %v1157, %v1180
  %v1192 = vmul.f32 %v1158, %v1190
  %v1193 = vperm.slane %v1148, 0
  %v1194 = vmul.f32 %v1191, %v1193
  %v1195 = vmul.f32 %v1192, %v1193
  %v1196 = vld [vmem:[%s3] sm:$0xff]
  %v1197 = vld [vmem:[%s3 + $0x8] sm:$0xff]
  %v1198 = vld [vmem:[%s3 + $0x10] sm:$0xff]
  %v1199 = vld [vmem:[%s3 + $0x18] sm:$0xff]
  %v1201 = vsel %vm150, %v1194, 0
  %v1204 = vsel %vm150, %v1195, 0
  %1206 = vmatpush.msra.mxu0 0.0
  %1207 = vmatpush.msra.mxu0 0.0
  %1208 = vmatpush.msra.mxu0 0.0
  %1209 = vmatpush.msra.mxu0 0.0
  %1210 = vmatpush.msra.mxu0 0.0
  %1211 = vmatpush.msra.mxu0 0.0
  %1212 = vmatpush.msra.mxu0 0.0
  %1213 = vmatpush.msra.mxu0 0.0
  %1214 = vmatpush.msra.mxu0 0.0
  %1215 = vmatpush.msra.mxu0 0.0
  %1216 = vmatpush.msra.mxu0 0.0
  %1217 = vmatpush.msra.mxu0 0.0
  %1218 = vmatpush.msra.mxu0 %v1199
  %1219 = vmatpush.msra.mxu0 %v1198
  %1220 = vmatpush.msra.mxu0 %v1197
  %1221 = vmatpush.msra.mxu0 %v1196
  %1222 = vmatmul.f32.gmra.mxu0 %v1201
  %v1223 = vpop.f32.mrf.mxu0
  %v1224 = vadd.f32 0.0, %v1223
  %1225 = vmatmul.f32.gmra.mxu0 %v1204
  %v1226 = vpop.f32.mrf.mxu0
  %v1227 = vadd.f32 0.0, %v1226
  %1228 = vdwg.mxu0
  %v1229 = vmul.f32 %v1224, 0.5
  %v1230 = vmul.f32 %v1227, 0.5
  %v1231 = vmul.f32 %v1224, 0.70710677
  %v1232 = vmul.f32 %v1227, 0.70710677
  %vm1233 = vcmp.ge.f32.partialorder %v1231, 0.0
  %vm1234 = vcmp.ge.f32.partialorder %v1232, 0.0
  %v1235 = vsel %vm1233, 1.0, -1.0
  %v1236 = vsel %vm1234, 1.0, -1.0
  %v1237 = vand.u32 2147483647, %v1231
  %v1238 = vand.u32 2147483647, %v1232
  %v1239 = vmul.f32 %v1237, 0.3275911
  %v1240 = vmul.f32 %v1238, 0.3275911
  %v1241 = vadd.f32 %v1239, 1.0
  %v1242 = vadd.f32 %v1240, 1.0
  %v1243 = vrcp.pop %v1241
  %v1244 = vmul.f32 %v1241, %v1243
  %v1245 = vsub.f32 1.0, %v1244
  %v1246 = vmul.f32 %v1243, %v1245
  %v1247 = vadd.f32 %v1243, %v1246
  %vm1248 = vweird.f32 %v1241
  %vm1249 = vweird.f32 %v1243
  %vm1250 = vmor %vm1248, %vm1249
  %v1251 = vsel %vm1250, %v1243, %v1247
  %v1252 = vand.u32 2147483647, %v1241
  %vm1253 = vcmp.eq.f32.partialorder %v1252, 8.507059e+37
  %v1254 = vand.u32 %v1241, 2147483648
  %v1255 = vor.u32 1.1754944e-38, %v1254
  %v1256 = vsel %vm1253, %v1255, %v1251
  %v1257 = vmul.f32 1.0, %v1256
  %v1258 = vrcp.pop %v1242
  %v1259 = vmul.f32 %v1242, %v1258
  %v1260 = vsub.f32 1.0, %v1259
  %v1261 = vmul.f32 %v1258, %v1260
  %v1262 = vadd.f32 %v1258, %v1261
  %vm1263 = vweird.f32 %v1242
  %vm1264 = vweird.f32 %v1258
  %vm1265 = vmor %vm1263, %vm1264
  %v1266 = vsel %vm1265, %v1258, %v1262
  %v1267 = vand.u32 2147483647, %v1242
  %vm1268 = vcmp.eq.f32.partialorder %v1267, 8.507059e+37
  %v1269 = vand.u32 %v1242, 2147483648
  %v1270 = vor.u32 1.1754944e-38, %v1269
  %v1271 = vsel %vm1268, %v1270, %v1266
  %v1272 = vmul.f32 1.0, %v1271
  %v1273 = vmul.f32 %v1257, 1.0614054
  %v1274 = vmul.f32 %v1272, 1.0614054
  %v1275 = vadd.f32 %v1273, -1.4531521
  %v1276 = vadd.f32 %v1274, -1.4531521
  %v1277 = vmul.f32 %v1275, %v1257
  %v1278 = vmul.f32 %v1276, %v1272
  %v1279 = vadd.f32 %v1277, 1.4214138
  %v1280 = vadd.f32 %v1278, 1.4214138
  %v1281 = vmul.f32 %v1279, %v1257
  %v1282 = vmul.f32 %v1280, %v1272
  %v1283 = vadd.f32 %v1281, -0.28449672
  %v1284 = vadd.f32 %v1282, -0.28449672
  %v1285 = vmul.f32 %v1283, %v1257
  %v1286 = vmul.f32 %v1284, %v1272
  %v1287 = vadd.f32 %v1285, 0.2548296
  %v1288 = vadd.f32 %v1286, 0.2548296
  %v1289 = vmul.f32 %v1287, %v1257
  %v1290 = vmul.f32 %v1288, %v1272
  %v1291 = vsub.f32 0.0, %v1237
  %v1292 = vsub.f32 0.0, %v1238
  %v1293 = vmul.f32 %v1291, %v1237
  %v1294 = vmul.f32 %v1292, %v1238
  %v1295 = vmul.f32 %v1293, 1.442695
  %v1296 = vpow.pop %v1295
  %v1297 = vmul.f32 %v1294, 1.442695
  %v1298 = vpow.pop %v1297
  %v1299 = vmul.f32 %v1289, %v1296
  %v1300 = vmul.f32 %v1290, %v1298
  %v1301 = vsub.f32 1.0, %v1299
  %v1302 = vsub.f32 1.0, %v1300
  %v1303 = vmul.f32 %v1235, %v1301
  %v1304 = vmul.f32 %v1236, %v1302
  %v1305 = vadd.f32 %v1303, 1.0
  %v1306 = vadd.f32 %v1304, 1.0
  %v1307 = vmul.f32 %v1229, %v1305
  %v1308 = vmul.f32 %v1230, %v1306
  %s1309 = scalar_lea.vmem %s3, 32
  %v1310 = vld [vmem:[%s1309] sm:$0xff]
  %v1311 = vld [vmem:[%s1309 + $0x8] sm:$0xff]
  %v1312 = vld [vmem:[%s1309 + $0x10] sm:$0xff]
  %v1313 = vld [vmem:[%s1309 + $0x18] sm:$0xff]
  %1314 = vmatpush.xpose.msra.mxu0 0.0
  %1315 = vmatpush.xpose.msra.mxu0 0.0
  %1316 = vmatpush.xpose.msra.mxu0 0.0
  %1317 = vmatpush.xpose.msra.mxu0 0.0
  %1318 = vmatpush.xpose.msra.mxu0 0.0
  %1319 = vmatpush.xpose.msra.mxu0 0.0
  %1320 = vmatpush.xpose.msra.mxu0 0.0
  %1321 = vmatpush.xpose.msra.mxu0 0.0
  %1322 = vmatpush.xpose.msra.mxu0 0.0
  %1323 = vmatpush.xpose.msra.mxu0 0.0
  %1324 = vmatpush.xpose.msra.mxu0 0.0
  %1325 = vmatpush.xpose.msra.mxu0 0.0
  %1326 = vmatpush.xpose.msra.mxu0 %v1313
  %1327 = vmatpush.xpose.msra.mxu0 %v1312
  %1328 = vmatpush.xpose.msra.mxu0 %v1311
  %1329 = vmatpush.xpose.msra.mxu0 %v1310
  %1330 = vmatmul.f32.gmra.mxu0 %v1307
  %v1331 = vpop.f32.mrf.mxu0
  %v1332 = vadd.f32 0.0, %v1331
  %1333 = vmatmul.f32.gmra.mxu0 %v1308
  %v1334 = vpop.f32.mrf.mxu0
  %v1335 = vadd.f32 0.0, %v1334
  %1336 = vdwg.mxu0
  %v1337 = vadd.f32 %v1146, %v1332
  %v1338 = vadd.f32 %v1147, %v1335
  %v1339 = vld [vmem:[%s1 + $0xe] sm:$0x1]
  %v1340 = vsel %vm150, %v1337, 0.0
  %1341 = vadd.xlane.f32.xlu0 %v1340
  %v1342 = vpop.xlane.xlu0 %1341
  %v1343 = vsel %vm150, %v1338, 0.0
  %1344 = vadd.xlane.f32.xlu0 %v1343
  %v1345 = vpop.xlane.xlu0 %1344
  %v1346 = vmul.f32 %v1342, %v163
  %v1347 = vmul.f32 %v1345, %v163
  %v1348 = vsub.f32 %v1337, %v1346
  %v1349 = vsub.f32 %v1338, %v1347
  %v1350 = vmul.f32 %v1348, %v1348
  %v1351 = vmul.f32 %v1349, %v1349
  %v1352 = vsel %vm150, %v1350, 0.0
  %1353 = vadd.xlane.f32.xlu0 %v1352
  %v1354 = vpop.xlane.xlu0 %1353
  %v1355 = vsel %vm150, %v1351, 0.0
  %1356 = vadd.xlane.f32.xlu0 %v1355
  %v1357 = vpop.xlane.xlu0 %1356
  %v1358 = vmul.f32 %v1354, %v163
  %v1359 = vmul.f32 %v1357, %v163
  %v1360 = vadd.f32 %v1358, 1e-05
  %v1361 = vadd.f32 %v1359, 1e-05
  %v1362 = vrsqrt.pop %v1360
  %v1363 = vmul.f32 %v1362, %v1360
  %v1364 = vmul.f32 %v1363, %v1362
  %v1365 = vmul.f32 0.5, %v1364
  %v1366 = vsub.f32 1.5, %v1365
  %v1367 = vmul.f32 %v1362, %v1366
  %vm1368 = vweird.f32 %v1360
  %vm1369 = vweird.f32 %v1362
  %vm1370 = vmor %vm1368, %vm1369
  %v1371 = vsel %vm1370, %v1362, %v1367
  %v1372 = vrsqrt.pop %v1361
  %v1373 = vmul.f32 %v1372, %v1361
  %v1374 = vmul.f32 %v1373, %v1372
  %v1375 = vmul.f32 0.5, %v1374
  %v1376 = vsub.f32 1.5, %v1375
  %v1377 = vmul.f32 %v1372, %v1376
  %vm1378 = vweird.f32 %v1361
  %vm1379 = vweird.f32 %v1372
  %vm1380 = vmor %vm1378, %vm1379
  %v1381 = vsel %vm1380, %v1372, %v1377
  %v1382 = vmul.f32 %v1348, %v1371
  %v1383 = vmul.f32 %v1349, %v1381
  %v1384 = vperm.slane %v1339, 0
  %v1385 = vmul.f32 %v1382, %v1384
  %v1386 = vmul.f32 %v1383, %v1384
  %s1387 = scalar_lea.vmem %s2, 512
  %v1388 = vld [vmem:[%s1387] sm:$0xff]
  %v1389 = vld [vmem:[%s1387 + $0x8] sm:$0xff]
  %v1390 = vld [vmem:[%s1387 + $0x10] sm:$0xff]
  %v1391 = vld [vmem:[%s1387 + $0x18] sm:$0xff]
  %v1392 = vld [vmem:[%s1387 + $0x20] sm:$0xff]
  %v1393 = vld [vmem:[%s1387 + $0x28] sm:$0xff]
  %v1394 = vld [vmem:[%s1387 + $0x30] sm:$0xff]
  %v1395 = vld [vmem:[%s1387 + $0x38] sm:$0xff]
  %v1396 = vld [vmem:[%s1387 + $0x40] sm:$0xff]
  %v1397 = vld [vmem:[%s1387 + $0x48] sm:$0xff]
  %v1398 = vld [vmem:[%s1387 + $0x50] sm:$0xff]
  %v1399 = vld [vmem:[%s1387 + $0x58] sm:$0xff]
  %v1400 = vld [vmem:[%s1387 + $0x60] sm:$0xff]
  %v1401 = vld [vmem:[%s1387 + $0x68] sm:$0xff]
  %v1402 = vld [vmem:[%s1387 + $0x70] sm:$0xff]
  %v1403 = vld [vmem:[%s1387 + $0x78] sm:$0xff]
  %v1404 = vld [vmem:[%s1387 + $0x80] sm:$0xff]
  %v1405 = vld [vmem:[%s1387 + $0x88] sm:$0xff]
  %v1406 = vld [vmem:[%s1387 + $0x90] sm:$0xff]
  %v1407 = vld [vmem:[%s1387 + $0x98] sm:$0xff]
  %v1408 = vld [vmem:[%s1387 + $0xa0] sm:$0xff]
  %v1409 = vld [vmem:[%s1387 + $0xa8] sm:$0xff]
  %v1410 = vld [vmem:[%s1387 + $0xb0] sm:$0xff]
  %v1411 = vld [vmem:[%s1387 + $0xb8] sm:$0xff]
  %v1412 = vld [vmem:[%s1387 + $0xc0] sm:$0xff]
  %v1413 = vld [vmem:[%s1387 + $0xc8] sm:$0xff]
  %v1414 = vld [vmem:[%s1387 + $0xd0] sm:$0xff]
  %v1415 = vld [vmem:[%s1387 + $0xd8] sm:$0xff]
  %v1416 = vld [vmem:[%s1387 + $0xe0] sm:$0xff]
  %v1417 = vld [vmem:[%s1387 + $0xe8] sm:$0xff]
  %v1418 = vld [vmem:[%s1387 + $0xf0] sm:$0xff]
  %v1419 = vld [vmem:[%s1387 + $0xf8] sm:$0xff]
  %v1420 = vld [vmem:[%s1387 + $0x100] sm:$0xff]
  %v1421 = vld [vmem:[%s1387 + $0x108] sm:$0xff]
  %v1422 = vld [vmem:[%s1387 + $0x110] sm:$0xff]
  %v1423 = vld [vmem:[%s1387 + $0x118] sm:$0xff]
  %v1424 = vld [vmem:[%s1387 + $0x120] sm:$0xff]
  %v1425 = vld [vmem:[%s1387 + $0x128] sm:$0xff]
  %v1426 = vld [vmem:[%s1387 + $0x130] sm:$0xff]
  %v1427 = vld [vmem:[%s1387 + $0x138] sm:$0xff]
  %v1428 = vld [vmem:[%s1387 + $0x140] sm:$0xff]
  %v1429 = vld [vmem:[%s1387 + $0x148] sm:$0xff]
  %v1430 = vld [vmem:[%s1387 + $0x150] sm:$0xff]
  %v1431 = vld [vmem:[%s1387 + $0x158] sm:$0xff]
  %v1432 = vld [vmem:[%s1387 + $0x160] sm:$0xff]
  %v1433 = vld [vmem:[%s1387 + $0x168] sm:$0xff]
  %v1434 = vld [vmem:[%s1387 + $0x170] sm:$0xff]
  %v1435 = vld [vmem:[%s1387 + $0x178] sm:$0xff]
  %v1436 = vld [vmem:[%s1387 + $0x180] sm:$0xff]
  %v1437 = vld [vmem:[%s1387 + $0x188] sm:$0xff]
  %v1438 = vld [vmem:[%s1387 + $0x190] sm:$0xff]
  %v1439 = vld [vmem:[%s1387 + $0x198] sm:$0xff]
  %v1440 = vld [vmem:[%s1387 + $0x1a0] sm:$0xff]
  %v1441 = vld [vmem:[%s1387 + $0x1a8] sm:$0xff]
  %v1442 = vld [vmem:[%s1387 + $0x1b0] sm:$0xff]
  %v1443 = vld [vmem:[%s1387 + $0x1b8] sm:$0xff]
  %v1444 = vld [vmem:[%s1387 + $0x1c0] sm:$0xff]
  %v1445 = vld [vmem:[%s1387 + $0x1c8] sm:$0xff]
  %v1446 = vld [vmem:[%s1387 + $0x1d0] sm:$0xff]
  %v1447 = vld [vmem:[%s1387 + $0x1d8] sm:$0xff]
  %v1448 = vld [vmem:[%s1387 + $0x1e0] sm:$0xff]
  %v1449 = vld [vmem:[%s1387 + $0x1e8] sm:$0xff]
  %v1450 = vld [vmem:[%s1387 + $0x1f0] sm:$0xff]
  %v1451 = vld [vmem:[%s1387 + $0x1f8] sm:$0xff]
  %v1453 = vsel %vm150, %v1385, 0
  %v1456 = vsel %vm150, %v1386, 0
  %1458 = vmatpush.msra.mxu0 0.0
  %1459 = vmatpush.msra.mxu0 0.0
  %1460 = vmatpush.msra.mxu0 0.0
  %1461 = vmatpush.msra.mxu0 0.0
  %1462 = vmatpush.msra.mxu0 0.0
  %1463 = vmatpush.msra.mxu0 0.0
  %1464 = vmatpush.msra.mxu0 0.0
  %1465 = vmatpush.msra.mxu0 0.0
  %1466 = vmatpush.msra.mxu0 0.0
  %1467 = vmatpush.msra.mxu0 0.0
  %1468 = vmatpush.msra.mxu0 0.0
  %1469 = vmatpush.msra.mxu0 0.0
  %1470 = vmatpush.msra.mxu0 %v1391
  %1471 = vmatpush.msra.mxu0 %v1390
  %1472 = vmatpush.msra.mxu0 %v1389
  %1473 = vmatpush.msra.mxu0 %v1388
  %1474 = vmatmul.f32.gmra.mxu0 %v1453
  %v1475 = vpop.f32.mrf.mxu0
  %v1476 = vadd.f32 0.0, %v1475
  %1477 = vmatmul.f32.gmra.mxu0 %v1456
  %v1478 = vpop.f32.mrf.mxu0
  %v1479 = vadd.f32 0.0, %v1478
  %1480 = vdwg.mxu0
  %1481 = vmatpush.msra.mxu0 0.0
  %1482 = vmatpush.msra.mxu0 0.0
  %1483 = vmatpush.msra.mxu0 0.0
  %1484 = vmatpush.msra.mxu0 0.0
  %1485 = vmatpush.msra.mxu0 0.0
  %1486 = vmatpush.msra.mxu0 0.0
  %1487 = vmatpush.msra.mxu0 0.0
  %1488 = vmatpush.msra.mxu0 0.0
  %1489 = vmatpush.msra.mxu0 0.0
  %1490 = vmatpush.msra.mxu0 0.0
  %1491 = vmatpush.msra.mxu0 0.0
  %1492 = vmatpush.msra.mxu0 0.0
  %1493 = vmatpush.msra.mxu0 %v1395
  %1494 = vmatpush.msra.mxu0 %v1394
  %1495 = vmatpush.msra.mxu0 %v1393
  %1496 = vmatpush.msra.mxu0 %v1392
  %1497 = vmatmul.f32.gmra.mxu0 %v1453
  %v1498 = vpop.f32.mrf.mxu0
  %v1499 = vadd.f32 0.0, %v1498
  %1500 = vmatmul.f32.gmra.mxu0 %v1456
  %v1501 = vpop.f32.mrf.mxu0
  %v1502 = vadd.f32 0.0, %v1501
  %1503 = vdwg.mxu0
  %1504 = vmatpush.msra.mxu0 0.0
  %1505 = vmatpush.msra.mxu0 0.0
  %1506 = vmatpush.msra.mxu0 0.0
  %1507 = vmatpush.msra.mxu0 0.0
  %1508 = vmatpush.msra.mxu0 0.0
  %1509 = vmatpush.msra.mxu0 0.0
  %1510 = vmatpush.msra.mxu0 0.0
  %1511 = vmatpush.msra.mxu0 0.0
  %1512 = vmatpush.msra.mxu0 0.0
  %1513 = vmatpush.msra.mxu0 0.0
  %1514 = vmatpush.msra.mxu0 0.0
  %1515 = vmatpush.msra.mxu0 0.0
  %1516 = vmatpush.msra.mxu0 %v1399
  %1517 = vmatpush.msra.mxu0 %v1398
  %1518 = vmatpush.msra.mxu0 %v1397
  %1519 = vmatpush.msra.mxu0 %v1396
  %1520 = vmatmul.f32.gmra.mxu0 %v1453
  %v1521 = vpop.f32.mrf.mxu0
  %v1522 = vadd.f32 0.0, %v1521
  %1523 = vmatmul.f32.gmra.mxu0 %v1456
  %v1524 = vpop.f32.mrf.mxu0
  %v1525 = vadd.f32 0.0, %v1524
  %1526 = vdwg.mxu0
  %1527 = vmatpush.msra.mxu0 0.0
  %1528 = vmatpush.msra.mxu0 0.0
  %1529 = vmatpush.msra.mxu0 0.0
  %1530 = vmatpush.msra.mxu0 0.0
  %1531 = vmatpush.msra.mxu0 0.0
  %1532 = vmatpush.msra.mxu0 0.0
  %1533 = vmatpush.msra.mxu0 0.0
  %1534 = vmatpush.msra.mxu0 0.0
  %1535 = vmatpush.msra.mxu0 0.0
  %1536 = vmatpush.msra.mxu0 0.0
  %1537 = vmatpush.msra.mxu0 0.0
  %1538 = vmatpush.msra.mxu0 0.0
  %1539 = vmatpush.msra.mxu0 %v1403
  %1540 = vmatpush.msra.mxu0 %v1402
  %1541 = vmatpush.msra.mxu0 %v1401
  %1542 = vmatpush.msra.mxu0 %v1400
  %1543 = vmatmul.f32.gmra.mxu0 %v1453
  %v1544 = vpop.f32.mrf.mxu0
  %v1545 = vadd.f32 0.0, %v1544
  %1546 = vmatmul.f32.gmra.mxu0 %v1456
  %v1547 = vpop.f32.mrf.mxu0
  %v1548 = vadd.f32 0.0, %v1547
  %1549 = vdwg.mxu0
  %1550 = vmatpush.msra.mxu0 0.0
  %1551 = vmatpush.msra.mxu0 0.0
  %1552 = vmatpush.msra.mxu0 0.0
  %1553 = vmatpush.msra.mxu0 0.0
  %1554 = vmatpush.msra.mxu0 0.0
  %1555 = vmatpush.msra.mxu0 0.0
  %1556 = vmatpush.msra.mxu0 0.0
  %1557 = vmatpush.msra.mxu0 0.0
  %1558 = vmatpush.msra.mxu0 0.0
  %1559 = vmatpush.msra.mxu0 0.0
  %1560 = vmatpush.msra.mxu0 0.0
  %1561 = vmatpush.msra.mxu0 0.0
  %1562 = vmatpush.msra.mxu0 %v1407
  %1563 = vmatpush.msra.mxu0 %v1406
  %1564 = vmatpush.msra.mxu0 %v1405
  %1565 = vmatpush.msra.mxu0 %v1404
  %1566 = vmatmul.f32.gmra.mxu0 %v1453
  %v1567 = vpop.f32.mrf.mxu0
  %v1568 = vadd.f32 0.0, %v1567
  %1569 = vmatmul.f32.gmra.mxu0 %v1456
  %v1570 = vpop.f32.mrf.mxu0
  %v1571 = vadd.f32 0.0, %v1570
  %1572 = vdwg.mxu0
  %1573 = vmatpush.msra.mxu0 0.0
  %1574 = vmatpush.msra.mxu0 0.0
  %1575 = vmatpush.msra.mxu0 0.0
  %1576 = vmatpush.msra.mxu0 0.0
  %1577 = vmatpush.msra.mxu0 0.0
  %1578 = vmatpush.msra.mxu0 0.0
  %1579 = vmatpush.msra.mxu0 0.0
  %1580 = vmatpush.msra.mxu0 0.0
  %1581 = vmatpush.msra.mxu0 0.0
  %1582 = vmatpush.msra.mxu0 0.0
  %1583 = vmatpush.msra.mxu0 0.0
  %1584 = vmatpush.msra.mxu0 0.0
  %1585 = vmatpush.msra.mxu0 %v1411
  %1586 = vmatpush.msra.mxu0 %v1410
  %1587 = vmatpush.msra.mxu0 %v1409
  %1588 = vmatpush.msra.mxu0 %v1408
  %1589 = vmatmul.f32.gmra.mxu0 %v1453
  %v1590 = vpop.f32.mrf.mxu0
  %v1591 = vadd.f32 0.0, %v1590
  %1592 = vmatmul.f32.gmra.mxu0 %v1456
  %v1593 = vpop.f32.mrf.mxu0
  %v1594 = vadd.f32 0.0, %v1593
  %1595 = vdwg.mxu0
  %1596 = vmatpush.msra.mxu0 0.0
  %1597 = vmatpush.msra.mxu0 0.0
  %1598 = vmatpush.msra.mxu0 0.0
  %1599 = vmatpush.msra.mxu0 0.0
  %1600 = vmatpush.msra.mxu0 0.0
  %1601 = vmatpush.msra.mxu0 0.0
  %1602 = vmatpush.msra.mxu0 0.0
  %1603 = vmatpush.msra.mxu0 0.0
  %1604 = vmatpush.msra.mxu0 0.0
  %1605 = vmatpush.msra.mxu0 0.0
  %1606 = vmatpush.msra.mxu0 0.0
  %1607 = vmatpush.msra.mxu0 0.0
  %1608 = vmatpush.msra.mxu0 %v1415
  %1609 = vmatpush.msra.mxu0 %v1414
  %1610 = vmatpush.msra.mxu0 %v1413
  %1611 = vmatpush.msra.mxu0 %v1412
  %1612 = vmatmul.f32.gmra.mxu0 %v1453
  %v1613 = vpop.f32.mrf.mxu0
  %v1614 = vadd.f32 0.0, %v1613
  %1615 = vmatmul.f32.gmra.mxu0 %v1456
  %v1616 = vpop.f32.mrf.mxu0
  %v1617 = vadd.f32 0.0, %v1616
  %1618 = vdwg.mxu0
  %1619 = vmatpush.msra.mxu0 0.0
  %1620 = vmatpush.msra.mxu0 0.0
  %1621 = vmatpush.msra.mxu0 0.0
  %1622 = vmatpush.msra.mxu0 0.0
  %1623 = vmatpush.msra.mxu0 0.0
  %1624 = vmatpush.msra.mxu0 0.0
  %1625 = vmatpush.msra.mxu0 0.0
  %1626 = vmatpush.msra.mxu0 0.0
  %1627 = vmatpush.msra.mxu0 0.0
  %1628 = vmatpush.msra.mxu0 0.0
  %1629 = vmatpush.msra.mxu0 0.0
  %1630 = vmatpush.msra.mxu0 0.0
  %1631 = vmatpush.msra.mxu0 %v1419
  %1632 = vmatpush.msra.mxu0 %v1418
  %1633 = vmatpush.msra.mxu0 %v1417
  %1634 = vmatpush.msra.mxu0 %v1416
  %1635 = vmatmul.f32.gmra.mxu0 %v1453
  %v1636 = vpop.f32.mrf.mxu0
  %v1637 = vadd.f32 0.0, %v1636
  %1638 = vmatmul.f32.gmra.mxu0 %v1456
  %v1639 = vpop.f32.mrf.mxu0
  %v1640 = vadd.f32 0.0, %v1639
  %1641 = vdwg.mxu0
  %1642 = vmatpush.msra.mxu0 0.0
  %1643 = vmatpush.msra.mxu0 0.0
  %1644 = vmatpush.msra.mxu0 0.0
  %1645 = vmatpush.msra.mxu0 0.0
  %1646 = vmatpush.msra.mxu0 0.0
  %1647 = vmatpush.msra.mxu0 0.0
  %1648 = vmatpush.msra.mxu0 0.0
  %1649 = vmatpush.msra.mxu0 0.0
  %1650 = vmatpush.msra.mxu0 0.0
  %1651 = vmatpush.msra.mxu0 0.0
  %1652 = vmatpush.msra.mxu0 0.0
  %1653 = vmatpush.msra.mxu0 0.0
  %1654 = vmatpush.msra.mxu0 %v1423
  %1655 = vmatpush.msra.mxu0 %v1422
  %1656 = vmatpush.msra.mxu0 %v1421
  %1657 = vmatpush.msra.mxu0 %v1420
  %1658 = vmatmul.f32.gmra.mxu0 %v1453
  %v1659 = vpop.f32.mrf.mxu0
  %v1660 = vadd.f32 0.0, %v1659
  %1661 = vmatmul.f32.gmra.mxu0 %v1456
  %v1662 = vpop.f32.mrf.mxu0
  %v1663 = vadd.f32 0.0, %v1662
  %1664 = vdwg.mxu0
  %1665 = vmatpush.msra.mxu0 0.0
  %1666 = vmatpush.msra.mxu0 0.0
  %1667 = vmatpush.msra.mxu0 0.0
  %1668 = vmatpush.msra.mxu0 0.0
  %1669 = vmatpush.msra.mxu0 0.0
  %1670 = vmatpush.msra.mxu0 0.0
  %1671 = vmatpush.msra.mxu0 0.0
  %1672 = vmatpush.msra.mxu0 0.0
  %1673 = vmatpush.msra.mxu0 0.0
  %1674 = vmatpush.msra.mxu0 0.0
  %1675 = vmatpush.msra.mxu0 0.0
  %1676 = vmatpush.msra.mxu0 0.0
  %1677 = vmatpush.msra.mxu0 %v1427
  %1678 = vmatpush.msra.mxu0 %v1426
  %1679 = vmatpush.msra.mxu0 %v1425
  %1680 = vmatpush.msra.mxu0 %v1424
  %1681 = vmatmul.f32.gmra.mxu0 %v1453
  %v1682 = vpop.f32.mrf.mxu0
  %v1683 = vadd.f32 0.0, %v1682
  %1684 = vmatmul.f32.gmra.mxu0 %v1456
  %v1685 = vpop.f32.mrf.mxu0
  %v1686 = vadd.f32 0.0, %v1685
  %1687 = vdwg.mxu0
  %1688 = vmatpush.msra.mxu0 0.0
  %1689 = vmatpush.msra.mxu0 0.0
  %1690 = vmatpush.msra.mxu0 0.0
  %1691 = vmatpush.msra.mxu0 0.0
  %1692 = vmatpush.msra.mxu0 0.0
  %1693 = vmatpush.msra.mxu0 0.0
  %1694 = vmatpush.msra.mxu0 0.0
  %1695 = vmatpush.msra.mxu0 0.0
  %1696 = vmatpush.msra.mxu0 0.0
  %1697 = vmatpush.msra.mxu0 0.0
  %1698 = vmatpush.msra.mxu0 0.0
  %1699 = vmatpush.msra.mxu0 0.0
  %1700 = vmatpush.msra.mxu0 %v1431
  %1701 = vmatpush.msra.mxu0 %v1430
  %1702 = vmatpush.msra.mxu0 %v1429
  %1703 = vmatpush.msra.mxu0 %v1428
  %1704 = vmatmul.f32.gmra.mxu0 %v1453
  %v1705 = vpop.f32.mrf.mxu0
  %v1706 = vadd.f32 0.0, %v1705
  %1707 = vmatmul.f32.gmra.mxu0 %v1456
  %v1708 = vpop.f32.mrf.mxu0
  %v1709 = vadd.f32 0.0, %v1708
  %1710 = vdwg.mxu0
  %1711 = vmatpush.msra.mxu0 0.0
  %1712 = vmatpush.msra.mxu0 0.0
  %1713 = vmatpush.msra.mxu0 0.0
  %1714 = vmatpush.msra.mxu0 0.0
  %1715 = vmatpush.msra.mxu0 0.0
  %1716 = vmatpush.msra.mxu0 0.0
  %1717 = vmatpush.msra.mxu0 0.0
  %1718 = vmatpush.msra.mxu0 0.0
  %1719 = vmatpush.msra.mxu0 0.0
  %1720 = vmatpush.msra.mxu0 0.0
  %1721 = vmatpush.msra.mxu0 0.0
  %1722 = vmatpush.msra.mxu0 0.0
  %1723 = vmatpush.msra.mxu0 %v1435
  %1724 = vmatpush.msra.mxu0 %v1434
  %1725 = vmatpush.msra.mxu0 %v1433
  %1726 = vmatpush.msra.mxu0 %v1432
  %1727 = vmatmul.f32.gmra.mxu0 %v1453
  %v1728 = vpop.f32.mrf.mxu0
  %v1729 = vadd.f32 0.0, %v1728
  %1730 = vmatmul.f32.gmra.mxu0 %v1456
  %v1731 = vpop.f32.mrf.mxu0
  %v1732 = vadd.f32 0.0, %v1731
  %1733 = vdwg.mxu0
  %v1735 = vsel %vm76, %v1476, 0
  %v1738 = vsel %vm76, %v1479, 0
  %v1741 = vsel %vm76, %v1568, 0
  %v1744 = vsel %vm76, %v1571, 0
  %1746 = vmatpush.xpose.msra.mxu0 0.0
  %1747 = vmatpush.xpose.msra.mxu0 0.0
  %1748 = vmatpush.xpose.msra.mxu0 0.0
  %1749 = vmatpush.xpose.msra.mxu0 0.0
  %1750 = vmatpush.xpose.msra.mxu0 0.0
  %1751 = vmatpush.xpose.msra.mxu0 0.0
  %1752 = vmatpush.xpose.msra.mxu0 0.0
  %1753 = vmatpush.xpose.msra.mxu0 0.0
  %1754 = vmatpush.xpose.msra.mxu0 0.0
  %1755 = vmatpush.xpose.msra.mxu0 0.0
  %1756 = vmatpush.xpose.msra.mxu0 0.0
  %1757 = vmatpush.xpose.msra.mxu0 0.0
  %1758 = vmatpush.xpose.msra.mxu0 0.0
  %1759 = vmatpush.xpose.msra.mxu0 0.0
  %1760 = vmatpush.xpose.msra.mxu0 %v1744
  %1761 = vmatpush.xpose.msra.mxu0 %v1741
  %1762 = vmatmul.f32.gmra.mxu0 %v1735
  %v1763 = vpop.f32.mrf.mxu0
  %v1764 = vadd.f32 0.0, %v1763
  %1765 = vmatmul.f32.gmra.mxu0 %v1738
  %v1766 = vpop.f32.mrf.mxu0
  %v1767 = vadd.f32 0.0, %v1766
  %1768 = vdwg.mxu0
  %v1770 = vsel %vm76, %v1499, 0
  %v1773 = vsel %vm76, %v1502, 0
  %v1776 = vsel %vm76, %v1591, 0
  %v1779 = vsel %vm76, %v1594, 0
  %1781 = vmatpush.xpose.msra.mxu0 0.0
  %1782 = vmatpush.xpose.msra.mxu0 0.0
  %1783 = vmatpush.xpose.msra.mxu0 0.0
  %1784 = vmatpush.xpose.msra.mxu0 0.0
  %1785 = vmatpush.xpose.msra.mxu0 0.0
  %1786 = vmatpush.xpose.msra.mxu0 0.0
  %1787 = vmatpush.xpose.msra.mxu0 0.0
  %1788 = vmatpush.xpose.msra.mxu0 0.0
  %1789 = vmatpush.xpose.msra.mxu0 0.0
  %1790 = vmatpush.xpose.msra.mxu0 0.0
  %1791 = vmatpush.xpose.msra.mxu0 0.0
  %1792 = vmatpush.xpose.msra.mxu0 0.0
  %1793 = vmatpush.xpose.msra.mxu0 0.0
  %1794 = vmatpush.xpose.msra.mxu0 0.0
  %1795 = vmatpush.xpose.msra.mxu0 %v1779
  %1796 = vmatpush.xpose.msra.mxu0 %v1776
  %1797 = vmatmul.f32.gmra.mxu0 %v1770
  %v1798 = vpop.f32.mrf.mxu0
  %v1799 = vadd.f32 0.0, %v1798
  %1800 = vmatmul.f32.gmra.mxu0 %v1773
  %v1801 = vpop.f32.mrf.mxu0
  %v1802 = vadd.f32 0.0, %v1801
  %1803 = vdwg.mxu0
  %v1805 = vsel %vm76, %v1522, 0
  %v1808 = vsel %vm76, %v1525, 0
  %v1811 = vsel %vm76, %v1614, 0
  %v1814 = vsel %vm76, %v1617, 0
  %1816 = vmatpush.xpose.msra.mxu0 0.0
  %1817 = vmatpush.xpose.msra.mxu0 0.0
  %1818 = vmatpush.xpose.msra.mxu0 0.0
  %1819 = vmatpush.xpose.msra.mxu0 0.0
  %1820 = vmatpush.xpose.msra.mxu0 0.0
  %1821 = vmatpush.xpose.msra.mxu0 0.0
  %1822 = vmatpush.xpose.msra.mxu0 0.0
  %1823 = vmatpush.xpose.msra.mxu0 0.0
  %1824 = vmatpush.xpose.msra.mxu0 0.0
  %1825 = vmatpush.xpose.msra.mxu0 0.0
  %1826 = vmatpush.xpose.msra.mxu0 0.0
  %1827 = vmatpush.xpose.msra.mxu0 0.0
  %1828 = vmatpush.xpose.msra.mxu0 0.0
  %1829 = vmatpush.xpose.msra.mxu0 0.0
  %1830 = vmatpush.xpose.msra.mxu0 %v1814
  %1831 = vmatpush.xpose.msra.mxu0 %v1811
  %1832 = vmatmul.f32.gmra.mxu0 %v1805
  %v1833 = vpop.f32.mrf.mxu0
  %v1834 = vadd.f32 0.0, %v1833
  %1835 = vmatmul.f32.gmra.mxu0 %v1808
  %v1836 = vpop.f32.mrf.mxu0
  %v1837 = vadd.f32 0.0, %v1836
  %1838 = vdwg.mxu0
  %v1840 = vsel %vm76, %v1545, 0
  %v1843 = vsel %vm76, %v1548, 0
  %v1846 = vsel %vm76, %v1637, 0
  %v1849 = vsel %vm76, %v1640, 0
  %1851 = vmatpush.xpose.msra.mxu0 0.0
  %1852 = vmatpush.xpose.msra.mxu0 0.0
  %1853 = vmatpush.xpose.msra.mxu0 0.0
  %1854 = vmatpush.xpose.msra.mxu0 0.0
  %1855 = vmatpush.xpose.msra.mxu0 0.0
  %1856 = vmatpush.xpose.msra.mxu0 0.0
  %1857 = vmatpush.xpose.msra.mxu0 0.0
  %1858 = vmatpush.xpose.msra.mxu0 0.0
  %1859 = vmatpush.xpose.msra.mxu0 0.0
  %1860 = vmatpush.xpose.msra.mxu0 0.0
  %1861 = vmatpush.xpose.msra.mxu0 0.0
  %1862 = vmatpush.xpose.msra.mxu0 0.0
  %1863 = vmatpush.xpose.msra.mxu0 0.0
  %1864 = vmatpush.xpose.msra.mxu0 0.0
  %1865 = vmatpush.xpose.msra.mxu0 %v1849
  %1866 = vmatpush.xpose.msra.mxu0 %v1846
  %1867 = vmatmul.f32.gmra.mxu0 %v1840
  %v1868 = vpop.f32.mrf.mxu0
  %v1869 = vadd.f32 0.0, %v1868
  %1870 = vmatmul.f32.gmra.mxu0 %v1843
  %v1871 = vpop.f32.mrf.mxu0
  %v1872 = vadd.f32 0.0, %v1871
  %1873 = vdwg.mxu0
  %v1874 = vmul.f32 %v1764, 0.35355338
  %v1875 = vmul.f32 %v1767, 0.35355338
  %v1876 = vmul.f32 %v1799, 0.35355338
  %v1877 = vmul.f32 %v1802, 0.35355338
  %v1878 = vmul.f32 %v1834, 0.35355338
  %v1879 = vmul.f32 %v1837, 0.35355338
  %v1880 = vmul.f32 %v1869, 0.35355338
  %v1881 = vmul.f32 %v1872, 0.35355338
  %v1882 = vadd.f32 %v1874, %v751
  %v1883 = vadd.f32 %v1875, %v753
  %v1884 = vadd.f32 %v1876, %v751
  %v1885 = vadd.f32 %v1877, %v753
  %v1886 = vadd.f32 %v1878, %v751
  %v1887 = vadd.f32 %v1879, %v753
  %v1888 = vadd.f32 %v1880, %v751
  %v1889 = vadd.f32 %v1881, %v753
  %v1890 = vsel %vm104, %v1882, -inf
  %1891 = vmax.xlane.f32.xlu0 %v1890
  %v1892 = vpop.xlane.xlu0 %1891
  %v1893 = vsel %vm104, %v1883, -inf
  %1894 = vmax.xlane.f32.xlu0 %v1893
  %v1895 = vpop.xlane.xlu0 %1894
  %v1896 = vsel %vm104, %v1884, -inf
  %1897 = vmax.xlane.f32.xlu0 %v1896
  %v1898 = vpop.xlane.xlu0 %1897
  %v1899 = vsel %vm104, %v1885, -inf
  %1900 = vmax.xlane.f32.xlu0 %v1899
  %v1901 = vpop.xlane.xlu0 %1900
  %v1902 = vsel %vm104, %v1886, -inf
  %1903 = vmax.xlane.f32.xlu0 %v1902
  %v1904 = vpop.xlane.xlu0 %1903
  %v1905 = vsel %vm104, %v1887, -inf
  %1906 = vmax.xlane.f32.xlu0 %v1905
  %v1907 = vpop.xlane.xlu0 %1906
  %v1908 = vsel %vm104, %v1888, -inf
  %1909 = vmax.xlane.f32.xlu0 %v1908
  %v1910 = vpop.xlane.xlu0 %1909
  %v1911 = vsel %vm104, %v1889, -inf
  %1912 = vmax.xlane.f32.xlu0 %v1911
  %v1913 = vpop.xlane.xlu0 %1912
  %v1914 = vsub.f32 %v1882, %v1892
  %v1915 = vsub.f32 %v1883, %v1895
  %v1916 = vsub.f32 %v1884, %v1898
  %v1917 = vsub.f32 %v1885, %v1901
  %v1918 = vsub.f32 %v1886, %v1904
  %v1919 = vsub.f32 %v1887, %v1907
  %v1920 = vsub.f32 %v1888, %v1910
  %v1921 = vsub.f32 %v1889, %v1913
  %v1922 = vmul.f32 %v1914, 1.442695
  %v1923 = vpow.pop %v1922
  %v1924 = vmul.f32 %v1915, 1.442695
  %v1925 = vpow.pop %v1924
  %v1926 = vmul.f32 %v1916, 1.442695
  %v1927 = vpow.pop %v1926
  %v1928 = vmul.f32 %v1917, 1.442695
  %v1929 = vpow.pop %v1928
  %v1930 = vmul.f32 %v1918, 1.442695
  %v1931 = vpow.pop %v1930
  %v1932 = vmul.f32 %v1919, 1.442695
  %v1933 = vpow.pop %v1932
  %v1934 = vmul.f32 %v1920, 1.442695
  %v1935 = vpow.pop %v1934
  %v1936 = vmul.f32 %v1921, 1.442695
  %v1937 = vpow.pop %v1936
  %v1938 = vsel %vm104, %v1923, 0.0
  %1939 = vadd.xlane.f32.xlu0 %v1938
  %v1940 = vpop.xlane.xlu0 %1939
  %v1941 = vsel %vm104, %v1925, 0.0
  %1942 = vadd.xlane.f32.xlu0 %v1941
  %v1943 = vpop.xlane.xlu0 %1942
  %v1944 = vsel %vm104, %v1927, 0.0
  %1945 = vadd.xlane.f32.xlu0 %v1944
  %v1946 = vpop.xlane.xlu0 %1945
  %v1947 = vsel %vm104, %v1929, 0.0
  %1948 = vadd.xlane.f32.xlu0 %v1947
  %v1949 = vpop.xlane.xlu0 %1948
  %v1950 = vsel %vm104, %v1931, 0.0
  %1951 = vadd.xlane.f32.xlu0 %v1950
  %v1952 = vpop.xlane.xlu0 %1951
  %v1953 = vsel %vm104, %v1933, 0.0
  %1954 = vadd.xlane.f32.xlu0 %v1953
  %v1955 = vpop.xlane.xlu0 %1954
  %v1956 = vsel %vm104, %v1935, 0.0
  %1957 = vadd.xlane.f32.xlu0 %v1956
  %v1958 = vpop.xlane.xlu0 %1957
  %v1959 = vsel %vm104, %v1937, 0.0
  %1960 = vadd.xlane.f32.xlu0 %v1959
  %v1961 = vpop.xlane.xlu0 %1960
  %v1962 = vrcp.pop %v1940
  %v1963 = vrcp.pop %v1943
  %v1964 = vrcp.pop %v1946
  %v1965 = vrcp.pop %v1949
  %v1966 = vrcp.pop %v1952
  %v1967 = vrcp.pop %v1955
  %v1968 = vrcp.pop %v1958
  %v1969 = vrcp.pop %v1961
  %v1970 = vmul.f32 %v1923, %v1962
  %v1971 = vmul.f32 %v1925, %v1963
  %v1972 = vmul.f32 %v1927, %v1964
  %v1973 = vmul.f32 %v1929, %v1965
  %v1974 = vmul.f32 %v1931, %v1966
  %v1975 = vmul.f32 %v1933, %v1967
  %v1976 = vmul.f32 %v1935, %v1968
  %v1977 = vmul.f32 %v1937, %v1969
  %v1979 = vsel %vm104, %v1970, 0
  %v1982 = vsel %vm104, %v1971, 0
  %1984 = vmatpush.msra.mxu0 0.0
  %1985 = vmatpush.msra.mxu0 0.0
  %1986 = vmatpush.msra.mxu0 0.0
  %1987 = vmatpush.msra.mxu0 0.0
  %1988 = vmatpush.msra.mxu0 0.0
  %1989 = vmatpush.msra.mxu0 0.0
  %1990 = vmatpush.msra.mxu0 0.0
  %1991 = vmatpush.msra.mxu0 0.0
  %1992 = vmatpush.msra.mxu0 0.0
  %1993 = vmatpush.msra.mxu0 0.0
  %1994 = vmatpush.msra.mxu0 0.0
  %1995 = vmatpush.msra.mxu0 0.0
  %1996 = vmatpush.msra.mxu0 0.0
  %1997 = vmatpush.msra.mxu0 0.0
  %1998 = vmatpush.msra.mxu0 %v1663
  %1999 = vmatpush.msra.mxu0 %v1660
  %2000 = vmatmul.f32.gmra.mxu0 %v1979
  %v2001 = vpop.f32.mrf.mxu0
  %v2002 = vadd.f32 0.0, %v2001
  %2003 = vmatmul.f32.gmra.mxu0 %v1982
  %v2004 = vpop.f32.mrf.mxu0
  %v2005 = vadd.f32 0.0, %v2004
  %2006 = vdwg.mxu0
  %v2008 = vsel %vm104, %v1972, 0
  %v2011 = vsel %vm104, %v1973, 0
  %2013 = vmatpush.msra.mxu0 0.0
  %2014 = vmatpush.msra.mxu0 0.0
  %2015 = vmatpush.msra.mxu0 0.0
  %2016 = vmatpush.msra.mxu0 0.0
  %2017 = vmatpush.msra.mxu0 0.0
  %2018 = vmatpush.msra.mxu0 0.0
  %2019 = vmatpush.msra.mxu0 0.0
  %2020 = vmatpush.msra.mxu0 0.0
  %2021 = vmatpush.msra.mxu0 0.0
  %2022 = vmatpush.msra.mxu0 0.0
  %2023 = vmatpush.msra.mxu0 0.0
  %2024 = vmatpush.msra.mxu0 0.0
  %2025 = vmatpush.msra.mxu0 0.0
  %2026 = vmatpush.msra.mxu0 0.0
  %2027 = vmatpush.msra.mxu0 %v1686
  %2028 = vmatpush.msra.mxu0 %v1683
  %2029 = vmatmul.f32.gmra.mxu0 %v2008
  %v2030 = vpop.f32.mrf.mxu0
  %v2031 = vadd.f32 0.0, %v2030
  %2032 = vmatmul.f32.gmra.mxu0 %v2011
  %v2033 = vpop.f32.mrf.mxu0
  %v2034 = vadd.f32 0.0, %v2033
  %2035 = vdwg.mxu0
  %v2037 = vsel %vm104, %v1974, 0
  %v2040 = vsel %vm104, %v1975, 0
  %2042 = vmatpush.msra.mxu0 0.0
  %2043 = vmatpush.msra.mxu0 0.0
  %2044 = vmatpush.msra.mxu0 0.0
  %2045 = vmatpush.msra.mxu0 0.0
  %2046 = vmatpush.msra.mxu0 0.0
  %2047 = vmatpush.msra.mxu0 0.0
  %2048 = vmatpush.msra.mxu0 0.0
  %2049 = vmatpush.msra.mxu0 0.0
  %2050 = vmatpush.msra.mxu0 0.0
  %2051 = vmatpush.msra.mxu0 0.0
  %2052 = vmatpush.msra.mxu0 0.0
  %2053 = vmatpush.msra.mxu0 0.0
  %2054 = vmatpush.msra.mxu0 0.0
  %2055 = vmatpush.msra.mxu0 0.0
  %2056 = vmatpush.msra.mxu0 %v1709
  %2057 = vmatpush.msra.mxu0 %v1706
  %2058 = vmatmul.f32.gmra.mxu0 %v2037
  %v2059 = vpop.f32.mrf.mxu0
  %v2060 = vadd.f32 0.0, %v2059
  %2061 = vmatmul.f32.gmra.mxu0 %v2040
  %v2062 = vpop.f32.mrf.mxu0
  %v2063 = vadd.f32 0.0, %v2062
  %2064 = vdwg.mxu0
  %v2066 = vsel %vm104, %v1976, 0
  %v2069 = vsel %vm104, %v1977, 0
  %2071 = vmatpush.msra.mxu0 0.0
  %2072 = vmatpush.msra.mxu0 0.0
  %2073 = vmatpush.msra.mxu0 0.0
  %2074 = vmatpush.msra.mxu0 0.0
  %2075 = vmatpush.msra.mxu0 0.0
  %2076 = vmatpush.msra.mxu0 0.0
  %2077 = vmatpush.msra.mxu0 0.0
  %2078 = vmatpush.msra.mxu0 0.0
  %2079 = vmatpush.msra.mxu0 0.0
  %2080 = vmatpush.msra.mxu0 0.0
  %2081 = vmatpush.msra.mxu0 0.0
  %2082 = vmatpush.msra.mxu0 0.0
  %2083 = vmatpush.msra.mxu0 0.0
  %2084 = vmatpush.msra.mxu0 0.0
  %2085 = vmatpush.msra.mxu0 %v1732
  %2086 = vmatpush.msra.mxu0 %v1729
  %2087 = vmatmul.f32.gmra.mxu0 %v2066
  %v2088 = vpop.f32.mrf.mxu0
  %v2089 = vadd.f32 0.0, %v2088
  %2090 = vmatmul.f32.gmra.mxu0 %v2069
  %v2091 = vpop.f32.mrf.mxu0
  %v2092 = vadd.f32 0.0, %v2091
  %2093 = vdwg.mxu0
  %v2095 = vsel %vm76, %v2002, 0
  %v2098 = vsel %vm76, %v2005, 0
  %v2101 = vsel %vm76, %v1436, 0
  %v2104 = vsel %vm76, %v1437, 0
  %v2107 = vsel %vm76, %v1438, 0
  %v2110 = vsel %vm76, %v1439, 0
  %2112 = vmatpush.xpose.msra.mxu0 0.0
  %2113 = vmatpush.xpose.msra.mxu0 0.0
  %2114 = vmatpush.xpose.msra.mxu0 0.0
  %2115 = vmatpush.xpose.msra.mxu0 0.0
  %2116 = vmatpush.xpose.msra.mxu0 0.0
  %2117 = vmatpush.xpose.msra.mxu0 0.0
  %2118 = vmatpush.xpose.msra.mxu0 0.0
  %2119 = vmatpush.xpose.msra.mxu0 0.0
  %2120 = vmatpush.xpose.msra.mxu0 0.0
  %2121 = vmatpush.xpose.msra.mxu0 0.0
  %2122 = vmatpush.xpose.msra.mxu0 0.0
  %2123 = vmatpush.xpose.msra.mxu0 0.0
  %2124 = vmatpush.xpose.msra.mxu0 %v2110
  %2125 = vmatpush.xpose.msra.mxu0 %v2107
  %2126 = vmatpush.xpose.msra.mxu0 %v2104
  %2127 = vmatpush.xpose.msra.mxu0 %v2101
  %2128 = vmatmul.f32.gmra.mxu0 %v2095
  %v2129 = vpop.f32.mrf.mxu0
  %v2130 = vadd.f32 0.0, %v2129
  %2131 = vmatmul.f32.gmra.mxu0 %v2098
  %v2132 = vpop.f32.mrf.mxu0
  %v2133 = vadd.f32 0.0, %v2132
  %2134 = vdwg.mxu0
  %v2136 = vsel %vm76, %v2031, 0
  %v2139 = vsel %vm76, %v2034, 0
  %v2142 = vsel %vm76, %v1440, 0
  %v2145 = vsel %vm76, %v1441, 0
  %v2148 = vsel %vm76, %v1442, 0
  %v2151 = vsel %vm76, %v1443, 0
  %2153 = vmatpush.xpose.msra.mxu0 0.0
  %2154 = vmatpush.xpose.msra.mxu0 0.0
  %2155 = vmatpush.xpose.msra.mxu0 0.0
  %2156 = vmatpush.xpose.msra.mxu0 0.0
  %2157 = vmatpush.xpose.msra.mxu0 0.0
  %2158 = vmatpush.xpose.msra.mxu0 0.0
  %2159 = vmatpush.xpose.msra.mxu0 0.0
  %2160 = vmatpush.xpose.msra.mxu0 0.0
  %2161 = vmatpush.xpose.msra.mxu0 0.0
  %2162 = vmatpush.xpose.msra.mxu0 0.0
  %2163 = vmatpush.xpose.msra.mxu0 0.0
  %2164 = vmatpush.xpose.msra.mxu0 0.0
  %2165 = vmatpush.xpose.msra.mxu0 %v2151
  %2166 = vmatpush.xpose.msra.mxu0 %v2148
  %2167 = vmatpush.xpose.msra.mxu0 %v2145
  %2168 = vmatpush.xpose.msra.mxu0 %v2142
  %2169 = vmatmul.f32.gmra.mxu0 %v2136
  %v2170 = vpop.f32.mrf.mxu0
  %v2171 = vadd.f32 0.0, %v2170
  %2172 = vmatmul.f32.gmra.mxu0 %v2139
  %v2173 = vpop.f32.mrf.mxu0
  %v2174 = vadd.f32 0.0, %v2173
  %2175 = vdwg.mxu0
  %v2177 = vsel %vm76, %v2060, 0
  %v2180 = vsel %vm76, %v2063, 0
  %v2183 = vsel %vm76, %v1444, 0
  %v2186 = vsel %vm76, %v1445, 0
  %v2189 = vsel %vm76, %v1446, 0
  %v2192 = vsel %vm76, %v1447, 0
  %2194 = vmatpush.xpose.msra.mxu0 0.0
  %2195 = vmatpush.xpose.msra.mxu0 0.0
  %2196 = vmatpush.xpose.msra.mxu0 0.0
  %2197 = vmatpush.xpose.msra.mxu0 0.0
  %2198 = vmatpush.xpose.msra.mxu0 0.0
  %2199 = vmatpush.xpose.msra.mxu0 0.0
  %2200 = vmatpush.xpose.msra.mxu0 0.0
  %2201 = vmatpush.xpose.msra.mxu0 0.0
  %2202 = vmatpush.xpose.msra.mxu0 0.0
  %2203 = vmatpush.xpose.msra.mxu0 0.0
  %2204 = vmatpush.xpose.msra.mxu0 0.0
  %2205 = vmatpush.xpose.msra.mxu0 0.0
  %2206 = vmatpush.xpose.msra.mxu0 %v2192
  %2207 = vmatpush.xpose.msra.mxu0 %v2189
  %2208 = vmatpush.xpose.msra.mxu0 %v2186
  %2209 = vmatpush.xpose.msra.mxu0 %v2183
  %2210 = vmatmul.f32.gmra.mxu0 %v2177
  %v2211 = vpop.f32.mrf.mxu0
  %v2212 = vadd.f32 0.0, %v2211
  %2213 = vmatmul.f32.gmra.mxu0 %v2180
  %v2214 = vpop.f32.mrf.mxu0
  %v2215 = vadd.f32 0.0, %v2214
  %2216 = vdwg.mxu0
  %v2218 = vsel %vm76, %v2089, 0
  %v2221 = vsel %vm76, %v2092, 0
  %v2224 = vsel %vm76, %v1448, 0
  %v2227 = vsel %vm76, %v1449, 0
  %v2230 = vsel %vm76, %v1450, 0
  %v2233 = vsel %vm76, %v1451, 0
  %2235 = vmatpush.xpose.msra.mxu0 0.0
  %2236 = vmatpush.xpose.msra.mxu0 0.0
  %2237 = vmatpush.xpose.msra.mxu0 0.0
  %2238 = vmatpush.xpose.msra.mxu0 0.0
  %2239 = vmatpush.xpose.msra.mxu0 0.0
  %2240 = vmatpush.xpose.msra.mxu0 0.0
  %2241 = vmatpush.xpose.msra.mxu0 0.0
  %2242 = vmatpush.xpose.msra.mxu0 0.0
  %2243 = vmatpush.xpose.msra.mxu0 0.0
  %2244 = vmatpush.xpose.msra.mxu0 0.0
  %2245 = vmatpush.xpose.msra.mxu0 0.0
  %2246 = vmatpush.xpose.msra.mxu0 0.0
  %2247 = vmatpush.xpose.msra.mxu0 %v2233
  %2248 = vmatpush.xpose.msra.mxu0 %v2230
  %2249 = vmatpush.xpose.msra.mxu0 %v2227
  %2250 = vmatpush.xpose.msra.mxu0 %v2224
  %2251 = vmatmul.f32.gmra.mxu0 %v2218
  %v2252 = vpop.f32.mrf.mxu0
  %v2253 = vadd.f32 0.0, %v2252
  %2254 = vmatmul.f32.gmra.mxu0 %v2221
  %v2255 = vpop.f32.mrf.mxu0
  %v2256 = vadd.f32 0.0, %v2255
  %2257 = vdwg.mxu0
  %v2258 = vsel %vm150, %v2130, 0.0
  %v2259 = vsel %vm150, %v2171, 0.0
  %v2260 = vadd.f32 %v2258, %v2259
  %v2261 = vsel %vm150, %v2212, 0.0
  %v2262 = vadd.f32 %v2260, %v2261
  %v2263 = vsel %vm150, %v2253, 0.0
  %v2264 = vadd.f32 %v2262, %v2263
  %v2265 = vsel %vm150, %v2133, 0.0
  %v2266 = vsel %vm150, %v2174, 0.0
  %v2267 = vadd.f32 %v2265, %v2266
  %v2268 = vsel %vm150, %v2215, 0.0
  %v2269 = vadd.f32 %v2267, %v2268
  %v2270 = vsel %vm150, %v2256, 0.0
  %v2271 = vadd.f32 %v2269, %v2270
  %v2272 = vadd.f32 %v1337, %v2264
  %v2273 = vadd.f32 %v1338, %v2271
  %v2274 = vld [vmem:[%s1 + $0xf] sm:$0x1]
  %v2275 = vsel %vm150, %v2272, 0.0
  %2276 = vadd.xlane.f32.xlu0 %v2275
  %v2277 = vpop.xlane.xlu0 %2276
  %v2278 = vsel %vm150, %v2273, 0.0
  %2279 = vadd.xlane.f32.xlu0 %v2278
  %v2280 = vpop.xlane.xlu0 %2279
  %v2281 = vmul.f32 %v2277, %v163
  %v2282 = vmul.f32 %v2280, %v163
  %v2283 = vsub.f32 %v2272, %v2281
  %v2284 = vsub.f32 %v2273, %v2282
  %v2285 = vmul.f32 %v2283, %v2283
  %v2286 = vmul.f32 %v2284, %v2284
  %v2287 = vsel %vm150, %v2285, 0.0
  %2288 = vadd.xlane.f32.xlu0 %v2287
  %v2289 = vpop.xlane.xlu0 %2288
  %v2290 = vsel %vm150, %v2286, 0.0
  %2291 = vadd.xlane.f32.xlu0 %v2290
  %v2292 = vpop.xlane.xlu0 %2291
  %v2293 = vmul.f32 %v2289, %v163
  %v2294 = vmul.f32 %v2292, %v163
  %v2295 = vadd.f32 %v2293, 1e-05
  %v2296 = vadd.f32 %v2294, 1e-05
  %v2297 = vrsqrt.pop %v2295
  %v2298 = vmul.f32 %v2297, %v2295
  %v2299 = vmul.f32 %v2298, %v2297
  %v2300 = vmul.f32 0.5, %v2299
  %v2301 = vsub.f32 1.5, %v2300
  %v2302 = vmul.f32 %v2297, %v2301
  %vm2303 = vweird.f32 %v2295
  %vm2304 = vweird.f32 %v2297
  %vm2305 = vmor %vm2303, %vm2304
  %v2306 = vsel %vm2305, %v2297, %v2302
  %v2307 = vrsqrt.pop %v2296
  %v2308 = vmul.f32 %v2307, %v2296
  %v2309 = vmul.f32 %v2308, %v2307
  %v2310 = vmul.f32 0.5, %v2309
  %v2311 = vsub.f32 1.5, %v2310
  %v2312 = vmul.f32 %v2307, %v2311
  %vm2313 = vweird.f32 %v2296
  %vm2314 = vweird.f32 %v2307
  %vm2315 = vmor %vm2313, %vm2314
  %v2316 = vsel %vm2315, %v2307, %v2312
  %v2317 = vmul.f32 %v2283, %v2306
  %v2318 = vmul.f32 %v2284, %v2316
  %v2319 = vperm.slane %v2274, 0
  %v2320 = vmul.f32 %v2317, %v2319
  %v2321 = vmul.f32 %v2318, %v2319
  %s2322 = scalar_lea.vmem %s3, 64
  %v2323 = vld [vmem:[%s2322] sm:$0xff]
  %v2324 = vld [vmem:[%s2322 + $0x8] sm:$0xff]
  %v2325 = vld [vmem:[%s2322 + $0x10] sm:$0xff]
  %v2326 = vld [vmem:[%s2322 + $0x18] sm:$0xff]
  %v2328 = vsel %vm150, %v2320, 0
  %v2331 = vsel %vm150, %v2321, 0
  %2333 = vmatpush.msra.mxu0 0.0
  %2334 = vmatpush.msra.mxu0 0.0
  %2335 = vmatpush.msra.mxu0 0.0
  %2336 = vmatpush.msra.mxu0 0.0
  %2337 = vmatpush.msra.mxu0 0.0
  %2338 = vmatpush.msra.mxu0 0.0
  %2339 = vmatpush.msra.mxu0 0.0
  %2340 = vmatpush.msra.mxu0 0.0
  %2341 = vmatpush.msra.mxu0 0.0
  %2342 = vmatpush.msra.mxu0 0.0
  %2343 = vmatpush.msra.mxu0 0.0
  %2344 = vmatpush.msra.mxu0 0.0
  %2345 = vmatpush.msra.mxu0 %v2326
  %2346 = vmatpush.msra.mxu0 %v2325
  %2347 = vmatpush.msra.mxu0 %v2324
  %2348 = vmatpush.msra.mxu0 %v2323
  %2349 = vmatmul.f32.gmra.mxu0 %v2328
  %v2350 = vpop.f32.mrf.mxu0
  %v2351 = vadd.f32 0.0, %v2350
  %2352 = vmatmul.f32.gmra.mxu0 %v2331
  %v2353 = vpop.f32.mrf.mxu0
  %v2354 = vadd.f32 0.0, %v2353
  %2355 = vdwg.mxu0
  %v2356 = vmul.f32 %v2351, 0.5
  %v2357 = vmul.f32 %v2354, 0.5
  %v2358 = vmul.f32 %v2351, 0.70710677
  %v2359 = vmul.f32 %v2354, 0.70710677
  %vm2360 = vcmp.ge.f32.partialorder %v2358, 0.0
  %vm2361 = vcmp.ge.f32.partialorder %v2359, 0.0
  %v2362 = vsel %vm2360, 1.0, -1.0
  %v2363 = vsel %vm2361, 1.0, -1.0
  %v2364 = vand.u32 2147483647, %v2358
  %v2365 = vand.u32 2147483647, %v2359
  %v2366 = vmul.f32 %v2364, 0.3275911
  %v2367 = vmul.f32 %v2365, 0.3275911
  %v2368 = vadd.f32 %v2366, 1.0
  %v2369 = vadd.f32 %v2367, 1.0
  %v2370 = vrcp.pop %v2368
  %v2371 = vmul.f32 %v2368, %v2370
  %v2372 = vsub.f32 1.0, %v2371
  %v2373 = vmul.f32 %v2370, %v2372
  %v2374 = vadd.f32 %v2370, %v2373
  %vm2375 = vweird.f32 %v2368
  %vm2376 = vweird.f32 %v2370
  %vm2377 = vmor %vm2375, %vm2376
  %v2378 = vsel %vm2377, %v2370, %v2374
  %v2379 = vand.u32 2147483647, %v2368
  %vm2380 = vcmp.eq.f32.partialorder %v2379, 8.507059e+37
  %v2381 = vand.u32 %v2368, 2147483648
  %v2382 = vor.u32 1.1754944e-38, %v2381
  %v2383 = vsel %vm2380, %v2382, %v2378
  %v2384 = vmul.f32 1.0, %v2383
  %v2385 = vrcp.pop %v2369
  %v2386 = vmul.f32 %v2369, %v2385
  %v2387 = vsub.f32 1.0, %v2386
  %v2388 = vmul.f32 %v2385, %v2387
  %v2389 = vadd.f32 %v2385, %v2388
  %vm2390 = vweird.f32 %v2369
  %vm2391 = vweird.f32 %v2385
  %vm2392 = vmor %vm2390, %vm2391
  %v2393 = vsel %vm2392, %v2385, %v2389
  %v2394 = vand.u32 2147483647, %v2369
  %vm2395 = vcmp.eq.f32.partialorder %v2394, 8.507059e+37
  %v2396 = vand.u32 %v2369, 2147483648
  %v2397 = vor.u32 1.1754944e-38, %v2396
  %v2398 = vsel %vm2395, %v2397, %v2393
  %v2399 = vmul.f32 1.0, %v2398
  %v2400 = vmul.f32 %v2384, 1.0614054
  %v2401 = vmul.f32 %v2399, 1.0614054
  %v2402 = vadd.f32 %v2400, -1.4531521
  %v2403 = vadd.f32 %v2401, -1.4531521
  %v2404 = vmul.f32 %v2402, %v2384
  %v2405 = vmul.f32 %v2403, %v2399
  %v2406 = vadd.f32 %v2404, 1.4214138
  %v2407 = vadd.f32 %v2405, 1.4214138
  %v2408 = vmul.f32 %v2406, %v2384
  %v2409 = vmul.f32 %v2407, %v2399
  %v2410 = vadd.f32 %v2408, -0.28449672
  %v2411 = vadd.f32 %v2409, -0.28449672
  %v2412 = vmul.f32 %v2410, %v2384
  %v2413 = vmul.f32 %v2411, %v2399
  %v2414 = vadd.f32 %v2412, 0.2548296
  %v2415 = vadd.f32 %v2413, 0.2548296
  %v2416 = vmul.f32 %v2414, %v2384
  %v2417 = vmul.f32 %v2415, %v2399
  %v2418 = vsub.f32 0.0, %v2364
  %v2419 = vsub.f32 0.0, %v2365
  %v2420 = vmul.f32 %v2418, %v2364
  %v2421 = vmul.f32 %v2419, %v2365
  %v2422 = vmul.f32 %v2420, 1.442695
  %v2423 = vpow.pop %v2422
  %v2424 = vmul.f32 %v2421, 1.442695
  %v2425 = vpow.pop %v2424
  %v2426 = vmul.f32 %v2416, %v2423
  %v2427 = vmul.f32 %v2417, %v2425
  %v2428 = vsub.f32 1.0, %v2426
  %v2429 = vsub.f32 1.0, %v2427
  %v2430 = vmul.f32 %v2362, %v2428
  %v2431 = vmul.f32 %v2363, %v2429
  %v2432 = vadd.f32 %v2430, 1.0
  %v2433 = vadd.f32 %v2431, 1.0
  %v2434 = vmul.f32 %v2356, %v2432
  %v2435 = vmul.f32 %v2357, %v2433
  %s2436 = scalar_lea.vmem %s3, 96
  %v2437 = vld [vmem:[%s2436] sm:$0xff]
  %v2438 = vld [vmem:[%s2436 + $0x8] sm:$0xff]
  %v2439 = vld [vmem:[%s2436 + $0x10] sm:$0xff]
  %v2440 = vld [vmem:[%s2436 + $0x18] sm:$0xff]
  %2441 = vmatpush.xpose.msra.mxu0 0.0
  %2442 = vmatpush.xpose.msra.mxu0 0.0
  %2443 = vmatpush.xpose.msra.mxu0 0.0
  %2444 = vmatpush.xpose.msra.mxu0 0.0
  %2445 = vmatpush.xpose.msra.mxu0 0.0
  %2446 = vmatpush.xpose.msra.mxu0 0.0
  %2447 = vmatpush.xpose.msra.mxu0 0.0
  %2448 = vmatpush.xpose.msra.mxu0 0.0
  %2449 = vmatpush.xpose.msra.mxu0 0.0
  %2450 = vmatpush.xpose.msra.mxu0 0.0
  %2451 = vmatpush.xpose.msra.mxu0 0.0
  %2452 = vmatpush.xpose.msra.mxu0 0.0
  %2453 = vmatpush.xpose.msra.mxu0 %v2440
  %2454 = vmatpush.xpose.msra.mxu0 %v2439
  %2455 = vmatpush.xpose.msra.mxu0 %v2438
  %2456 = vmatpush.xpose.msra.mxu0 %v2437
  %2457 = vmatmul.f32.gmra.mxu0 %v2434
  %v2458 = vpop.f32.mrf.mxu0
  %v2459 = vadd.f32 0.0, %v2458
  %2460 = vmatmul.f32.gmra.mxu0 %v2435
  %v2461 = vpop.f32.mrf.mxu0
  %v2462 = vadd.f32 0.0, %v2461
  %2463 = vdwg.mxu0
  %v2464 = vadd.f32 %v2272, %v2459
  %v2465 = vadd.f32 %v2273, %v2462
  %v2466 = vld [vmem:[%s1 + $0x9] sm:$0x1]
  %v2467 = vld [vmem:[%s1 + $0xa] sm:$0x1]
  %v2468 = vsel %vm150, %v2464, 0.0
  %2469 = vadd.xlane.f32.xlu0 %v2468
  %v2470 = vpop.xlane.xlu0 %2469
  %v2471 = vsel %vm150, %v2465, 0.0
  %2472 = vadd.xlane.f32.xlu0 %v2471
  %v2473 = vpop.xlane.xlu0 %2472
  %v2474 = vmul.f32 %v2470, %v163
  %v2475 = vmul.f32 %v2473, %v163
  %v2476 = vsub.f32 %v2464, %v2474
  %v2477 = vsub.f32 %v2465, %v2475
  %v2478 = vmul.f32 %v2476, %v2476
  %v2479 = vmul.f32 %v2477, %v2477
  %v2480 = vsel %vm150, %v2478, 0.0
  %2481 = vadd.xlane.f32.xlu0 %v2480
  %v2482 = vpop.xlane.xlu0 %2481
  %v2483 = vsel %vm150, %v2479, 0.0
  %2484 = vadd.xlane.f32.xlu0 %v2483
  %v2485 = vpop.xlane.xlu0 %2484
  %v2486 = vmul.f32 %v2482, %v163
  %v2487 = vmul.f32 %v2485, %v163
  %v2488 = vadd.f32 %v2486, 1e-05
  %v2489 = vadd.f32 %v2487, 1e-05
  %v2490 = vrsqrt.pop %v2488
  %v2491 = vmul.f32 %v2490, %v2488
  %v2492 = vmul.f32 %v2491, %v2490
  %v2493 = vmul.f32 0.5, %v2492
  %v2494 = vsub.f32 1.5, %v2493
  %v2495 = vmul.f32 %v2490, %v2494
  %vm2496 = vweird.f32 %v2488
  %vm2497 = vweird.f32 %v2490
  %vm2498 = vmor %vm2496, %vm2497
  %v2499 = vsel %vm2498, %v2490, %v2495
  %v2500 = vrsqrt.pop %v2489
  %v2501 = vmul.f32 %v2500, %v2489
  %v2502 = vmul.f32 %v2501, %v2500
  %v2503 = vmul.f32 0.5, %v2502
  %v2504 = vsub.f32 1.5, %v2503
  %v2505 = vmul.f32 %v2500, %v2504
  %vm2506 = vweird.f32 %v2489
  %vm2507 = vweird.f32 %v2500
  %vm2508 = vmor %vm2506, %vm2507
  %v2509 = vsel %vm2508, %v2500, %v2505
  %v2510 = vmul.f32 %v2476, %v2499
  %v2511 = vmul.f32 %v2477, %v2509
  %v2512 = vperm.slane %v2466, 0
  %v2513 = vmul.f32 %v2510, %v2512
  %v2514 = vmul.f32 %v2511, %v2512
  %v2515 = vperm.slane %v2467, 0
  %v2516 = vadd.f32 %v2513, %v2515
  %v2517 = vadd.f32 %v2514, %v2515
  %v2518 = vld [vmem:[%s1 + $0x28] sm:$0xff]
  %v2519 = vld [vmem:[%s1 + $0x30] sm:$0xff]
  %v2520 = vld [vmem:[%s1 + $0x38] sm:$0xff]
  %v2521 = vld [vmem:[%s1 + $0x40] sm:$0xff]
  %v2522 = vld [vmem:[%s1 + $0xb] sm:$0x1]
  %v2523 = vperm.slane %v2522, 0
  %v2525 = vsel %vm150, %v2516, 0
  %v2528 = vsel %vm150, %v2517, 0
  %2530 = vmatpush.msra.mxu0 0.0
  %2531 = vmatpush.msra.mxu0 0.0
  %2532 = vmatpush.msra.mxu0 0.0
  %2533 = vmatpush.msra.mxu0 0.0
  %2534 = vmatpush.msra.mxu0 0.0
  %2535 = vmatpush.msra.mxu0 0.0
  %2536 = vmatpush.msra.mxu0 0.0
  %2537 = vmatpush.msra.mxu0 0.0
  %2538 = vmatpush.msra.mxu0 0.0
  %2539 = vmatpush.msra.mxu0 0.0
  %2540 = vmatpush.msra.mxu0 0.0
  %2541 = vmatpush.msra.mxu0 0.0
  %2542 = vmatpush.msra.mxu0 %v2521
  %2543 = vmatpush.msra.mxu0 %v2520
  %2544 = vmatpush.msra.mxu0 %v2519
  %2545 = vmatpush.msra.mxu0 %v2518
  %2546 = vmatmul.f32.gmra.mxu0 %v2525
  %v2547 = vpop.f32.mrf.mxu0
  %v2548 = vadd.f32 %v2523, %v2547
  %2549 = vmatmul.f32.gmra.mxu0 %v2528
  %v2550 = vpop.f32.mrf.mxu0
  %v2551 = vadd.f32 %v2523, %v2550
  %2552 = vdwg.mxu0
  %2555 = vrot.lane.b32.xlu0 %v2548, 16
  %v2556 = vpop.permute.xlu0 %2555
  %2557 = vrot.lane.b32.xlu0 %v2551, 16
  %v2558 = vpop.permute.xlu0 %2557
  %v2561 = vsel %vm21, %v2556, 0.0
  %v2562 = vsel %vm22, %v2558, 0.0
  %v2563 = vlaneseq
  %v2564 = vshrl.u32 %v2563, 7
  %v2565 = vlaneseq
  %v2566 = vand.u32 %v2565, 127
  %vm2567 = vcmp.eq.s32.totalorder %v2564, %v2566
  %v2568 = vsel %vm2567, 1, 0
  %v2569 = vcvt.s32.f32 %v2568
  %2572 = vrot.lane.b32.xlu0 %v2561, 112
  %v2573 = vpop.permute.xlu0 %2572
  %2574 = vrot.lane.b32.xlu0 %v2562, 112
  %v2575 = vpop.permute.xlu0 %2574
  %v2576 = vsel %vm76, %v2573, 0
  %v2578 = vsel %vm76, %v2575, 0
  %2580 = vmatpush.msra.mxu0 0.0
  %2581 = vmatpush.msra.mxu0 0.0
  %2582 = vmatpush.msra.mxu0 0.0
  %2583 = vmatpush.msra.mxu0 0.0
  %2584 = vmatpush.msra.mxu0 0.0
  %2585 = vmatpush.msra.mxu0 0.0
  %2586 = vmatpush.msra.mxu0 0.0
  %2587 = vmatpush.msra.mxu0 0.0
  %2588 = vmatpush.msra.mxu0 0.0
  %2589 = vmatpush.msra.mxu0 0.0
  %2590 = vmatpush.msra.mxu0 0.0
  %2591 = vmatpush.msra.mxu0 0.0
  %2592 = vmatpush.msra.mxu0 0.0
  %2593 = vmatpush.msra.mxu0 0.0
  %2594 = vmatpush.msra.mxu0 0.0
  %2595 = vmatpush.msra.mxu0 %v2569
  %2596 = vmatmul.f32.gmra.mxu0 %v2576
  %v2597 = vpop.f32.mrf.mxu0
  %v2598 = vadd.f32 0.0, %v2597
  %2599 = vmatmul.f32.gmra.mxu0 %v2578
  %v2600 = vpop.f32.mrf.mxu0
  %v2601 = vadd.f32 0.0, %v2600
  %2602 = vdwg.mxu0
  %2603 = vst [vmem:[%s4] sm:$0xff] %v2598
  %2604 = vst [vmem:[%s4 + $0x8] sm:$0xff] %v2601
  // Predicated region
  $region18: #{icpretrain_forward.1} parent=0 // pred_check
    _
  $region19: #{icpretrain_forward.1} parent=0 // pred_check_branch
    %2606 = sbr.rel (0) target = $region21
  $region20: #{icpretrain_forward.1} parent=0 // pred_region
    _
  $region21: #{icpretrain_forward.1} parent=0 // pred_fallthru
    _
  // Predicated region
  $region22: #{icpretrain_forward.1} parent=0 // pred_check
    _
  $region23: #{icpretrain_forward.1} parent=0 // pred_check_branch
    %2608 = sbr.rel (0) target = $region25
  $region24: #{icpretrain_forward.1} parent=0 // pred_region
    _
  $region25: #{icpretrain_forward.1} parent=0 // pred_fallthru
    _

</llo_original>
